<compile_context>
chip_gen: v5e
topology: v5e:2x2
jax: 0.10.0
libtpu: 0.0.40
codegen_flags: <defaults>
</compile_context>

<pallas_src>
import jax
import jax.numpy as jnp
from jax.experimental import pallas as pl
from jax.experimental.pallas import tpu as pltpu

FEATURE_LEN = 5
MODEL_DIM = 64
NUM_HEADS = 2
HEAD_DIM = MODEL_DIM // NUM_HEADS
NUM_LAYERS = 4
FF_DIM = 256
OUT_DIM = 2
DEC_DIM = MODEL_DIM // 4
OUT_PAD = 128            # output padded to a full lane tile for dense stores
EPS = 1e-5               # BatchNorm1d / LayerNorm / encoder-layer default eps


# ---------------------------------------------------------------------------
# Shared math helpers (used by kernel and pure-JAX reference).
# bf16 MXU operands, f32 accumulation (documented precision change vs. f32
# PyTorch; covered by the test tolerance).  astype is a no-op on bf16 inputs,
# so pre-cast weights are not re-cast inside the kernel.
# ---------------------------------------------------------------------------
def _mm(a, b):  # a @ b
    return jax.lax.dot_general(
        a.astype(jnp.bfloat16), b.astype(jnp.bfloat16),
        (((1,), (0,)), ((), ())),
        preferred_element_type=jnp.float32)


def _mm_t(a, b):  # a @ b.T (contract last dims)
    return jax.lax.dot_general(
        a.astype(jnp.bfloat16), b.astype(jnp.bfloat16),
        (((1,), (1,)), ((), ())),
        preferred_element_type=jnp.float32)


def _layernorm(x, gamma, beta):
    mu = jnp.mean(x, axis=-1, keepdims=True)
    var = jnp.mean(jnp.square(x - mu), axis=-1, keepdims=True)
    return (x - mu) * jax.lax.rsqrt(var + EPS) * gamma + beta


# ---------------------------------------------------------------------------
# Kernel-side encoder layer on flattened tokens h: (M, D), M = TB * S.
# wq/wk/wv: (H, D, HEAD_DIM) bf16 (1/sqrt(HEAD_DIM) folded into wq),
# wo: (H, HEAD_DIM, D) bf16.
# lvec rows: 0 bq(scaled), 1 bk, 2 bv, 3 bo, 4 ln1_g, 5 ln1_b, 6 ln2_g,
#            7 ln2_b, 8 lin2_b.
# mask_bias: (CM, CM) additive block-diagonal mask (0 / -1e30); CM divides M
# and spans whole batch rows, so chunked softmax is exact.
# ---------------------------------------------------------------------------
def _encoder_layer(h, wq, wk, wv, wo, w1, b1, w2, lvec, mask_bias):
    m = h.shape[0]
    cm = mask_bias.shape[0]
    n_chunks = m // cm
    attn = jnp.zeros((m, MODEL_DIM), jnp.float32)
    for hd in range(NUM_HEADS):
        sl = slice(hd * HEAD_DIM, (hd + 1) * HEAD_DIM)
        q = _mm(h, wq[hd]) + lvec[0:1, sl]          # (M, HD), scale pre-folded
        k = _mm(h, wk[hd]) + lvec[1:2, sl]
        v = _mm(h, wv[hd]) + lvec[2:3, sl]
        outs = []
        for c in range(n_chunks):
            csl = slice(c * cm, (c + 1) * cm)
            s = _mm_t(q[csl], k[csl]) + mask_bias   # (CM, CM) block-diag scores
            s = s - jnp.max(s, axis=-1, keepdims=True)
            p = jnp.exp(s)
            p = p * pl.reciprocal(jnp.sum(p, axis=-1, keepdims=True), approx=True)
            outs.append(_mm(p, v[csl]))             # (CM, HD)
        head_out = outs[0] if n_chunks == 1 else jnp.concatenate(outs, axis=0)
        # Per-head partial out-projection; summing avoids the head concat.
        attn = attn + _mm(head_out, wo[hd])
    attn = attn + lvec[3:4, :]
    h = _layernorm(h + attn, lvec[4:5, :], lvec[5:6, :])     # norm1
    ff = jnp.maximum(_mm(h, w1) + b1, 0.0)
    ff = _mm(ff, w2) + lvec[8:9, :]
    return _layernorm(h + ff, lvec[6:7, :], lvec[7:8, :])    # norm2


# ---------------------------------------------------------------------------
# Pallas kernel: one grid step processes TB batch rows (TB*S tokens).
# misc rows: 0 emb_b (BN folded), 1 emb_ln_g, 2 emb_ln_b, 3 dec_b1,
#            4 dec_b2[:16], 5 dec_ln_g[:16], 6 dec_ln_b[:16], 7 unused
# ---------------------------------------------------------------------------
def man_zone_kernel(x_ref, emb_w_ref, wq_ref, wk_ref, wv_ref, wo_ref,
                    w1_ref, b1_ref, w2_ref, lvec_ref,
                    dec_w1_ref, dec_w2_ref, dec_w3_ref, dec_b3_ref,
                    misc_ref, mask_ref, pool_ref, out_ref):
    x = x_ref[...]                          # (M, F) bf16, consumed only by _mm

    # Feature embedding (eval BatchNorm folded into emb_w / misc[0] host-side):
    # Linear -> ReLU -> LayerNorm.  Dropout = identity.
    h = jnp.maximum(_mm(x, emb_w_ref[...]) + misc_ref[0:1, :], 0.0)
    h = _layernorm(h, misc_ref[1:2, :], misc_ref[2:3, :])

    mask_bias = mask_ref[...]               # host-precomputed additive mask

    # TODO(synk): if a bundle dump shows spills after raising block_rows,
    # switch this static unroll to lax.fori_loop with dynamic layer indexing.
    for l in range(NUM_LAYERS):
        h = _encoder_layer(
            h, wq_ref[l], wk_ref[l], wv_ref[l], wo_ref[l],
            w1_ref[l], b1_ref[l], w2_ref[l], lvec_ref[l], mask_bias)

    # AdaptiveAvgPool1d(1): per-row mean over the sequence via a host-built
    # block-diagonal (TB, M) bf16 averaging matrix (lane/MXU friendly).
    pooled = _mm(pool_ref[...], h)          # (TB, D)

    # Decoder head.
    d = jnp.maximum(_mm(pooled, dec_w1_ref[...]) + misc_ref[3:4, :], 0.0)
    d = jnp.maximum(_mm(d, dec_w2_ref[...]) + misc_ref[4:5, :DEC_DIM], 0.0)
    d = _layernorm(d, misc_ref[5:6, :DEC_DIM], misc_ref[6:7, :DEC_DIM])
    # dec_w3 / dec_b3 are zero-padded to 128 output lanes -> dense store.
    out_ref[...] = _mm(d, dec_w3_ref[...]) + dec_b3_ref[...]


# ---------------------------------------------------------------------------
# Host-side parameter repacking (PyTorch layout -> lane-friendly, bf16 weights).
# ---------------------------------------------------------------------------
def pack_params(p):
    D = MODEL_DIM
    scale = 1.0 / (HEAD_DIM ** 0.5)

    # Fold eval-mode BatchNorm1d into the embedding Linear:
    #   bn(x) = x*s + t ; emb(bn(x)) = x @ (s[:,None]*W) + (t @ W + b)
    s = p["bn_gamma"] * jax.lax.rsqrt(p["bn_var"] + EPS)          # (1, F)
    t = p["bn_beta"] - p["bn_mean"] * s                           # (1, F)
    emb_w = (p["emb_w"] * s.reshape(-1, 1)).astype(jnp.bfloat16)  # (F, D)
    emb_b = p["emb_b"] + jnp.sum(t.reshape(-1, 1) * p["emb_w"],
                                 axis=0, keepdims=True)           # (1, D)

    # QKV split + per-head split; fold the attention scale into wq / bq.
    wq_full = p["inproj_w"][:, :, 0 * D:1 * D] * scale            # (L, D, D)
    wk_full = p["inproj_w"][:, :, 1 * D:2 * D]
    wv_full = p["inproj_w"][:, :, 2 * D:3 * D]

    def split_heads(w):                                           # -> (L, H, D, HD)
        return jnp.transpose(
            w.reshape(NUM_LAYERS, D, NUM_HEADS, HEAD_DIM), (0, 2, 1, 3))

    wq = split_heads(wq_full).astype(jnp.bfloat16)
    wk = split_heads(wk_full).astype(jnp.bfloat16)
    wv = split_heads(wv_full).astype(jnp.bfloat16)
    wo = p["outproj_w"].reshape(
        NUM_LAYERS, NUM_HEADS, HEAD_DIM, D).astype(jnp.bfloat16)

    lvec = jnp.concatenate([
        p["inproj_b"][:, :, 0 * D:1 * D] * scale,   # 0: bq (scaled)
        p["inproj_b"][:, :, 1 * D:2 * D],           # 1: bk
        p["inproj_b"][:, :, 2 * D:3 * D],           # 2: bv
        p["outproj_b"],                             # 3: bo
        p["ln1_g"], p["ln1_b"],                     # 4, 5
        p["ln2_g"], p["ln2_b"],                     # 6, 7
        p["lin2_b"],                                # 8
    ], axis=1)                                      # (L, 9, D) f32

    def pad_d(v):
        return jnp.pad(v, ((0, 0), (0, D - v.shape[1])))

    misc = jnp.concatenate([
        emb_b, p["emb_ln_g"], p["emb_ln_b"], p["dec_b1"],
        pad_d(p["dec_b2"]), pad_d(p["dec_ln_g"]), pad_d(p["dec_ln_b"]),
        jnp.zeros((1, D), jnp.float32),
    ], axis=0)                                      # (8, D) f32

    dec_w3 = jnp.pad(p["dec_w3"], ((0, 0), (0, OUT_PAD - OUT_DIM)))  # (16, 128)
    dec_b3 = jnp.pad(p["dec_b3"], ((0, 0), (0, OUT_PAD - OUT_DIM)))  # (1, 128)

    return [emb_w, wq, wk, wv, wo,
            p["lin1_w"].astype(jnp.bfloat16), p["lin1_b"],
            p["lin2_w"].astype(jnp.bfloat16), lvec,
            p["dec_w1"].astype(jnp.bfloat16), p["dec_w2"].astype(jnp.bfloat16),
            dec_w3.astype(jnp.bfloat16), dec_b3, misc]


def _choose_batch_tile(B, block_rows):
    """Pick rows-per-step: no padding for tiny batches, >=2 steps when possible."""
    if B < 8:
        return B, B                       # single full-extent step, zero padding
    tb = min(block_rows, max(8, (B // 16) * 8))   # aim for >= 2 grid steps
    tb = max(8, (tb // 8) * 8)                    # keep sublane alignment
    b_pad = pl.cdiv(B, tb) * tb
    return tb, b_pad


def man_zone_forward(x, params, block_rows=32, attn_chunk_tokens=128):
    B, S, F = x.shape
    tb, b_pad = _choose_batch_tile(B, block_rows)
    if b_pad != B:
        x = jnp.pad(x, ((0, b_pad - B), (0, 0), (0, 0)))
    x_tok = x.reshape(b_pad * S, F).astype(jnp.bfloat16)   # flattened tokens
    m = tb * S

    # Attention chunk: whole batch rows, ~attn_chunk_tokens tokens, divides tb.
    ck = max(1, min(tb, attn_chunk_tokens // S))
    while tb % ck != 0:
        ck -= 1
    cm = ck * S

    # Host-precomputed additive block-diagonal mask (same for every chunk).
    ids = jnp.arange(cm, dtype=jnp.int32) // S
    mask_bias = jnp.where(ids[:, None] == ids[None, :], 0.0, -1e30
                          ).astype(jnp.float32)             # (CM, CM)
    # Host-precomputed per-row averaging matrix (AdaptiveAvgPool1d(1)).
    rows = jnp.arange(tb, dtype=jnp.int32)[:, None]
    cols = jnp.arange(m, dtype=jnp.int32)[None, :] // S
    pool = jnp.where(rows == cols, 1.0 / S, 0.0).astype(jnp.bfloat16)  # (TB, M)

    operands = pack_params(params) + [mask_bias, pool]

    def const_spec(a):
        zeros = (0,) * a.ndim
        return pl.BlockSpec(a.shape, lambda b, _z=zeros: _z)

    in_specs = [pl.BlockSpec((m, F), lambda b: (b, 0))]
    in_specs += [const_spec(a) for a in operands]

    out = pl.pallas_call(
        man_zone_kernel,
        out_shape=jax.ShapeDtypeStruct((b_pad, OUT_PAD), jnp.float32),
        grid_spec=pltpu.PrefetchScalarGridSpec(
            num_scalar_prefetch=0,
            grid=(b_pad // tb,),
            in_specs=in_specs,
            out_specs=pl.BlockSpec((tb, OUT_PAD), lambda b: (b, 0)),
        ),
        compiler_params=pltpu.CompilerParams(
            dimension_semantics=("parallel",)),
    )(x_tok, *operands)
    return out[:B, :OUT_DIM]


# ---------------------------------------------------------------------------
# Deterministic synthetic parameter init (PyTorch layout, Linear weights
# pre-transposed to (in, out)).
# ---------------------------------------------------------------------------
def init_params(key):
    keys = jax.random.split(key, 28)

    def nrm(k, shape, scale=0.1):
        return scale * jax.random.normal(k, shape, jnp.float32)

    p = {}
    p["bn_gamma"] = 1.0 + nrm(keys[0], (1, FEATURE_LEN))
    p["bn_beta"] = nrm(keys[1], (1, FEATURE_LEN))
    p["bn_mean"] = nrm(keys[2], (1, FEATURE_LEN))
    p["bn_var"] = 1.0 + 0.1 * jax.random.uniform(keys[3], (1, FEATURE_LEN), jnp.float32)
    p["emb_w"] = nrm(keys[4], (FEATURE_LEN, MODEL_DIM))
    p["emb_b"] = nrm(keys[5], (1, MODEL_DIM))
    p["emb_ln_g"] = 1.0 + nrm(keys[6], (1, MODEL_DIM))
    p["emb_ln_b"] = nrm(keys[7], (1, MODEL_DIM))
    p["inproj_w"] = nrm(keys[8], (NUM_LAYERS, MODEL_DIM, 3 * MODEL_DIM))
    p["inproj_b"] = nrm(keys[9], (NUM_LAYERS, 1, 3 * MODEL_DIM))
    p["outproj_w"] = nrm(keys[10], (NUM_LAYERS, MODEL_DIM, MODEL_DIM))
    p["outproj_b"] = nrm(keys[11], (NUM_LAYERS, 1, MODEL_DIM))
    p["lin1_w"] = nrm(keys[12], (NUM_LAYERS, MODEL_DIM, FF_DIM))
    p["lin1_b"] = nrm(keys[13], (NUM_LAYERS, 1, FF_DIM))
    p["lin2_w"] = nrm(keys[14], (NUM_LAYERS, FF_DIM, MODEL_DIM))
    p["lin2_b"] = nrm(keys[15], (NUM_LAYERS, 1, MODEL_DIM))
    p["ln1_g"] = 1.0 + nrm(keys[16], (NUM_LAYERS, 1, MODEL_DIM))
    p["ln1_b"] = nrm(keys[17], (NUM_LAYERS, 1, MODEL_DIM))
    p["ln2_g"] = 1.0 + nrm(keys[18], (NUM_LAYERS, 1, MODEL_DIM))
    p["ln2_b"] = nrm(keys[19], (NUM_LAYERS, 1, MODEL_DIM))
    p["dec_w1"] = nrm(keys[20], (MODEL_DIM, MODEL_DIM))
    p["dec_b1"] = nrm(keys[21], (1, MODEL_DIM))
    p["dec_w2"] = nrm(keys[22], (MODEL_DIM, DEC_DIM))
    p["dec_b2"] = nrm(keys[23], (1, DEC_DIM))
    p["dec_ln_g"] = 1.0 + nrm(keys[24], (1, DEC_DIM))
    p["dec_ln_b"] = nrm(keys[25], (1, DEC_DIM))
    p["dec_w3"] = nrm(keys[26], (DEC_DIM, OUT_DIM))
    p["dec_b3"] = nrm(keys[27], (1, OUT_DIM))
    return p


# ---------------------------------------------------------------------------
# Pure-JAX reference (mirrors the PyTorch module in eval mode, per batch row).
# ---------------------------------------------------------------------------
def _reference_row(xb, p):
    D = MODEL_DIM
    h = (xb - p["bn_mean"]) * jax.lax.rsqrt(p["bn_var"] + EPS) * p["bn_gamma"] + p["bn_beta"]
    h = jnp.maximum(_mm(h, p["emb_w"]) + p["emb_b"], 0.0)
    h = _layernorm(h, p["emb_ln_g"], p["emb_ln_b"])
    scale = 1.0 / (HEAD_DIM ** 0.5)
    for l in range(NUM_LAYERS):
        wqkv, bqkv = p["inproj_w"][l], p["inproj_b"][l]
        q = _mm(h, wqkv[:, 0 * D:1 * D]) + bqkv[:, 0 * D:1 * D]
        k = _mm(h, wqkv[:, 1 * D:2 * D]) + bqkv[:, 1 * D:2 * D]
        v = _mm(h, wqkv[:, 2 * D:3 * D]) + bqkv[:, 2 * D:3 * D]
        heads = []
        for hd in range(NUM_HEADS):
            sl = slice(hd * HEAD_DIM, (hd + 1) * HEAD_DIM)
            sc = _mm_t(q[:, sl], k[:, sl]) * scale
            sc = sc - jnp.max(sc, axis=-1, keepdims=True)
            pr = jnp.exp(sc)
            pr = pr / jnp.sum(pr, axis=-1, keepdims=True)
            heads.append(_mm(pr, v[:, sl]))
        attn = _mm(jnp.concatenate(heads, axis=-1), p["outproj_w"][l]) + p["outproj_b"][l]
        h = _layernorm(h + attn, p["ln1_g"][l], p["ln1_b"][l])
        ff = jnp.maximum(_mm(h, p["lin1_w"][l]) + p["lin1_b"][l], 0.0)
        ff = _mm(ff, p["lin2_w"][l]) + p["lin2_b"][l]
        h = _layernorm(h + ff, p["ln2_g"][l], p["ln2_b"][l])
    pooled = jnp.mean(h, axis=0, keepdims=True)
    d = jnp.maximum(_mm(pooled, p["dec_w1"]) + p["dec_b1"], 0.0)
    d = jnp.maximum(_mm(d, p["dec_w2"]) + p["dec_b2"], 0.0)
    d = _layernorm(d, p["dec_ln_g"], p["dec_ln_b"])
    d = _mm(d, p["dec_w3"]) + p["dec_b3"]
    return d[0]


def reference_forward(x, params):
    return jax.vmap(lambda xb: _reference_row(xb, params))(x)


if __name__ == "__main__":
    key = jax.random.PRNGKey(0)
    k_x, k_p = jax.random.split(key)

    B, S = 2, 8                              # batch=2, seq (players)=8, features=5
    x = jax.random.normal(k_x, (B, S, FEATURE_LEN), jnp.float32)
    params = init_params(k_p)

    out = jax.block_until_ready(jax.jit(man_zone_forward)(x, params))
    ref = jax.block_until_ready(jax.jit(reference_forward)(x, params))

    assert out.shape == (B, OUT_DIM), out.shape
    assert jnp.allclose(out, ref, rtol=2e-2, atol=2e-2), (out, ref)

    print("KERNEL_OK")
</pallas_src>

<mosaic_0001>
module attributes {stable_mosaic.version = 11 : i64} {
  func.func @man_zone_kernel(%arg0: i32, %arg1: memref<16x5xbf16, #tpu.memory_space<vmem>>, %arg2: memref<5x64xbf16, #tpu.memory_space<vmem>>, %arg3: memref<4x2x64x32xbf16, #tpu.memory_space<vmem>>, %arg4: memref<4x2x64x32xbf16, #tpu.memory_space<vmem>>, %arg5: memref<4x2x64x32xbf16, #tpu.memory_space<vmem>>, %arg6: memref<4x2x32x64xbf16, #tpu.memory_space<vmem>>, %arg7: memref<4x64x256xbf16, #tpu.memory_space<vmem>>, %arg8: memref<4x1x256xf32, #tpu.memory_space<vmem>>, %arg9: memref<4x256x64xbf16, #tpu.memory_space<vmem>>, %arg10: memref<4x9x64xf32, #tpu.memory_space<vmem>>, %arg11: memref<64x64xbf16, #tpu.memory_space<vmem>>, %arg12: memref<64x16xbf16, #tpu.memory_space<vmem>>, %arg13: memref<16x128xbf16, #tpu.memory_space<vmem>>, %arg14: memref<1x128xf32, #tpu.memory_space<vmem>>, %arg15: memref<8x64xf32, #tpu.memory_space<vmem>>, %arg16: memref<16x16xf32, #tpu.memory_space<vmem>>, %arg17: memref<2x16xbf16, #tpu.memory_space<vmem>>, %arg18: memref<2x128xf32, #tpu.memory_space<vmem>>) attributes {dimension_semantics = [#tpu.dimension_semantics<parallel>], iteration_bounds = array<i64: 1>, scalar_prefetch = 0 : i64, scratch_operands = 0 : i64, tpu.core_type = #tpu.core_type<tc>, window_params = [{transform_indices = @transform_0, window_bounds = array<i64: 16, 5>}, {pipeline_mode = #tpu.pipeline_mode<synchronous>, transform_indices = @transform_1, window_bounds = array<i64: 5, 64>}, {pipeline_mode = #tpu.pipeline_mode<synchronous>, transform_indices = @transform_2, window_bounds = array<i64: 4, 2, 64, 32>}, {pipeline_mode = #tpu.pipeline_mode<synchronous>, transform_indices = @transform_3, window_bounds = array<i64: 4, 2, 64, 32>}, {pipeline_mode = #tpu.pipeline_mode<synchronous>, transform_indices = @transform_4, window_bounds = array<i64: 4, 2, 64, 32>}, {pipeline_mode = #tpu.pipeline_mode<synchronous>, transform_indices = @transform_5, window_bounds = array<i64: 4, 2, 32, 64>}, {pipeline_mode = #tpu.pipeline_mode<synchronous>, transform_indices = @transform_6, window_bounds = array<i64: 4, 64, 256>}, {pipeline_mode = #tpu.pipeline_mode<synchronous>, transform_indices = @transform_7, window_bounds = array<i64: 4, 1, 256>}, {pipeline_mode = #tpu.pipeline_mode<synchronous>, transform_indices = @transform_8, window_bounds = array<i64: 4, 256, 64>}, {pipeline_mode = #tpu.pipeline_mode<synchronous>, transform_indices = @transform_9, window_bounds = array<i64: 4, 9, 64>}, {pipeline_mode = #tpu.pipeline_mode<synchronous>, transform_indices = @transform_10, window_bounds = array<i64: 64, 64>}, {pipeline_mode = #tpu.pipeline_mode<synchronous>, transform_indices = @transform_11, window_bounds = array<i64: 64, 16>}, {pipeline_mode = #tpu.pipeline_mode<synchronous>, transform_indices = @transform_12, window_bounds = array<i64: 16, 128>}, {pipeline_mode = #tpu.pipeline_mode<synchronous>, transform_indices = @transform_13, window_bounds = array<i64: 1, 128>}, {pipeline_mode = #tpu.pipeline_mode<synchronous>, transform_indices = @transform_14, window_bounds = array<i64: 8, 64>}, {pipeline_mode = #tpu.pipeline_mode<synchronous>, transform_indices = @transform_15, window_bounds = array<i64: 16, 16>}, {pipeline_mode = #tpu.pipeline_mode<synchronous>, transform_indices = @transform_16, window_bounds = array<i64: 2, 16>}, {transform_indices = @transform_17, window_bounds = array<i64: 2, 128>}]} {
    %c0 = arith.constant 0 : index
    %c0_0 = arith.constant 0 : index
    %0 = vector.load %arg1[%c0, %c0_0] : memref<16x5xbf16, #tpu.memory_space<vmem>>, vector<16x5xbf16>
    %c0_1 = arith.constant 0 : index
    %c0_2 = arith.constant 0 : index
    %1 = vector.load %arg2[%c0_1, %c0_2] : memref<5x64xbf16, #tpu.memory_space<vmem>>, vector<5x64xbf16>
    %cst = arith.constant dense<0.000000e+00> : vector<16x64xf32>
    %2 = tpu.matmul %0, %1, %cst {dimension_numbers = #tpu.dot_dimension_numbers<[1], [0], [0], [1], [0, 0, 1, 1], [], []>} : vector<16x5xbf16>, vector<5x64xbf16>, vector<16x64xf32> -> vector<16x64xf32>
    %c0_3 = arith.constant 0 : index
    %c0_4 = arith.constant 0 : index
    %3 = vector.load %arg15[%c0_3, %c0_4] : memref<8x64xf32, #tpu.memory_space<vmem>>, vector<1x64xf32>
    %4 = vector.broadcast %3 : vector<1x64xf32> to vector<16x64xf32>
    %5 = arith.addf %2, %4 : vector<16x64xf32>
    %cst_5 = arith.constant 0.000000e+00 : f32
    %6 = vector.broadcast %cst_5 : f32 to vector<16x64xf32>
    %7 = arith.maximumf %5, %6 : vector<16x64xf32>
    %c1 = arith.constant 1 : index
    %c0_6 = arith.constant 0 : index
    %8 = vector.load %arg15[%c1, %c0_6] : memref<8x64xf32, #tpu.memory_space<vmem>>, vector<1x64xf32>
    %c2 = arith.constant 2 : index
    %c0_7 = arith.constant 0 : index
    %9 = vector.load %arg15[%c2, %c0_7] : memref<8x64xf32, #tpu.memory_space<vmem>>, vector<1x64xf32>
    %cst_8 = arith.constant dense<0.000000e+00> : vector<16xf32>
    %10 = vector.multi_reduction <add>, %7, %cst_8 [1] : vector<16x64xf32> to vector<16xf32>
    %11 = vector.shape_cast %10 : vector<16xf32> to vector<16x1xf32>
    %cst_9 = arith.constant 6.400000e+01 : f32
    %12 = vector.broadcast %cst_9 : f32 to vector<16x1xf32>
    %13 = arith.divf %11, %12 : vector<16x1xf32>
    %14 = vector.broadcast %13 : vector<16x1xf32> to vector<16x64xf32>
    %15 = arith.subf %7, %14 : vector<16x64xf32>
    %16 = arith.mulf %15, %15 : vector<16x64xf32>
    %cst_10 = arith.constant dense<0.000000e+00> : vector<16xf32>
    %17 = vector.multi_reduction <add>, %16, %cst_10 [1] : vector<16x64xf32> to vector<16xf32>
    %18 = vector.shape_cast %17 : vector<16xf32> to vector<16x1xf32>
    %cst_11 = arith.constant 6.400000e+01 : f32
    %19 = vector.broadcast %cst_11 : f32 to vector<16x1xf32>
    %20 = arith.divf %18, %19 : vector<16x1xf32>
    %21 = vector.broadcast %13 : vector<16x1xf32> to vector<16x64xf32>
    %22 = arith.subf %7, %21 : vector<16x64xf32>
    %cst_12 = arith.constant 9.99999974E-6 : f32
    %23 = vector.broadcast %cst_12 : f32 to vector<16x1xf32>
    %24 = arith.addf %20, %23 : vector<16x1xf32>
    %25 = math.rsqrt %24 : vector<16x1xf32>
    %26 = vector.broadcast %25 : vector<16x1xf32> to vector<16x64xf32>
    %27 = arith.mulf %22, %26 : vector<16x64xf32>
    %28 = vector.broadcast %8 : vector<1x64xf32> to vector<16x64xf32>
    %29 = arith.mulf %27, %28 : vector<16x64xf32>
    %30 = vector.broadcast %9 : vector<1x64xf32> to vector<16x64xf32>
    %31 = arith.addf %29, %30 : vector<16x64xf32>
    %c0_13 = arith.constant 0 : index
    %c0_14 = arith.constant 0 : index
    %32 = vector.load %arg16[%c0_13, %c0_14] : memref<16x16xf32, #tpu.memory_space<vmem>>, vector<16x16xf32>
    %c0_15 = arith.constant 0 : index
    %c0_16 = arith.constant 0 : index
    %c0_17 = arith.constant 0 : index
    %c0_18 = arith.constant 0 : index
    %33 = vector.load %arg3[%c0_15, %c0_16, %c0_17, %c0_18] : memref<4x2x64x32xbf16, #tpu.memory_space<vmem>>, vector<1x2x64x32xbf16>
    %34 = vector.shape_cast %33 : vector<1x2x64x32xbf16> to vector<2x64x32xbf16>
    %c0_19 = arith.constant 0 : index
    %c0_20 = arith.constant 0 : index
    %c0_21 = arith.constant 0 : index
    %c0_22 = arith.constant 0 : index
    %35 = vector.load %arg4[%c0_19, %c0_20, %c0_21, %c0_22] : memref<4x2x64x32xbf16, #tpu.memory_space<vmem>>, vector<1x2x64x32xbf16>
    %36 = vector.shape_cast %35 : vector<1x2x64x32xbf16> to vector<2x64x32xbf16>
    %c0_23 = arith.constant 0 : index
    %c0_24 = arith.constant 0 : index
    %c0_25 = arith.constant 0 : index
    %c0_26 = arith.constant 0 : index
    %37 = vector.load %arg5[%c0_23, %c0_24, %c0_25, %c0_26] : memref<4x2x64x32xbf16, #tpu.memory_space<vmem>>, vector<1x2x64x32xbf16>
    %38 = vector.shape_cast %37 : vector<1x2x64x32xbf16> to vector<2x64x32xbf16>
    %c0_27 = arith.constant 0 : index
    %c0_28 = arith.constant 0 : index
    %c0_29 = arith.constant 0 : index
    %c0_30 = arith.constant 0 : index
    %39 = vector.load %arg6[%c0_27, %c0_28, %c0_29, %c0_30] : memref<4x2x32x64xbf16, #tpu.memory_space<vmem>>, vector<1x2x32x64xbf16>
    %40 = vector.shape_cast %39 : vector<1x2x32x64xbf16> to vector<2x32x64xbf16>
    %c0_31 = arith.constant 0 : index
    %c0_32 = arith.constant 0 : index
    %c0_33 = arith.constant 0 : index
    %41 = vector.load %arg7[%c0_31, %c0_32, %c0_33] : memref<4x64x256xbf16, #tpu.memory_space<vmem>>, vector<1x64x256xbf16>
    %42 = vector.shape_cast %41 : vector<1x64x256xbf16> to vector<64x256xbf16>
    %c0_34 = arith.constant 0 : index
    %c0_35 = arith.constant 0 : index
    %c0_36 = arith.constant 0 : index
    %43 = vector.load %arg8[%c0_34, %c0_35, %c0_36] : memref<4x1x256xf32, #tpu.memory_space<vmem>>, vector<1x1x256xf32>
    %44 = vector.shape_cast %43 : vector<1x1x256xf32> to vector<1x256xf32>
    %c0_37 = arith.constant 0 : index
    %c0_38 = arith.constant 0 : index
    %c0_39 = arith.constant 0 : index
    %45 = vector.load %arg9[%c0_37, %c0_38, %c0_39] : memref<4x256x64xbf16, #tpu.memory_space<vmem>>, vector<1x256x64xbf16>
    %46 = vector.shape_cast %45 : vector<1x256x64xbf16> to vector<256x64xbf16>
    %c0_40 = arith.constant 0 : index
    %c0_41 = arith.constant 0 : index
    %c0_42 = arith.constant 0 : index
    %47 = vector.load %arg10[%c0_40, %c0_41, %c0_42] : memref<4x9x64xf32, #tpu.memory_space<vmem>>, vector<1x9x64xf32>
    %48 = vector.shape_cast %47 : vector<1x9x64xf32> to vector<9x64xf32>
    %cst_43 = arith.constant 0.000000e+00 : f32
    %49 = vector.broadcast %cst_43 : f32 to vector<16x64xf32>
    %50 = vector.extract_strided_slice %34 {offsets = [0, 0, 0], sizes = [1, 64, 32], strides = [1, 1, 1]} : vector<2x64x32xbf16> to vector<1x64x32xbf16>
    %51 = vector.shape_cast %50 : vector<1x64x32xbf16> to vector<64x32xbf16>
    %52 = arith.truncf %31 : vector<16x64xf32> to vector<16x64xbf16>
    %cst_44 = arith.constant dense<0.000000e+00> : vector<16x32xf32>
    %53 = tpu.matmul %52, %51, %cst_44 {dimension_numbers = #tpu.dot_dimension_numbers<[1], [0], [0], [1], [0, 0, 1, 1], [], []>} : vector<16x64xbf16>, vector<64x32xbf16>, vector<16x32xf32> -> vector<16x32xf32>
    %54 = vector.extract_strided_slice %48 {offsets = [0, 0], sizes = [1, 32], strides = [1, 1]} : vector<9x64xf32> to vector<1x32xf32>
    %55 = vector.broadcast %54 : vector<1x32xf32> to vector<16x32xf32>
    %56 = arith.addf %53, %55 : vector<16x32xf32>
    %57 = vector.extract_strided_slice %36 {offsets = [0, 0, 0], sizes = [1, 64, 32], strides = [1, 1, 1]} : vector<2x64x32xbf16> to vector<1x64x32xbf16>
    %58 = vector.shape_cast %57 : vector<1x64x32xbf16> to vector<64x32xbf16>
    %59 = arith.truncf %31 : vector<16x64xf32> to vector<16x64xbf16>
    %cst_45 = arith.constant dense<0.000000e+00> : vector<16x32xf32>
    %60 = tpu.matmul %59, %58, %cst_45 {dimension_numbers = #tpu.dot_dimension_numbers<[1], [0], [0], [1], [0, 0, 1, 1], [], []>} : vector<16x64xbf16>, vector<64x32xbf16>, vector<16x32xf32> -> vector<16x32xf32>
    %61 = vector.extract_strided_slice %48 {offsets = [1, 0], sizes = [1, 32], strides = [1, 1]} : vector<9x64xf32> to vector<1x32xf32>
    %62 = vector.broadcast %61 : vector<1x32xf32> to vector<16x32xf32>
    %63 = arith.addf %60, %62 : vector<16x32xf32>
    %64 = vector.extract_strided_slice %38 {offsets = [0, 0, 0], sizes = [1, 64, 32], strides = [1, 1, 1]} : vector<2x64x32xbf16> to vector<1x64x32xbf16>
    %65 = vector.shape_cast %64 : vector<1x64x32xbf16> to vector<64x32xbf16>
    %66 = arith.truncf %31 : vector<16x64xf32> to vector<16x64xbf16>
    %cst_46 = arith.constant dense<0.000000e+00> : vector<16x32xf32>
    %67 = tpu.matmul %66, %65, %cst_46 {dimension_numbers = #tpu.dot_dimension_numbers<[1], [0], [0], [1], [0, 0, 1, 1], [], []>} : vector<16x64xbf16>, vector<64x32xbf16>, vector<16x32xf32> -> vector<16x32xf32>
    %68 = vector.extract_strided_slice %48 {offsets = [2, 0], sizes = [1, 32], strides = [1, 1]} : vector<9x64xf32> to vector<1x32xf32>
    %69 = vector.broadcast %68 : vector<1x32xf32> to vector<16x32xf32>
    %70 = arith.addf %67, %69 : vector<16x32xf32>
    %71 = arith.truncf %56 : vector<16x32xf32> to vector<16x32xbf16>
    %72 = arith.truncf %63 : vector<16x32xf32> to vector<16x32xbf16>
    %cst_47 = arith.constant dense<0.000000e+00> : vector<16x16xf32>
    %73 = tpu.matmul %71, %72, %cst_47 {dimension_numbers = #tpu.dot_dimension_numbers<[1], [1], [0], [0], [0, 0, 1, 0], [], []>} : vector<16x32xbf16>, vector<16x32xbf16>, vector<16x16xf32> -> vector<16x16xf32>
    %74 = arith.addf %73, %32 : vector<16x16xf32>
    %cst_48 = arith.constant dense<0xFF800000> : vector<16xf32>
    %75 = vector.multi_reduction <maximumf>, %74, %cst_48 [1] : vector<16x16xf32> to vector<16xf32>
    %76 = vector.shape_cast %75 : vector<16xf32> to vector<16x1xf32>
    %77 = vector.broadcast %76 : vector<16x1xf32> to vector<16x16xf32>
    %78 = arith.subf %74, %77 : vector<16x16xf32>
    %79 = math.exp %78 : vector<16x16xf32>
    %cst_49 = arith.constant dense<0.000000e+00> : vector<16xf32>
    %80 = vector.multi_reduction <add>, %79, %cst_49 [1] : vector<16x16xf32> to vector<16xf32>
    %81 = vector.shape_cast %80 : vector<16xf32> to vector<16x1xf32>
    %82 = tpu.reciprocal %81 {approx = true} : vector<16x1xf32> -> vector<16x1xf32>
    %83 = vector.broadcast %82 : vector<16x1xf32> to vector<16x16xf32>
    %84 = arith.mulf %79, %83 : vector<16x16xf32>
    %85 = arith.truncf %84 : vector<16x16xf32> to vector<16x16xbf16>
    %86 = arith.truncf %70 : vector<16x32xf32> to vector<16x32xbf16>
    %cst_50 = arith.constant dense<0.000000e+00> : vector<16x32xf32>
    %87 = tpu.matmul %85, %86, %cst_50 {dimension_numbers = #tpu.dot_dimension_numbers<[1], [0], [0], [1], [0, 0, 1, 1], [], []>} : vector<16x16xbf16>, vector<16x32xbf16>, vector<16x32xf32> -> vector<16x32xf32>
    %88 = vector.extract_strided_slice %40 {offsets = [0, 0, 0], sizes = [1, 32, 64], strides = [1, 1, 1]} : vector<2x32x64xbf16> to vector<1x32x64xbf16>
    %89 = vector.shape_cast %88 : vector<1x32x64xbf16> to vector<32x64xbf16>
    %90 = arith.truncf %87 : vector<16x32xf32> to vector<16x32xbf16>
    %cst_51 = arith.constant dense<0.000000e+00> : vector<16x64xf32>
    %91 = tpu.matmul %90, %89, %cst_51 {dimension_numbers = #tpu.dot_dimension_numbers<[1], [0], [0], [1], [0, 0, 1, 1], [], []>} : vector<16x32xbf16>, vector<32x64xbf16>, vector<16x64xf32> -> vector<16x64xf32>
    %92 = arith.addf %49, %91 : vector<16x64xf32>
    %93 = vector.extract_strided_slice %34 {offsets = [1, 0, 0], sizes = [1, 64, 32], strides = [1, 1, 1]} : vector<2x64x32xbf16> to vector<1x64x32xbf16>
    %94 = vector.shape_cast %93 : vector<1x64x32xbf16> to vector<64x32xbf16>
    %95 = arith.truncf %31 : vector<16x64xf32> to vector<16x64xbf16>
    %cst_52 = arith.constant dense<0.000000e+00> : vector<16x32xf32>
    %96 = tpu.matmul %95, %94, %cst_52 {dimension_numbers = #tpu.dot_dimension_numbers<[1], [0], [0], [1], [0, 0, 1, 1], [], []>} : vector<16x64xbf16>, vector<64x32xbf16>, vector<16x32xf32> -> vector<16x32xf32>
    %97 = vector.extract_strided_slice %48 {offsets = [0, 32], sizes = [1, 32], strides = [1, 1]} : vector<9x64xf32> to vector<1x32xf32>
    %98 = vector.broadcast %97 : vector<1x32xf32> to vector<16x32xf32>
    %99 = arith.addf %96, %98 : vector<16x32xf32>
    %100 = vector.extract_strided_slice %36 {offsets = [1, 0, 0], sizes = [1, 64, 32], strides = [1, 1, 1]} : vector<2x64x32xbf16> to vector<1x64x32xbf16>
    %101 = vector.shape_cast %100 : vector<1x64x32xbf16> to vector<64x32xbf16>
    %102 = arith.truncf %31 : vector<16x64xf32> to vector<16x64xbf16>
    %cst_53 = arith.constant dense<0.000000e+00> : vector<16x32xf32>
    %103 = tpu.matmul %102, %101, %cst_53 {dimension_numbers = #tpu.dot_dimension_numbers<[1], [0], [0], [1], [0, 0, 1, 1], [], []>} : vector<16x64xbf16>, vector<64x32xbf16>, vector<16x32xf32> -> vector<16x32xf32>
    %104 = vector.extract_strided_slice %48 {offsets = [1, 32], sizes = [1, 32], strides = [1, 1]} : vector<9x64xf32> to vector<1x32xf32>
    %105 = vector.broadcast %104 : vector<1x32xf32> to vector<16x32xf32>
    %106 = arith.addf %103, %105 : vector<16x32xf32>
    %107 = vector.extract_strided_slice %38 {offsets = [1, 0, 0], sizes = [1, 64, 32], strides = [1, 1, 1]} : vector<2x64x32xbf16> to vector<1x64x32xbf16>
    %108 = vector.shape_cast %107 : vector<1x64x32xbf16> to vector<64x32xbf16>
    %109 = arith.truncf %31 : vector<16x64xf32> to vector<16x64xbf16>
    %cst_54 = arith.constant dense<0.000000e+00> : vector<16x32xf32>
    %110 = tpu.matmul %109, %108, %cst_54 {dimension_numbers = #tpu.dot_dimension_numbers<[1], [0], [0], [1], [0, 0, 1, 1], [], []>} : vector<16x64xbf16>, vector<64x32xbf16>, vector<16x32xf32> -> vector<16x32xf32>
    %111 = vector.extract_strided_slice %48 {offsets = [2, 32], sizes = [1, 32], strides = [1, 1]} : vector<9x64xf32> to vector<1x32xf32>
    %112 = vector.broadcast %111 : vector<1x32xf32> to vector<16x32xf32>
    %113 = arith.addf %110, %112 : vector<16x32xf32>
    %114 = arith.truncf %99 : vector<16x32xf32> to vector<16x32xbf16>
    %115 = arith.truncf %106 : vector<16x32xf32> to vector<16x32xbf16>
    %cst_55 = arith.constant dense<0.000000e+00> : vector<16x16xf32>
    %116 = tpu.matmul %114, %115, %cst_55 {dimension_numbers = #tpu.dot_dimension_numbers<[1], [1], [0], [0], [0, 0, 1, 0], [], []>} : vector<16x32xbf16>, vector<16x32xbf16>, vector<16x16xf32> -> vector<16x16xf32>
    %117 = arith.addf %116, %32 : vector<16x16xf32>
    %cst_56 = arith.constant dense<0xFF800000> : vector<16xf32>
    %118 = vector.multi_reduction <maximumf>, %117, %cst_56 [1] : vector<16x16xf32> to vector<16xf32>
    %119 = vector.shape_cast %118 : vector<16xf32> to vector<16x1xf32>
    %120 = vector.broadcast %119 : vector<16x1xf32> to vector<16x16xf32>
    %121 = arith.subf %117, %120 : vector<16x16xf32>
    %122 = math.exp %121 : vector<16x16xf32>
    %cst_57 = arith.constant dense<0.000000e+00> : vector<16xf32>
    %123 = vector.multi_reduction <add>, %122, %cst_57 [1] : vector<16x16xf32> to vector<16xf32>
    %124 = vector.shape_cast %123 : vector<16xf32> to vector<16x1xf32>
    %125 = tpu.reciprocal %124 {approx = true} : vector<16x1xf32> -> vector<16x1xf32>
    %126 = vector.broadcast %125 : vector<16x1xf32> to vector<16x16xf32>
    %127 = arith.mulf %122, %126 : vector<16x16xf32>
    %128 = arith.truncf %127 : vector<16x16xf32> to vector<16x16xbf16>
    %129 = arith.truncf %113 : vector<16x32xf32> to vector<16x32xbf16>
    %cst_58 = arith.constant dense<0.000000e+00> : vector<16x32xf32>
    %130 = tpu.matmul %128, %129, %cst_58 {dimension_numbers = #tpu.dot_dimension_numbers<[1], [0], [0], [1], [0, 0, 1, 1], [], []>} : vector<16x16xbf16>, vector<16x32xbf16>, vector<16x32xf32> -> vector<16x32xf32>
    %131 = vector.extract_strided_slice %40 {offsets = [1, 0, 0], sizes = [1, 32, 64], strides = [1, 1, 1]} : vector<2x32x64xbf16> to vector<1x32x64xbf16>
    %132 = vector.shape_cast %131 : vector<1x32x64xbf16> to vector<32x64xbf16>
    %133 = arith.truncf %130 : vector<16x32xf32> to vector<16x32xbf16>
    %cst_59 = arith.constant dense<0.000000e+00> : vector<16x64xf32>
    %134 = tpu.matmul %133, %132, %cst_59 {dimension_numbers = #tpu.dot_dimension_numbers<[1], [0], [0], [1], [0, 0, 1, 1], [], []>} : vector<16x32xbf16>, vector<32x64xbf16>, vector<16x64xf32> -> vector<16x64xf32>
    %135 = arith.addf %92, %134 : vector<16x64xf32>
    %136 = vector.extract_strided_slice %48 {offsets = [3, 0], sizes = [1, 64], strides = [1, 1]} : vector<9x64xf32> to vector<1x64xf32>
    %137 = vector.broadcast %136 : vector<1x64xf32> to vector<16x64xf32>
    %138 = arith.addf %135, %137 : vector<16x64xf32>
    %139 = arith.addf %31, %138 : vector<16x64xf32>
    %140 = vector.extract_strided_slice %48 {offsets = [4, 0], sizes = [1, 64], strides = [1, 1]} : vector<9x64xf32> to vector<1x64xf32>
    %141 = vector.extract_strided_slice %48 {offsets = [5, 0], sizes = [1, 64], strides = [1, 1]} : vector<9x64xf32> to vector<1x64xf32>
    %cst_60 = arith.constant dense<0.000000e+00> : vector<16xf32>
    %142 = vector.multi_reduction <add>, %139, %cst_60 [1] : vector<16x64xf32> to vector<16xf32>
    %143 = vector.shape_cast %142 : vector<16xf32> to vector<16x1xf32>
    %cst_61 = arith.constant 6.400000e+01 : f32
    %144 = vector.broadcast %cst_61 : f32 to vector<16x1xf32>
    %145 = arith.divf %143, %144 : vector<16x1xf32>
    %146 = vector.broadcast %145 : vector<16x1xf32> to vector<16x64xf32>
    %147 = arith.subf %139, %146 : vector<16x64xf32>
    %148 = arith.mulf %147, %147 : vector<16x64xf32>
    %cst_62 = arith.constant dense<0.000000e+00> : vector<16xf32>
    %149 = vector.multi_reduction <add>, %148, %cst_62 [1] : vector<16x64xf32> to vector<16xf32>
    %150 = vector.shape_cast %149 : vector<16xf32> to vector<16x1xf32>
    %cst_63 = arith.constant 6.400000e+01 : f32
    %151 = vector.broadcast %cst_63 : f32 to vector<16x1xf32>
    %152 = arith.divf %150, %151 : vector<16x1xf32>
    %153 = vector.broadcast %145 : vector<16x1xf32> to vector<16x64xf32>
    %154 = arith.subf %139, %153 : vector<16x64xf32>
    %cst_64 = arith.constant 9.99999974E-6 : f32
    %155 = vector.broadcast %cst_64 : f32 to vector<16x1xf32>
    %156 = arith.addf %152, %155 : vector<16x1xf32>
    %157 = math.rsqrt %156 : vector<16x1xf32>
    %158 = vector.broadcast %157 : vector<16x1xf32> to vector<16x64xf32>
    %159 = arith.mulf %154, %158 : vector<16x64xf32>
    %160 = vector.broadcast %140 : vector<1x64xf32> to vector<16x64xf32>
    %161 = arith.mulf %159, %160 : vector<16x64xf32>
    %162 = vector.broadcast %141 : vector<1x64xf32> to vector<16x64xf32>
    %163 = arith.addf %161, %162 : vector<16x64xf32>
    %164 = arith.truncf %163 : vector<16x64xf32> to vector<16x64xbf16>
    %cst_65 = arith.constant dense<0.000000e+00> : vector<16x256xf32>
    %165 = tpu.matmul %164, %42, %cst_65 {dimension_numbers = #tpu.dot_dimension_numbers<[1], [0], [0], [1], [0, 0, 1, 1], [], []>} : vector<16x64xbf16>, vector<64x256xbf16>, vector<16x256xf32> -> vector<16x256xf32>
    %166 = vector.broadcast %44 : vector<1x256xf32> to vector<16x256xf32>
    %167 = arith.addf %165, %166 : vector<16x256xf32>
    %cst_66 = arith.constant 0.000000e+00 : f32
    %168 = vector.broadcast %cst_66 : f32 to vector<16x256xf32>
    %169 = arith.maximumf %167, %168 : vector<16x256xf32>
    %170 = arith.truncf %169 : vector<16x256xf32> to vector<16x256xbf16>
    %cst_67 = arith.constant dense<0.000000e+00> : vector<16x64xf32>
    %171 = tpu.matmul %170, %46, %cst_67 {dimension_numbers = #tpu.dot_dimension_numbers<[1], [0], [0], [1], [0, 0, 1, 1], [], []>} : vector<16x256xbf16>, vector<256x64xbf16>, vector<16x64xf32> -> vector<16x64xf32>
    %172 = vector.extract_strided_slice %48 {offsets = [8, 0], sizes = [1, 64], strides = [1, 1]} : vector<9x64xf32> to vector<1x64xf32>
    %173 = vector.broadcast %172 : vector<1x64xf32> to vector<16x64xf32>
    %174 = arith.addf %171, %173 : vector<16x64xf32>
    %175 = arith.addf %163, %174 : vector<16x64xf32>
    %176 = vector.extract_strided_slice %48 {offsets = [6, 0], sizes = [1, 64], strides = [1, 1]} : vector<9x64xf32> to vector<1x64xf32>
    %177 = vector.extract_strided_slice %48 {offsets = [7, 0], sizes = [1, 64], strides = [1, 1]} : vector<9x64xf32> to vector<1x64xf32>
    %cst_68 = arith.constant dense<0.000000e+00> : vector<16xf32>
    %178 = vector.multi_reduction <add>, %175, %cst_68 [1] : vector<16x64xf32> to vector<16xf32>
    %179 = vector.shape_cast %178 : vector<16xf32> to vector<16x1xf32>
    %cst_69 = arith.constant 6.400000e+01 : f32
    %180 = vector.broadcast %cst_69 : f32 to vector<16x1xf32>
    %181 = arith.divf %179, %180 : vector<16x1xf32>
    %182 = vector.broadcast %181 : vector<16x1xf32> to vector<16x64xf32>
    %183 = arith.subf %175, %182 : vector<16x64xf32>
    %184 = arith.mulf %183, %183 : vector<16x64xf32>
    %cst_70 = arith.constant dense<0.000000e+00> : vector<16xf32>
    %185 = vector.multi_reduction <add>, %184, %cst_70 [1] : vector<16x64xf32> to vector<16xf32>
    %186 = vector.shape_cast %185 : vector<16xf32> to vector<16x1xf32>
    %cst_71 = arith.constant 6.400000e+01 : f32
    %187 = vector.broadcast %cst_71 : f32 to vector<16x1xf32>
    %188 = arith.divf %186, %187 : vector<16x1xf32>
    %189 = vector.broadcast %181 : vector<16x1xf32> to vector<16x64xf32>
    %190 = arith.subf %175, %189 : vector<16x64xf32>
    %cst_72 = arith.constant 9.99999974E-6 : f32
    %191 = vector.broadcast %cst_72 : f32 to vector<16x1xf32>
    %192 = arith.addf %188, %191 : vector<16x1xf32>
    %193 = math.rsqrt %192 : vector<16x1xf32>
    %194 = vector.broadcast %193 : vector<16x1xf32> to vector<16x64xf32>
    %195 = arith.mulf %190, %194 : vector<16x64xf32>
    %196 = vector.broadcast %176 : vector<1x64xf32> to vector<16x64xf32>
    %197 = arith.mulf %195, %196 : vector<16x64xf32>
    %198 = vector.broadcast %177 : vector<1x64xf32> to vector<16x64xf32>
    %199 = arith.addf %197, %198 : vector<16x64xf32>
    %c1_73 = arith.constant 1 : index
    %c0_74 = arith.constant 0 : index
    %c0_75 = arith.constant 0 : index
    %c0_76 = arith.constant 0 : index
    %200 = vector.load %arg3[%c1_73, %c0_74, %c0_75, %c0_76] : memref<4x2x64x32xbf16, #tpu.memory_space<vmem>>, vector<1x2x64x32xbf16>
    %201 = vector.shape_cast %200 : vector<1x2x64x32xbf16> to vector<2x64x32xbf16>
    %c1_77 = arith.constant 1 : index
    %c0_78 = arith.constant 0 : index
    %c0_79 = arith.constant 0 : index
    %c0_80 = arith.constant 0 : index
    %202 = vector.load %arg4[%c1_77, %c0_78, %c0_79, %c0_80] : memref<4x2x64x32xbf16, #tpu.memory_space<vmem>>, vector<1x2x64x32xbf16>
    %203 = vector.shape_cast %202 : vector<1x2x64x32xbf16> to vector<2x64x32xbf16>
    %c1_81 = arith.constant 1 : index
    %c0_82 = arith.constant 0 : index
    %c0_83 = arith.constant 0 : index
    %c0_84 = arith.constant 0 : index
    %204 = vector.load %arg5[%c1_81, %c0_82, %c0_83, %c0_84] : memref<4x2x64x32xbf16, #tpu.memory_space<vmem>>, vector<1x2x64x32xbf16>
    %205 = vector.shape_cast %204 : vector<1x2x64x32xbf16> to vector<2x64x32xbf16>
    %c1_85 = arith.constant 1 : index
    %c0_86 = arith.constant 0 : index
    %c0_87 = arith.constant 0 : index
    %c0_88 = arith.constant 0 : index
    %206 = vector.load %arg6[%c1_85, %c0_86, %c0_87, %c0_88] : memref<4x2x32x64xbf16, #tpu.memory_space<vmem>>, vector<1x2x32x64xbf16>
    %207 = vector.shape_cast %206 : vector<1x2x32x64xbf16> to vector<2x32x64xbf16>
    %c1_89 = arith.constant 1 : index
    %c0_90 = arith.constant 0 : index
    %c0_91 = arith.constant 0 : index
    %208 = vector.load %arg7[%c1_89, %c0_90, %c0_91] : memref<4x64x256xbf16, #tpu.memory_space<vmem>>, vector<1x64x256xbf16>
    %209 = vector.shape_cast %208 : vector<1x64x256xbf16> to vector<64x256xbf16>
    %c1_92 = arith.constant 1 : index
    %c0_93 = arith.constant 0 : index
    %c0_94 = arith.constant 0 : index
    %210 = vector.load %arg8[%c1_92, %c0_93, %c0_94] : memref<4x1x256xf32, #tpu.memory_space<vmem>>, vector<1x1x256xf32>
    %211 = vector.shape_cast %210 : vector<1x1x256xf32> to vector<1x256xf32>
    %c1_95 = arith.constant 1 : index
    %c0_96 = arith.constant 0 : index
    %c0_97 = arith.constant 0 : index
    %212 = vector.load %arg9[%c1_95, %c0_96, %c0_97] : memref<4x256x64xbf16, #tpu.memory_space<vmem>>, vector<1x256x64xbf16>
    %213 = vector.shape_cast %212 : vector<1x256x64xbf16> to vector<256x64xbf16>
    %c1_98 = arith.constant 1 : index
    %c0_99 = arith.constant 0 : index
    %c0_100 = arith.constant 0 : index
    %214 = vector.load %arg10[%c1_98, %c0_99, %c0_100] : memref<4x9x64xf32, #tpu.memory_space<vmem>>, vector<1x9x64xf32>
    %215 = vector.shape_cast %214 : vector<1x9x64xf32> to vector<9x64xf32>
    %cst_101 = arith.constant 0.000000e+00 : f32
    %216 = vector.broadcast %cst_101 : f32 to vector<16x64xf32>
    %217 = vector.extract_strided_slice %201 {offsets = [0, 0, 0], sizes = [1, 64, 32], strides = [1, 1, 1]} : vector<2x64x32xbf16> to vector<1x64x32xbf16>
    %218 = vector.shape_cast %217 : vector<1x64x32xbf16> to vector<64x32xbf16>
    %219 = arith.truncf %199 : vector<16x64xf32> to vector<16x64xbf16>
    %cst_102 = arith.constant dense<0.000000e+00> : vector<16x32xf32>
    %220 = tpu.matmul %219, %218, %cst_102 {dimension_numbers = #tpu.dot_dimension_numbers<[1], [0], [0], [1], [0, 0, 1, 1], [], []>} : vector<16x64xbf16>, vector<64x32xbf16>, vector<16x32xf32> -> vector<16x32xf32>
    %221 = vector.extract_strided_slice %215 {offsets = [0, 0], sizes = [1, 32], strides = [1, 1]} : vector<9x64xf32> to vector<1x32xf32>
    %222 = vector.broadcast %221 : vector<1x32xf32> to vector<16x32xf32>
    %223 = arith.addf %220, %222 : vector<16x32xf32>
    %224 = vector.extract_strided_slice %203 {offsets = [0, 0, 0], sizes = [1, 64, 32], strides = [1, 1, 1]} : vector<2x64x32xbf16> to vector<1x64x32xbf16>
    %225 = vector.shape_cast %224 : vector<1x64x32xbf16> to vector<64x32xbf16>
    %226 = arith.truncf %199 : vector<16x64xf32> to vector<16x64xbf16>
    %cst_103 = arith.constant dense<0.000000e+00> : vector<16x32xf32>
    %227 = tpu.matmul %226, %225, %cst_103 {dimension_numbers = #tpu.dot_dimension_numbers<[1], [0], [0], [1], [0, 0, 1, 1], [], []>} : vector<16x64xbf16>, vector<64x32xbf16>, vector<16x32xf32> -> vector<16x32xf32>
    %228 = vector.extract_strided_slice %215 {offsets = [1, 0], sizes = [1, 32], strides = [1, 1]} : vector<9x64xf32> to vector<1x32xf32>
    %229 = vector.broadcast %228 : vector<1x32xf32> to vector<16x32xf32>
    %230 = arith.addf %227, %229 : vector<16x32xf32>
    %231 = vector.extract_strided_slice %205 {offsets = [0, 0, 0], sizes = [1, 64, 32], strides = [1, 1, 1]} : vector<2x64x32xbf16> to vector<1x64x32xbf16>
    %232 = vector.shape_cast %231 : vector<1x64x32xbf16> to vector<64x32xbf16>
    %233 = arith.truncf %199 : vector<16x64xf32> to vector<16x64xbf16>
    %cst_104 = arith.constant dense<0.000000e+00> : vector<16x32xf32>
    %234 = tpu.matmul %233, %232, %cst_104 {dimension_numbers = #tpu.dot_dimension_numbers<[1], [0], [0], [1], [0, 0, 1, 1], [], []>} : vector<16x64xbf16>, vector<64x32xbf16>, vector<16x32xf32> -> vector<16x32xf32>
    %235 = vector.extract_strided_slice %215 {offsets = [2, 0], sizes = [1, 32], strides = [1, 1]} : vector<9x64xf32> to vector<1x32xf32>
    %236 = vector.broadcast %235 : vector<1x32xf32> to vector<16x32xf32>
    %237 = arith.addf %234, %236 : vector<16x32xf32>
    %238 = arith.truncf %223 : vector<16x32xf32> to vector<16x32xbf16>
    %239 = arith.truncf %230 : vector<16x32xf32> to vector<16x32xbf16>
    %cst_105 = arith.constant dense<0.000000e+00> : vector<16x16xf32>
    %240 = tpu.matmul %238, %239, %cst_105 {dimension_numbers = #tpu.dot_dimension_numbers<[1], [1], [0], [0], [0, 0, 1, 0], [], []>} : vector<16x32xbf16>, vector<16x32xbf16>, vector<16x16xf32> -> vector<16x16xf32>
    %241 = arith.addf %240, %32 : vector<16x16xf32>
    %cst_106 = arith.constant dense<0xFF800000> : vector<16xf32>
    %242 = vector.multi_reduction <maximumf>, %241, %cst_106 [1] : vector<16x16xf32> to vector<16xf32>
    %243 = vector.shape_cast %242 : vector<16xf32> to vector<16x1xf32>
    %244 = vector.broadcast %243 : vector<16x1xf32> to vector<16x16xf32>
    %245 = arith.subf %241, %244 : vector<16x16xf32>
    %246 = math.exp %245 : vector<16x16xf32>
    %cst_107 = arith.constant dense<0.000000e+00> : vector<16xf32>
    %247 = vector.multi_reduction <add>, %246, %cst_107 [1] : vector<16x16xf32> to vector<16xf32>
    %248 = vector.shape_cast %247 : vector<16xf32> to vector<16x1xf32>
    %249 = tpu.reciprocal %248 {approx = true} : vector<16x1xf32> -> vector<16x1xf32>
    %250 = vector.broadcast %249 : vector<16x1xf32> to vector<16x16xf32>
    %251 = arith.mulf %246, %250 : vector<16x16xf32>
    %252 = arith.truncf %251 : vector<16x16xf32> to vector<16x16xbf16>
    %253 = arith.truncf %237 : vector<16x32xf32> to vector<16x32xbf16>
    %cst_108 = arith.constant dense<0.000000e+00> : vector<16x32xf32>
    %254 = tpu.matmul %252, %253, %cst_108 {dimension_numbers = #tpu.dot_dimension_numbers<[1], [0], [0], [1], [0, 0, 1, 1], [], []>} : vector<16x16xbf16>, vector<16x32xbf16>, vector<16x32xf32> -> vector<16x32xf32>
    %255 = vector.extract_strided_slice %207 {offsets = [0, 0, 0], sizes = [1, 32, 64], strides = [1, 1, 1]} : vector<2x32x64xbf16> to vector<1x32x64xbf16>
    %256 = vector.shape_cast %255 : vector<1x32x64xbf16> to vector<32x64xbf16>
    %257 = arith.truncf %254 : vector<16x32xf32> to vector<16x32xbf16>
    %cst_109 = arith.constant dense<0.000000e+00> : vector<16x64xf32>
    %258 = tpu.matmul %257, %256, %cst_109 {dimension_numbers = #tpu.dot_dimension_numbers<[1], [0], [0], [1], [0, 0, 1, 1], [], []>} : vector<16x32xbf16>, vector<32x64xbf16>, vector<16x64xf32> -> vector<16x64xf32>
    %259 = arith.addf %216, %258 : vector<16x64xf32>
    %260 = vector.extract_strided_slice %201 {offsets = [1, 0, 0], sizes = [1, 64, 32], strides = [1, 1, 1]} : vector<2x64x32xbf16> to vector<1x64x32xbf16>
    %261 = vector.shape_cast %260 : vector<1x64x32xbf16> to vector<64x32xbf16>
    %262 = arith.truncf %199 : vector<16x64xf32> to vector<16x64xbf16>
    %cst_110 = arith.constant dense<0.000000e+00> : vector<16x32xf32>
    %263 = tpu.matmul %262, %261, %cst_110 {dimension_numbers = #tpu.dot_dimension_numbers<[1], [0], [0], [1], [0, 0, 1, 1], [], []>} : vector<16x64xbf16>, vector<64x32xbf16>, vector<16x32xf32> -> vector<16x32xf32>
    %264 = vector.extract_strided_slice %215 {offsets = [0, 32], sizes = [1, 32], strides = [1, 1]} : vector<9x64xf32> to vector<1x32xf32>
    %265 = vector.broadcast %264 : vector<1x32xf32> to vector<16x32xf32>
    %266 = arith.addf %263, %265 : vector<16x32xf32>
    %267 = vector.extract_strided_slice %203 {offsets = [1, 0, 0], sizes = [1, 64, 32], strides = [1, 1, 1]} : vector<2x64x32xbf16> to vector<1x64x32xbf16>
    %268 = vector.shape_cast %267 : vector<1x64x32xbf16> to vector<64x32xbf16>
    %269 = arith.truncf %199 : vector<16x64xf32> to vector<16x64xbf16>
    %cst_111 = arith.constant dense<0.000000e+00> : vector<16x32xf32>
    %270 = tpu.matmul %269, %268, %cst_111 {dimension_numbers = #tpu.dot_dimension_numbers<[1], [0], [0], [1], [0, 0, 1, 1], [], []>} : vector<16x64xbf16>, vector<64x32xbf16>, vector<16x32xf32> -> vector<16x32xf32>
    %271 = vector.extract_strided_slice %215 {offsets = [1, 32], sizes = [1, 32], strides = [1, 1]} : vector<9x64xf32> to vector<1x32xf32>
    %272 = vector.broadcast %271 : vector<1x32xf32> to vector<16x32xf32>
    %273 = arith.addf %270, %272 : vector<16x32xf32>
    %274 = vector.extract_strided_slice %205 {offsets = [1, 0, 0], sizes = [1, 64, 32], strides = [1, 1, 1]} : vector<2x64x32xbf16> to vector<1x64x32xbf16>
    %275 = vector.shape_cast %274 : vector<1x64x32xbf16> to vector<64x32xbf16>
    %276 = arith.truncf %199 : vector<16x64xf32> to vector<16x64xbf16>
    %cst_112 = arith.constant dense<0.000000e+00> : vector<16x32xf32>
    %277 = tpu.matmul %276, %275, %cst_112 {dimension_numbers = #tpu.dot_dimension_numbers<[1], [0], [0], [1], [0, 0, 1, 1], [], []>} : vector<16x64xbf16>, vector<64x32xbf16>, vector<16x32xf32> -> vector<16x32xf32>
    %278 = vector.extract_strided_slice %215 {offsets = [2, 32], sizes = [1, 32], strides = [1, 1]} : vector<9x64xf32> to vector<1x32xf32>
    %279 = vector.broadcast %278 : vector<1x32xf32> to vector<16x32xf32>
    %280 = arith.addf %277, %279 : vector<16x32xf32>
    %281 = arith.truncf %266 : vector<16x32xf32> to vector<16x32xbf16>
    %282 = arith.truncf %273 : vector<16x32xf32> to vector<16x32xbf16>
    %cst_113 = arith.constant dense<0.000000e+00> : vector<16x16xf32>
    %283 = tpu.matmul %281, %282, %cst_113 {dimension_numbers = #tpu.dot_dimension_numbers<[1], [1], [0], [0], [0, 0, 1, 0], [], []>} : vector<16x32xbf16>, vector<16x32xbf16>, vector<16x16xf32> -> vector<16x16xf32>
    %284 = arith.addf %283, %32 : vector<16x16xf32>
    %cst_114 = arith.constant dense<0xFF800000> : vector<16xf32>
    %285 = vector.multi_reduction <maximumf>, %284, %cst_114 [1] : vector<16x16xf32> to vector<16xf32>
    %286 = vector.shape_cast %285 : vector<16xf32> to vector<16x1xf32>
    %287 = vector.broadcast %286 : vector<16x1xf32> to vector<16x16xf32>
    %288 = arith.subf %284, %287 : vector<16x16xf32>
    %289 = math.exp %288 : vector<16x16xf32>
    %cst_115 = arith.constant dense<0.000000e+00> : vector<16xf32>
    %290 = vector.multi_reduction <add>, %289, %cst_115 [1] : vector<16x16xf32> to vector<16xf32>
    %291 = vector.shape_cast %290 : vector<16xf32> to vector<16x1xf32>
    %292 = tpu.reciprocal %291 {approx = true} : vector<16x1xf32> -> vector<16x1xf32>
    %293 = vector.broadcast %292 : vector<16x1xf32> to vector<16x16xf32>
    %294 = arith.mulf %289, %293 : vector<16x16xf32>
    %295 = arith.truncf %294 : vector<16x16xf32> to vector<16x16xbf16>
    %296 = arith.truncf %280 : vector<16x32xf32> to vector<16x32xbf16>
    %cst_116 = arith.constant dense<0.000000e+00> : vector<16x32xf32>
    %297 = tpu.matmul %295, %296, %cst_116 {dimension_numbers = #tpu.dot_dimension_numbers<[1], [0], [0], [1], [0, 0, 1, 1], [], []>} : vector<16x16xbf16>, vector<16x32xbf16>, vector<16x32xf32> -> vector<16x32xf32>
    %298 = vector.extract_strided_slice %207 {offsets = [1, 0, 0], sizes = [1, 32, 64], strides = [1, 1, 1]} : vector<2x32x64xbf16> to vector<1x32x64xbf16>
    %299 = vector.shape_cast %298 : vector<1x32x64xbf16> to vector<32x64xbf16>
    %300 = arith.truncf %297 : vector<16x32xf32> to vector<16x32xbf16>
    %cst_117 = arith.constant dense<0.000000e+00> : vector<16x64xf32>
    %301 = tpu.matmul %300, %299, %cst_117 {dimension_numbers = #tpu.dot_dimension_numbers<[1], [0], [0], [1], [0, 0, 1, 1], [], []>} : vector<16x32xbf16>, vector<32x64xbf16>, vector<16x64xf32> -> vector<16x64xf32>
    %302 = arith.addf %259, %301 : vector<16x64xf32>
    %303 = vector.extract_strided_slice %215 {offsets = [3, 0], sizes = [1, 64], strides = [1, 1]} : vector<9x64xf32> to vector<1x64xf32>
    %304 = vector.broadcast %303 : vector<1x64xf32> to vector<16x64xf32>
    %305 = arith.addf %302, %304 : vector<16x64xf32>
    %306 = arith.addf %199, %305 : vector<16x64xf32>
    %307 = vector.extract_strided_slice %215 {offsets = [4, 0], sizes = [1, 64], strides = [1, 1]} : vector<9x64xf32> to vector<1x64xf32>
    %308 = vector.extract_strided_slice %215 {offsets = [5, 0], sizes = [1, 64], strides = [1, 1]} : vector<9x64xf32> to vector<1x64xf32>
    %cst_118 = arith.constant dense<0.000000e+00> : vector<16xf32>
    %309 = vector.multi_reduction <add>, %306, %cst_118 [1] : vector<16x64xf32> to vector<16xf32>
    %310 = vector.shape_cast %309 : vector<16xf32> to vector<16x1xf32>
    %cst_119 = arith.constant 6.400000e+01 : f32
    %311 = vector.broadcast %cst_119 : f32 to vector<16x1xf32>
    %312 = arith.divf %310, %311 : vector<16x1xf32>
    %313 = vector.broadcast %312 : vector<16x1xf32> to vector<16x64xf32>
    %314 = arith.subf %306, %313 : vector<16x64xf32>
    %315 = arith.mulf %314, %314 : vector<16x64xf32>
    %cst_120 = arith.constant dense<0.000000e+00> : vector<16xf32>
    %316 = vector.multi_reduction <add>, %315, %cst_120 [1] : vector<16x64xf32> to vector<16xf32>
    %317 = vector.shape_cast %316 : vector<16xf32> to vector<16x1xf32>
    %cst_121 = arith.constant 6.400000e+01 : f32
    %318 = vector.broadcast %cst_121 : f32 to vector<16x1xf32>
    %319 = arith.divf %317, %318 : vector<16x1xf32>
    %320 = vector.broadcast %312 : vector<16x1xf32> to vector<16x64xf32>
    %321 = arith.subf %306, %320 : vector<16x64xf32>
    %cst_122 = arith.constant 9.99999974E-6 : f32
    %322 = vector.broadcast %cst_122 : f32 to vector<16x1xf32>
    %323 = arith.addf %319, %322 : vector<16x1xf32>
    %324 = math.rsqrt %323 : vector<16x1xf32>
    %325 = vector.broadcast %324 : vector<16x1xf32> to vector<16x64xf32>
    %326 = arith.mulf %321, %325 : vector<16x64xf32>
    %327 = vector.broadcast %307 : vector<1x64xf32> to vector<16x64xf32>
    %328 = arith.mulf %326, %327 : vector<16x64xf32>
    %329 = vector.broadcast %308 : vector<1x64xf32> to vector<16x64xf32>
    %330 = arith.addf %328, %329 : vector<16x64xf32>
    %331 = arith.truncf %330 : vector<16x64xf32> to vector<16x64xbf16>
    %cst_123 = arith.constant dense<0.000000e+00> : vector<16x256xf32>
    %332 = tpu.matmul %331, %209, %cst_123 {dimension_numbers = #tpu.dot_dimension_numbers<[1], [0], [0], [1], [0, 0, 1, 1], [], []>} : vector<16x64xbf16>, vector<64x256xbf16>, vector<16x256xf32> -> vector<16x256xf32>
    %333 = vector.broadcast %211 : vector<1x256xf32> to vector<16x256xf32>
    %334 = arith.addf %332, %333 : vector<16x256xf32>
    %cst_124 = arith.constant 0.000000e+00 : f32
    %335 = vector.broadcast %cst_124 : f32 to vector<16x256xf32>
    %336 = arith.maximumf %334, %335 : vector<16x256xf32>
    %337 = arith.truncf %336 : vector<16x256xf32> to vector<16x256xbf16>
    %cst_125 = arith.constant dense<0.000000e+00> : vector<16x64xf32>
    %338 = tpu.matmul %337, %213, %cst_125 {dimension_numbers = #tpu.dot_dimension_numbers<[1], [0], [0], [1], [0, 0, 1, 1], [], []>} : vector<16x256xbf16>, vector<256x64xbf16>, vector<16x64xf32> -> vector<16x64xf32>
    %339 = vector.extract_strided_slice %215 {offsets = [8, 0], sizes = [1, 64], strides = [1, 1]} : vector<9x64xf32> to vector<1x64xf32>
    %340 = vector.broadcast %339 : vector<1x64xf32> to vector<16x64xf32>
    %341 = arith.addf %338, %340 : vector<16x64xf32>
    %342 = arith.addf %330, %341 : vector<16x64xf32>
    %343 = vector.extract_strided_slice %215 {offsets = [6, 0], sizes = [1, 64], strides = [1, 1]} : vector<9x64xf32> to vector<1x64xf32>
    %344 = vector.extract_strided_slice %215 {offsets = [7, 0], sizes = [1, 64], strides = [1, 1]} : vector<9x64xf32> to vector<1x64xf32>
    %cst_126 = arith.constant dense<0.000000e+00> : vector<16xf32>
    %345 = vector.multi_reduction <add>, %342, %cst_126 [1] : vector<16x64xf32> to vector<16xf32>
    %346 = vector.shape_cast %345 : vector<16xf32> to vector<16x1xf32>
    %cst_127 = arith.constant 6.400000e+01 : f32
    %347 = vector.broadcast %cst_127 : f32 to vector<16x1xf32>
    %348 = arith.divf %346, %347 : vector<16x1xf32>
    %349 = vector.broadcast %348 : vector<16x1xf32> to vector<16x64xf32>
    %350 = arith.subf %342, %349 : vector<16x64xf32>
    %351 = arith.mulf %350, %350 : vector<16x64xf32>
    %cst_128 = arith.constant dense<0.000000e+00> : vector<16xf32>
    %352 = vector.multi_reduction <add>, %351, %cst_128 [1] : vector<16x64xf32> to vector<16xf32>
    %353 = vector.shape_cast %352 : vector<16xf32> to vector<16x1xf32>
    %cst_129 = arith.constant 6.400000e+01 : f32
    %354 = vector.broadcast %cst_129 : f32 to vector<16x1xf32>
    %355 = arith.divf %353, %354 : vector<16x1xf32>
    %356 = vector.broadcast %348 : vector<16x1xf32> to vector<16x64xf32>
    %357 = arith.subf %342, %356 : vector<16x64xf32>
    %cst_130 = arith.constant 9.99999974E-6 : f32
    %358 = vector.broadcast %cst_130 : f32 to vector<16x1xf32>
    %359 = arith.addf %355, %358 : vector<16x1xf32>
    %360 = math.rsqrt %359 : vector<16x1xf32>
    %361 = vector.broadcast %360 : vector<16x1xf32> to vector<16x64xf32>
    %362 = arith.mulf %357, %361 : vector<16x64xf32>
    %363 = vector.broadcast %343 : vector<1x64xf32> to vector<16x64xf32>
    %364 = arith.mulf %362, %363 : vector<16x64xf32>
    %365 = vector.broadcast %344 : vector<1x64xf32> to vector<16x64xf32>
    %366 = arith.addf %364, %365 : vector<16x64xf32>
    %c2_131 = arith.constant 2 : index
    %c0_132 = arith.constant 0 : index
    %c0_133 = arith.constant 0 : index
    %c0_134 = arith.constant 0 : index
    %367 = vector.load %arg3[%c2_131, %c0_132, %c0_133, %c0_134] : memref<4x2x64x32xbf16, #tpu.memory_space<vmem>>, vector<1x2x64x32xbf16>
    %368 = vector.shape_cast %367 : vector<1x2x64x32xbf16> to vector<2x64x32xbf16>
    %c2_135 = arith.constant 2 : index
    %c0_136 = arith.constant 0 : index
    %c0_137 = arith.constant 0 : index
    %c0_138 = arith.constant 0 : index
    %369 = vector.load %arg4[%c2_135, %c0_136, %c0_137, %c0_138] : memref<4x2x64x32xbf16, #tpu.memory_space<vmem>>, vector<1x2x64x32xbf16>
    %370 = vector.shape_cast %369 : vector<1x2x64x32xbf16> to vector<2x64x32xbf16>
    %c2_139 = arith.constant 2 : index
    %c0_140 = arith.constant 0 : index
    %c0_141 = arith.constant 0 : index
    %c0_142 = arith.constant 0 : index
    %371 = vector.load %arg5[%c2_139, %c0_140, %c0_141, %c0_142] : memref<4x2x64x32xbf16, #tpu.memory_space<vmem>>, vector<1x2x64x32xbf16>
    %372 = vector.shape_cast %371 : vector<1x2x64x32xbf16> to vector<2x64x32xbf16>
    %c2_143 = arith.constant 2 : index
    %c0_144 = arith.constant 0 : index
    %c0_145 = arith.constant 0 : index
    %c0_146 = arith.constant 0 : index
    %373 = vector.load %arg6[%c2_143, %c0_144, %c0_145, %c0_146] : memref<4x2x32x64xbf16, #tpu.memory_space<vmem>>, vector<1x2x32x64xbf16>
    %374 = vector.shape_cast %373 : vector<1x2x32x64xbf16> to vector<2x32x64xbf16>
    %c2_147 = arith.constant 2 : index
    %c0_148 = arith.constant 0 : index
    %c0_149 = arith.constant 0 : index
    %375 = vector.load %arg7[%c2_147, %c0_148, %c0_149] : memref<4x64x256xbf16, #tpu.memory_space<vmem>>, vector<1x64x256xbf16>
    %376 = vector.shape_cast %375 : vector<1x64x256xbf16> to vector<64x256xbf16>
    %c2_150 = arith.constant 2 : index
    %c0_151 = arith.constant 0 : index
    %c0_152 = arith.constant 0 : index
    %377 = vector.load %arg8[%c2_150, %c0_151, %c0_152] : memref<4x1x256xf32, #tpu.memory_space<vmem>>, vector<1x1x256xf32>
    %378 = vector.shape_cast %377 : vector<1x1x256xf32> to vector<1x256xf32>
    %c2_153 = arith.constant 2 : index
    %c0_154 = arith.constant 0 : index
    %c0_155 = arith.constant 0 : index
    %379 = vector.load %arg9[%c2_153, %c0_154, %c0_155] : memref<4x256x64xbf16, #tpu.memory_space<vmem>>, vector<1x256x64xbf16>
    %380 = vector.shape_cast %379 : vector<1x256x64xbf16> to vector<256x64xbf16>
    %c2_156 = arith.constant 2 : index
    %c0_157 = arith.constant 0 : index
    %c0_158 = arith.constant 0 : index
    %381 = vector.load %arg10[%c2_156, %c0_157, %c0_158] : memref<4x9x64xf32, #tpu.memory_space<vmem>>, vector<1x9x64xf32>
    %382 = vector.shape_cast %381 : vector<1x9x64xf32> to vector<9x64xf32>
    %cst_159 = arith.constant 0.000000e+00 : f32
    %383 = vector.broadcast %cst_159 : f32 to vector<16x64xf32>
    %384 = vector.extract_strided_slice %368 {offsets = [0, 0, 0], sizes = [1, 64, 32], strides = [1, 1, 1]} : vector<2x64x32xbf16> to vector<1x64x32xbf16>
    %385 = vector.shape_cast %384 : vector<1x64x32xbf16> to vector<64x32xbf16>
    %386 = arith.truncf %366 : vector<16x64xf32> to vector<16x64xbf16>
    %cst_160 = arith.constant dense<0.000000e+00> : vector<16x32xf32>
    %387 = tpu.matmul %386, %385, %cst_160 {dimension_numbers = #tpu.dot_dimension_numbers<[1], [0], [0], [1], [0, 0, 1, 1], [], []>} : vector<16x64xbf16>, vector<64x32xbf16>, vector<16x32xf32> -> vector<16x32xf32>
    %388 = vector.extract_strided_slice %382 {offsets = [0, 0], sizes = [1, 32], strides = [1, 1]} : vector<9x64xf32> to vector<1x32xf32>
    %389 = vector.broadcast %388 : vector<1x32xf32> to vector<16x32xf32>
    %390 = arith.addf %387, %389 : vector<16x32xf32>
    %391 = vector.extract_strided_slice %370 {offsets = [0, 0, 0], sizes = [1, 64, 32], strides = [1, 1, 1]} : vector<2x64x32xbf16> to vector<1x64x32xbf16>
    %392 = vector.shape_cast %391 : vector<1x64x32xbf16> to vector<64x32xbf16>
    %393 = arith.truncf %366 : vector<16x64xf32> to vector<16x64xbf16>
    %cst_161 = arith.constant dense<0.000000e+00> : vector<16x32xf32>
    %394 = tpu.matmul %393, %392, %cst_161 {dimension_numbers = #tpu.dot_dimension_numbers<[1], [0], [0], [1], [0, 0, 1, 1], [], []>} : vector<16x64xbf16>, vector<64x32xbf16>, vector<16x32xf32> -> vector<16x32xf32>
    %395 = vector.extract_strided_slice %382 {offsets = [1, 0], sizes = [1, 32], strides = [1, 1]} : vector<9x64xf32> to vector<1x32xf32>
    %396 = vector.broadcast %395 : vector<1x32xf32> to vector<16x32xf32>
    %397 = arith.addf %394, %396 : vector<16x32xf32>
    %398 = vector.extract_strided_slice %372 {offsets = [0, 0, 0], sizes = [1, 64, 32], strides = [1, 1, 1]} : vector<2x64x32xbf16> to vector<1x64x32xbf16>
    %399 = vector.shape_cast %398 : vector<1x64x32xbf16> to vector<64x32xbf16>
    %400 = arith.truncf %366 : vector<16x64xf32> to vector<16x64xbf16>
    %cst_162 = arith.constant dense<0.000000e+00> : vector<16x32xf32>
    %401 = tpu.matmul %400, %399, %cst_162 {dimension_numbers = #tpu.dot_dimension_numbers<[1], [0], [0], [1], [0, 0, 1, 1], [], []>} : vector<16x64xbf16>, vector<64x32xbf16>, vector<16x32xf32> -> vector<16x32xf32>
    %402 = vector.extract_strided_slice %382 {offsets = [2, 0], sizes = [1, 32], strides = [1, 1]} : vector<9x64xf32> to vector<1x32xf32>
    %403 = vector.broadcast %402 : vector<1x32xf32> to vector<16x32xf32>
    %404 = arith.addf %401, %403 : vector<16x32xf32>
    %405 = arith.truncf %390 : vector<16x32xf32> to vector<16x32xbf16>
    %406 = arith.truncf %397 : vector<16x32xf32> to vector<16x32xbf16>
    %cst_163 = arith.constant dense<0.000000e+00> : vector<16x16xf32>
    %407 = tpu.matmul %405, %406, %cst_163 {dimension_numbers = #tpu.dot_dimension_numbers<[1], [1], [0], [0], [0, 0, 1, 0], [], []>} : vector<16x32xbf16>, vector<16x32xbf16>, vector<16x16xf32> -> vector<16x16xf32>
    %408 = arith.addf %407, %32 : vector<16x16xf32>
    %cst_164 = arith.constant dense<0xFF800000> : vector<16xf32>
    %409 = vector.multi_reduction <maximumf>, %408, %cst_164 [1] : vector<16x16xf32> to vector<16xf32>
    %410 = vector.shape_cast %409 : vector<16xf32> to vector<16x1xf32>
    %411 = vector.broadcast %410 : vector<16x1xf32> to vector<16x16xf32>
    %412 = arith.subf %408, %411 : vector<16x16xf32>
    %413 = math.exp %412 : vector<16x16xf32>
    %cst_165 = arith.constant dense<0.000000e+00> : vector<16xf32>
    %414 = vector.multi_reduction <add>, %413, %cst_165 [1] : vector<16x16xf32> to vector<16xf32>
    %415 = vector.shape_cast %414 : vector<16xf32> to vector<16x1xf32>
    %416 = tpu.reciprocal %415 {approx = true} : vector<16x1xf32> -> vector<16x1xf32>
    %417 = vector.broadcast %416 : vector<16x1xf32> to vector<16x16xf32>
    %418 = arith.mulf %413, %417 : vector<16x16xf32>
    %419 = arith.truncf %418 : vector<16x16xf32> to vector<16x16xbf16>
    %420 = arith.truncf %404 : vector<16x32xf32> to vector<16x32xbf16>
    %cst_166 = arith.constant dense<0.000000e+00> : vector<16x32xf32>
    %421 = tpu.matmul %419, %420, %cst_166 {dimension_numbers = #tpu.dot_dimension_numbers<[1], [0], [0], [1], [0, 0, 1, 1], [], []>} : vector<16x16xbf16>, vector<16x32xbf16>, vector<16x32xf32> -> vector<16x32xf32>
    %422 = vector.extract_strided_slice %374 {offsets = [0, 0, 0], sizes = [1, 32, 64], strides = [1, 1, 1]} : vector<2x32x64xbf16> to vector<1x32x64xbf16>
    %423 = vector.shape_cast %422 : vector<1x32x64xbf16> to vector<32x64xbf16>
    %424 = arith.truncf %421 : vector<16x32xf32> to vector<16x32xbf16>
    %cst_167 = arith.constant dense<0.000000e+00> : vector<16x64xf32>
    %425 = tpu.matmul %424, %423, %cst_167 {dimension_numbers = #tpu.dot_dimension_numbers<[1], [0], [0], [1], [0, 0, 1, 1], [], []>} : vector<16x32xbf16>, vector<32x64xbf16>, vector<16x64xf32> -> vector<16x64xf32>
    %426 = arith.addf %383, %425 : vector<16x64xf32>
    %427 = vector.extract_strided_slice %368 {offsets = [1, 0, 0], sizes = [1, 64, 32], strides = [1, 1, 1]} : vector<2x64x32xbf16> to vector<1x64x32xbf16>
    %428 = vector.shape_cast %427 : vector<1x64x32xbf16> to vector<64x32xbf16>
    %429 = arith.truncf %366 : vector<16x64xf32> to vector<16x64xbf16>
    %cst_168 = arith.constant dense<0.000000e+00> : vector<16x32xf32>
    %430 = tpu.matmul %429, %428, %cst_168 {dimension_numbers = #tpu.dot_dimension_numbers<[1], [0], [0], [1], [0, 0, 1, 1], [], []>} : vector<16x64xbf16>, vector<64x32xbf16>, vector<16x32xf32> -> vector<16x32xf32>
    %431 = vector.extract_strided_slice %382 {offsets = [0, 32], sizes = [1, 32], strides = [1, 1]} : vector<9x64xf32> to vector<1x32xf32>
    %432 = vector.broadcast %431 : vector<1x32xf32> to vector<16x32xf32>
    %433 = arith.addf %430, %432 : vector<16x32xf32>
    %434 = vector.extract_strided_slice %370 {offsets = [1, 0, 0], sizes = [1, 64, 32], strides = [1, 1, 1]} : vector<2x64x32xbf16> to vector<1x64x32xbf16>
    %435 = vector.shape_cast %434 : vector<1x64x32xbf16> to vector<64x32xbf16>
    %436 = arith.truncf %366 : vector<16x64xf32> to vector<16x64xbf16>
    %cst_169 = arith.constant dense<0.000000e+00> : vector<16x32xf32>
    %437 = tpu.matmul %436, %435, %cst_169 {dimension_numbers = #tpu.dot_dimension_numbers<[1], [0], [0], [1], [0, 0, 1, 1], [], []>} : vector<16x64xbf16>, vector<64x32xbf16>, vector<16x32xf32> -> vector<16x32xf32>
    %438 = vector.extract_strided_slice %382 {offsets = [1, 32], sizes = [1, 32], strides = [1, 1]} : vector<9x64xf32> to vector<1x32xf32>
    %439 = vector.broadcast %438 : vector<1x32xf32> to vector<16x32xf32>
    %440 = arith.addf %437, %439 : vector<16x32xf32>
    %441 = vector.extract_strided_slice %372 {offsets = [1, 0, 0], sizes = [1, 64, 32], strides = [1, 1, 1]} : vector<2x64x32xbf16> to vector<1x64x32xbf16>
    %442 = vector.shape_cast %441 : vector<1x64x32xbf16> to vector<64x32xbf16>
    %443 = arith.truncf %366 : vector<16x64xf32> to vector<16x64xbf16>
    %cst_170 = arith.constant dense<0.000000e+00> : vector<16x32xf32>
    %444 = tpu.matmul %443, %442, %cst_170 {dimension_numbers = #tpu.dot_dimension_numbers<[1], [0], [0], [1], [0, 0, 1, 1], [], []>} : vector<16x64xbf16>, vector<64x32xbf16>, vector<16x32xf32> -> vector<16x32xf32>
    %445 = vector.extract_strided_slice %382 {offsets = [2, 32], sizes = [1, 32], strides = [1, 1]} : vector<9x64xf32> to vector<1x32xf32>
    %446 = vector.broadcast %445 : vector<1x32xf32> to vector<16x32xf32>
    %447 = arith.addf %444, %446 : vector<16x32xf32>
    %448 = arith.truncf %433 : vector<16x32xf32> to vector<16x32xbf16>
    %449 = arith.truncf %440 : vector<16x32xf32> to vector<16x32xbf16>
    %cst_171 = arith.constant dense<0.000000e+00> : vector<16x16xf32>
    %450 = tpu.matmul %448, %449, %cst_171 {dimension_numbers = #tpu.dot_dimension_numbers<[1], [1], [0], [0], [0, 0, 1, 0], [], []>} : vector<16x32xbf16>, vector<16x32xbf16>, vector<16x16xf32> -> vector<16x16xf32>
    %451 = arith.addf %450, %32 : vector<16x16xf32>
    %cst_172 = arith.constant dense<0xFF800000> : vector<16xf32>
    %452 = vector.multi_reduction <maximumf>, %451, %cst_172 [1] : vector<16x16xf32> to vector<16xf32>
    %453 = vector.shape_cast %452 : vector<16xf32> to vector<16x1xf32>
    %454 = vector.broadcast %453 : vector<16x1xf32> to vector<16x16xf32>
    %455 = arith.subf %451, %454 : vector<16x16xf32>
    %456 = math.exp %455 : vector<16x16xf32>
    %cst_173 = arith.constant dense<0.000000e+00> : vector<16xf32>
    %457 = vector.multi_reduction <add>, %456, %cst_173 [1] : vector<16x16xf32> to vector<16xf32>
    %458 = vector.shape_cast %457 : vector<16xf32> to vector<16x1xf32>
    %459 = tpu.reciprocal %458 {approx = true} : vector<16x1xf32> -> vector<16x1xf32>
    %460 = vector.broadcast %459 : vector<16x1xf32> to vector<16x16xf32>
    %461 = arith.mulf %456, %460 : vector<16x16xf32>
    %462 = arith.truncf %461 : vector<16x16xf32> to vector<16x16xbf16>
    %463 = arith.truncf %447 : vector<16x32xf32> to vector<16x32xbf16>
    %cst_174 = arith.constant dense<0.000000e+00> : vector<16x32xf32>
    %464 = tpu.matmul %462, %463, %cst_174 {dimension_numbers = #tpu.dot_dimension_numbers<[1], [0], [0], [1], [0, 0, 1, 1], [], []>} : vector<16x16xbf16>, vector<16x32xbf16>, vector<16x32xf32> -> vector<16x32xf32>
    %465 = vector.extract_strided_slice %374 {offsets = [1, 0, 0], sizes = [1, 32, 64], strides = [1, 1, 1]} : vector<2x32x64xbf16> to vector<1x32x64xbf16>
    %466 = vector.shape_cast %465 : vector<1x32x64xbf16> to vector<32x64xbf16>
    %467 = arith.truncf %464 : vector<16x32xf32> to vector<16x32xbf16>
    %cst_175 = arith.constant dense<0.000000e+00> : vector<16x64xf32>
    %468 = tpu.matmul %467, %466, %cst_175 {dimension_numbers = #tpu.dot_dimension_numbers<[1], [0], [0], [1], [0, 0, 1, 1], [], []>} : vector<16x32xbf16>, vector<32x64xbf16>, vector<16x64xf32> -> vector<16x64xf32>
    %469 = arith.addf %426, %468 : vector<16x64xf32>
    %470 = vector.extract_strided_slice %382 {offsets = [3, 0], sizes = [1, 64], strides = [1, 1]} : vector<9x64xf32> to vector<1x64xf32>
    %471 = vector.broadcast %470 : vector<1x64xf32> to vector<16x64xf32>
    %472 = arith.addf %469, %471 : vector<16x64xf32>
    %473 = arith.addf %366, %472 : vector<16x64xf32>
    %474 = vector.extract_strided_slice %382 {offsets = [4, 0], sizes = [1, 64], strides = [1, 1]} : vector<9x64xf32> to vector<1x64xf32>
    %475 = vector.extract_strided_slice %382 {offsets = [5, 0], sizes = [1, 64], strides = [1, 1]} : vector<9x64xf32> to vector<1x64xf32>
    %cst_176 = arith.constant dense<0.000000e+00> : vector<16xf32>
    %476 = vector.multi_reduction <add>, %473, %cst_176 [1] : vector<16x64xf32> to vector<16xf32>
    %477 = vector.shape_cast %476 : vector<16xf32> to vector<16x1xf32>
    %cst_177 = arith.constant 6.400000e+01 : f32
    %478 = vector.broadcast %cst_177 : f32 to vector<16x1xf32>
    %479 = arith.divf %477, %478 : vector<16x1xf32>
    %480 = vector.broadcast %479 : vector<16x1xf32> to vector<16x64xf32>
    %481 = arith.subf %473, %480 : vector<16x64xf32>
    %482 = arith.mulf %481, %481 : vector<16x64xf32>
    %cst_178 = arith.constant dense<0.000000e+00> : vector<16xf32>
    %483 = vector.multi_reduction <add>, %482, %cst_178 [1] : vector<16x64xf32> to vector<16xf32>
    %484 = vector.shape_cast %483 : vector<16xf32> to vector<16x1xf32>
    %cst_179 = arith.constant 6.400000e+01 : f32
    %485 = vector.broadcast %cst_179 : f32 to vector<16x1xf32>
    %486 = arith.divf %484, %485 : vector<16x1xf32>
    %487 = vector.broadcast %479 : vector<16x1xf32> to vector<16x64xf32>
    %488 = arith.subf %473, %487 : vector<16x64xf32>
    %cst_180 = arith.constant 9.99999974E-6 : f32
    %489 = vector.broadcast %cst_180 : f32 to vector<16x1xf32>
    %490 = arith.addf %486, %489 : vector<16x1xf32>
    %491 = math.rsqrt %490 : vector<16x1xf32>
    %492 = vector.broadcast %491 : vector<16x1xf32> to vector<16x64xf32>
    %493 = arith.mulf %488, %492 : vector<16x64xf32>
    %494 = vector.broadcast %474 : vector<1x64xf32> to vector<16x64xf32>
    %495 = arith.mulf %493, %494 : vector<16x64xf32>
    %496 = vector.broadcast %475 : vector<1x64xf32> to vector<16x64xf32>
    %497 = arith.addf %495, %496 : vector<16x64xf32>
    %498 = arith.truncf %497 : vector<16x64xf32> to vector<16x64xbf16>
    %cst_181 = arith.constant dense<0.000000e+00> : vector<16x256xf32>
    %499 = tpu.matmul %498, %376, %cst_181 {dimension_numbers = #tpu.dot_dimension_numbers<[1], [0], [0], [1], [0, 0, 1, 1], [], []>} : vector<16x64xbf16>, vector<64x256xbf16>, vector<16x256xf32> -> vector<16x256xf32>
    %500 = vector.broadcast %378 : vector<1x256xf32> to vector<16x256xf32>
    %501 = arith.addf %499, %500 : vector<16x256xf32>
    %cst_182 = arith.constant 0.000000e+00 : f32
    %502 = vector.broadcast %cst_182 : f32 to vector<16x256xf32>
    %503 = arith.maximumf %501, %502 : vector<16x256xf32>
    %504 = arith.truncf %503 : vector<16x256xf32> to vector<16x256xbf16>
    %cst_183 = arith.constant dense<0.000000e+00> : vector<16x64xf32>
    %505 = tpu.matmul %504, %380, %cst_183 {dimension_numbers = #tpu.dot_dimension_numbers<[1], [0], [0], [1], [0, 0, 1, 1], [], []>} : vector<16x256xbf16>, vector<256x64xbf16>, vector<16x64xf32> -> vector<16x64xf32>
    %506 = vector.extract_strided_slice %382 {offsets = [8, 0], sizes = [1, 64], strides = [1, 1]} : vector<9x64xf32> to vector<1x64xf32>
    %507 = vector.broadcast %506 : vector<1x64xf32> to vector<16x64xf32>
    %508 = arith.addf %505, %507 : vector<16x64xf32>
    %509 = arith.addf %497, %508 : vector<16x64xf32>
    %510 = vector.extract_strided_slice %382 {offsets = [6, 0], sizes = [1, 64], strides = [1, 1]} : vector<9x64xf32> to vector<1x64xf32>
    %511 = vector.extract_strided_slice %382 {offsets = [7, 0], sizes = [1, 64], strides = [1, 1]} : vector<9x64xf32> to vector<1x64xf32>
    %cst_184 = arith.constant dense<0.000000e+00> : vector<16xf32>
    %512 = vector.multi_reduction <add>, %509, %cst_184 [1] : vector<16x64xf32> to vector<16xf32>
    %513 = vector.shape_cast %512 : vector<16xf32> to vector<16x1xf32>
    %cst_185 = arith.constant 6.400000e+01 : f32
    %514 = vector.broadcast %cst_185 : f32 to vector<16x1xf32>
    %515 = arith.divf %513, %514 : vector<16x1xf32>
    %516 = vector.broadcast %515 : vector<16x1xf32> to vector<16x64xf32>
    %517 = arith.subf %509, %516 : vector<16x64xf32>
    %518 = arith.mulf %517, %517 : vector<16x64xf32>
    %cst_186 = arith.constant dense<0.000000e+00> : vector<16xf32>
    %519 = vector.multi_reduction <add>, %518, %cst_186 [1] : vector<16x64xf32> to vector<16xf32>
    %520 = vector.shape_cast %519 : vector<16xf32> to vector<16x1xf32>
    %cst_187 = arith.constant 6.400000e+01 : f32
    %521 = vector.broadcast %cst_187 : f32 to vector<16x1xf32>
    %522 = arith.divf %520, %521 : vector<16x1xf32>
    %523 = vector.broadcast %515 : vector<16x1xf32> to vector<16x64xf32>
    %524 = arith.subf %509, %523 : vector<16x64xf32>
    %cst_188 = arith.constant 9.99999974E-6 : f32
    %525 = vector.broadcast %cst_188 : f32 to vector<16x1xf32>
    %526 = arith.addf %522, %525 : vector<16x1xf32>
    %527 = math.rsqrt %526 : vector<16x1xf32>
    %528 = vector.broadcast %527 : vector<16x1xf32> to vector<16x64xf32>
    %529 = arith.mulf %524, %528 : vector<16x64xf32>
    %530 = vector.broadcast %510 : vector<1x64xf32> to vector<16x64xf32>
    %531 = arith.mulf %529, %530 : vector<16x64xf32>
    %532 = vector.broadcast %511 : vector<1x64xf32> to vector<16x64xf32>
    %533 = arith.addf %531, %532 : vector<16x64xf32>
    %c3 = arith.constant 3 : index
    %c0_189 = arith.constant 0 : index
    %c0_190 = arith.constant 0 : index
    %c0_191 = arith.constant 0 : index
    %534 = vector.load %arg3[%c3, %c0_189, %c0_190, %c0_191] : memref<4x2x64x32xbf16, #tpu.memory_space<vmem>>, vector<1x2x64x32xbf16>
    %535 = vector.shape_cast %534 : vector<1x2x64x32xbf16> to vector<2x64x32xbf16>
    %c3_192 = arith.constant 3 : index
    %c0_193 = arith.constant 0 : index
    %c0_194 = arith.constant 0 : index
    %c0_195 = arith.constant 0 : index
    %536 = vector.load %arg4[%c3_192, %c0_193, %c0_194, %c0_195] : memref<4x2x64x32xbf16, #tpu.memory_space<vmem>>, vector<1x2x64x32xbf16>
    %537 = vector.shape_cast %536 : vector<1x2x64x32xbf16> to vector<2x64x32xbf16>
    %c3_196 = arith.constant 3 : index
    %c0_197 = arith.constant 0 : index
    %c0_198 = arith.constant 0 : index
    %c0_199 = arith.constant 0 : index
    %538 = vector.load %arg5[%c3_196, %c0_197, %c0_198, %c0_199] : memref<4x2x64x32xbf16, #tpu.memory_space<vmem>>, vector<1x2x64x32xbf16>
    %539 = vector.shape_cast %538 : vector<1x2x64x32xbf16> to vector<2x64x32xbf16>
    %c3_200 = arith.constant 3 : index
    %c0_201 = arith.constant 0 : index
    %c0_202 = arith.constant 0 : index
    %c0_203 = arith.constant 0 : index
    %540 = vector.load %arg6[%c3_200, %c0_201, %c0_202, %c0_203] : memref<4x2x32x64xbf16, #tpu.memory_space<vmem>>, vector<1x2x32x64xbf16>
    %541 = vector.shape_cast %540 : vector<1x2x32x64xbf16> to vector<2x32x64xbf16>
    %c3_204 = arith.constant 3 : index
    %c0_205 = arith.constant 0 : index
    %c0_206 = arith.constant 0 : index
    %542 = vector.load %arg7[%c3_204, %c0_205, %c0_206] : memref<4x64x256xbf16, #tpu.memory_space<vmem>>, vector<1x64x256xbf16>
    %543 = vector.shape_cast %542 : vector<1x64x256xbf16> to vector<64x256xbf16>
    %c3_207 = arith.constant 3 : index
    %c0_208 = arith.constant 0 : index
    %c0_209 = arith.constant 0 : index
    %544 = vector.load %arg8[%c3_207, %c0_208, %c0_209] : memref<4x1x256xf32, #tpu.memory_space<vmem>>, vector<1x1x256xf32>
    %545 = vector.shape_cast %544 : vector<1x1x256xf32> to vector<1x256xf32>
    %c3_210 = arith.constant 3 : index
    %c0_211 = arith.constant 0 : index
    %c0_212 = arith.constant 0 : index
    %546 = vector.load %arg9[%c3_210, %c0_211, %c0_212] : memref<4x256x64xbf16, #tpu.memory_space<vmem>>, vector<1x256x64xbf16>
    %547 = vector.shape_cast %546 : vector<1x256x64xbf16> to vector<256x64xbf16>
    %c3_213 = arith.constant 3 : index
    %c0_214 = arith.constant 0 : index
    %c0_215 = arith.constant 0 : index
    %548 = vector.load %arg10[%c3_213, %c0_214, %c0_215] : memref<4x9x64xf32, #tpu.memory_space<vmem>>, vector<1x9x64xf32>
    %549 = vector.shape_cast %548 : vector<1x9x64xf32> to vector<9x64xf32>
    %cst_216 = arith.constant 0.000000e+00 : f32
    %550 = vector.broadcast %cst_216 : f32 to vector<16x64xf32>
    %551 = vector.extract_strided_slice %535 {offsets = [0, 0, 0], sizes = [1, 64, 32], strides = [1, 1, 1]} : vector<2x64x32xbf16> to vector<1x64x32xbf16>
    %552 = vector.shape_cast %551 : vector<1x64x32xbf16> to vector<64x32xbf16>
    %553 = arith.truncf %533 : vector<16x64xf32> to vector<16x64xbf16>
    %cst_217 = arith.constant dense<0.000000e+00> : vector<16x32xf32>
    %554 = tpu.matmul %553, %552, %cst_217 {dimension_numbers = #tpu.dot_dimension_numbers<[1], [0], [0], [1], [0, 0, 1, 1], [], []>} : vector<16x64xbf16>, vector<64x32xbf16>, vector<16x32xf32> -> vector<16x32xf32>
    %555 = vector.extract_strided_slice %549 {offsets = [0, 0], sizes = [1, 32], strides = [1, 1]} : vector<9x64xf32> to vector<1x32xf32>
    %556 = vector.broadcast %555 : vector<1x32xf32> to vector<16x32xf32>
    %557 = arith.addf %554, %556 : vector<16x32xf32>
    %558 = vector.extract_strided_slice %537 {offsets = [0, 0, 0], sizes = [1, 64, 32], strides = [1, 1, 1]} : vector<2x64x32xbf16> to vector<1x64x32xbf16>
    %559 = vector.shape_cast %558 : vector<1x64x32xbf16> to vector<64x32xbf16>
    %560 = arith.truncf %533 : vector<16x64xf32> to vector<16x64xbf16>
    %cst_218 = arith.constant dense<0.000000e+00> : vector<16x32xf32>
    %561 = tpu.matmul %560, %559, %cst_218 {dimension_numbers = #tpu.dot_dimension_numbers<[1], [0], [0], [1], [0, 0, 1, 1], [], []>} : vector<16x64xbf16>, vector<64x32xbf16>, vector<16x32xf32> -> vector<16x32xf32>
    %562 = vector.extract_strided_slice %549 {offsets = [1, 0], sizes = [1, 32], strides = [1, 1]} : vector<9x64xf32> to vector<1x32xf32>
    %563 = vector.broadcast %562 : vector<1x32xf32> to vector<16x32xf32>
    %564 = arith.addf %561, %563 : vector<16x32xf32>
    %565 = vector.extract_strided_slice %539 {offsets = [0, 0, 0], sizes = [1, 64, 32], strides = [1, 1, 1]} : vector<2x64x32xbf16> to vector<1x64x32xbf16>
    %566 = vector.shape_cast %565 : vector<1x64x32xbf16> to vector<64x32xbf16>
    %567 = arith.truncf %533 : vector<16x64xf32> to vector<16x64xbf16>
    %cst_219 = arith.constant dense<0.000000e+00> : vector<16x32xf32>
    %568 = tpu.matmul %567, %566, %cst_219 {dimension_numbers = #tpu.dot_dimension_numbers<[1], [0], [0], [1], [0, 0, 1, 1], [], []>} : vector<16x64xbf16>, vector<64x32xbf16>, vector<16x32xf32> -> vector<16x32xf32>
    %569 = vector.extract_strided_slice %549 {offsets = [2, 0], sizes = [1, 32], strides = [1, 1]} : vector<9x64xf32> to vector<1x32xf32>
    %570 = vector.broadcast %569 : vector<1x32xf32> to vector<16x32xf32>
    %571 = arith.addf %568, %570 : vector<16x32xf32>
    %572 = arith.truncf %557 : vector<16x32xf32> to vector<16x32xbf16>
    %573 = arith.truncf %564 : vector<16x32xf32> to vector<16x32xbf16>
    %cst_220 = arith.constant dense<0.000000e+00> : vector<16x16xf32>
    %574 = tpu.matmul %572, %573, %cst_220 {dimension_numbers = #tpu.dot_dimension_numbers<[1], [1], [0], [0], [0, 0, 1, 0], [], []>} : vector<16x32xbf16>, vector<16x32xbf16>, vector<16x16xf32> -> vector<16x16xf32>
    %575 = arith.addf %574, %32 : vector<16x16xf32>
    %cst_221 = arith.constant dense<0xFF800000> : vector<16xf32>
    %576 = vector.multi_reduction <maximumf>, %575, %cst_221 [1] : vector<16x16xf32> to vector<16xf32>
    %577 = vector.shape_cast %576 : vector<16xf32> to vector<16x1xf32>
    %578 = vector.broadcast %577 : vector<16x1xf32> to vector<16x16xf32>
    %579 = arith.subf %575, %578 : vector<16x16xf32>
    %580 = math.exp %579 : vector<16x16xf32>
    %cst_222 = arith.constant dense<0.000000e+00> : vector<16xf32>
    %581 = vector.multi_reduction <add>, %580, %cst_222 [1] : vector<16x16xf32> to vector<16xf32>
    %582 = vector.shape_cast %581 : vector<16xf32> to vector<16x1xf32>
    %583 = tpu.reciprocal %582 {approx = true} : vector<16x1xf32> -> vector<16x1xf32>
    %584 = vector.broadcast %583 : vector<16x1xf32> to vector<16x16xf32>
    %585 = arith.mulf %580, %584 : vector<16x16xf32>
    %586 = arith.truncf %585 : vector<16x16xf32> to vector<16x16xbf16>
    %587 = arith.truncf %571 : vector<16x32xf32> to vector<16x32xbf16>
    %cst_223 = arith.constant dense<0.000000e+00> : vector<16x32xf32>
    %588 = tpu.matmul %586, %587, %cst_223 {dimension_numbers = #tpu.dot_dimension_numbers<[1], [0], [0], [1], [0, 0, 1, 1], [], []>} : vector<16x16xbf16>, vector<16x32xbf16>, vector<16x32xf32> -> vector<16x32xf32>
    %589 = vector.extract_strided_slice %541 {offsets = [0, 0, 0], sizes = [1, 32, 64], strides = [1, 1, 1]} : vector<2x32x64xbf16> to vector<1x32x64xbf16>
    %590 = vector.shape_cast %589 : vector<1x32x64xbf16> to vector<32x64xbf16>
    %591 = arith.truncf %588 : vector<16x32xf32> to vector<16x32xbf16>
    %cst_224 = arith.constant dense<0.000000e+00> : vector<16x64xf32>
    %592 = tpu.matmul %591, %590, %cst_224 {dimension_numbers = #tpu.dot_dimension_numbers<[1], [0], [0], [1], [0, 0, 1, 1], [], []>} : vector<16x32xbf16>, vector<32x64xbf16>, vector<16x64xf32> -> vector<16x64xf32>
    %593 = arith.addf %550, %592 : vector<16x64xf32>
    %594 = vector.extract_strided_slice %535 {offsets = [1, 0, 0], sizes = [1, 64, 32], strides = [1, 1, 1]} : vector<2x64x32xbf16> to vector<1x64x32xbf16>
    %595 = vector.shape_cast %594 : vector<1x64x32xbf16> to vector<64x32xbf16>
    %596 = arith.truncf %533 : vector<16x64xf32> to vector<16x64xbf16>
    %cst_225 = arith.constant dense<0.000000e+00> : vector<16x32xf32>
    %597 = tpu.matmul %596, %595, %cst_225 {dimension_numbers = #tpu.dot_dimension_numbers<[1], [0], [0], [1], [0, 0, 1, 1], [], []>} : vector<16x64xbf16>, vector<64x32xbf16>, vector<16x32xf32> -> vector<16x32xf32>
    %598 = vector.extract_strided_slice %549 {offsets = [0, 32], sizes = [1, 32], strides = [1, 1]} : vector<9x64xf32> to vector<1x32xf32>
    %599 = vector.broadcast %598 : vector<1x32xf32> to vector<16x32xf32>
    %600 = arith.addf %597, %599 : vector<16x32xf32>
    %601 = vector.extract_strided_slice %537 {offsets = [1, 0, 0], sizes = [1, 64, 32], strides = [1, 1, 1]} : vector<2x64x32xbf16> to vector<1x64x32xbf16>
    %602 = vector.shape_cast %601 : vector<1x64x32xbf16> to vector<64x32xbf16>
    %603 = arith.truncf %533 : vector<16x64xf32> to vector<16x64xbf16>
    %cst_226 = arith.constant dense<0.000000e+00> : vector<16x32xf32>
    %604 = tpu.matmul %603, %602, %cst_226 {dimension_numbers = #tpu.dot_dimension_numbers<[1], [0], [0], [1], [0, 0, 1, 1], [], []>} : vector<16x64xbf16>, vector<64x32xbf16>, vector<16x32xf32> -> vector<16x32xf32>
    %605 = vector.extract_strided_slice %549 {offsets = [1, 32], sizes = [1, 32], strides = [1, 1]} : vector<9x64xf32> to vector<1x32xf32>
    %606 = vector.broadcast %605 : vector<1x32xf32> to vector<16x32xf32>
    %607 = arith.addf %604, %606 : vector<16x32xf32>
    %608 = vector.extract_strided_slice %539 {offsets = [1, 0, 0], sizes = [1, 64, 32], strides = [1, 1, 1]} : vector<2x64x32xbf16> to vector<1x64x32xbf16>
    %609 = vector.shape_cast %608 : vector<1x64x32xbf16> to vector<64x32xbf16>
    %610 = arith.truncf %533 : vector<16x64xf32> to vector<16x64xbf16>
    %cst_227 = arith.constant dense<0.000000e+00> : vector<16x32xf32>
    %611 = tpu.matmul %610, %609, %cst_227 {dimension_numbers = #tpu.dot_dimension_numbers<[1], [0], [0], [1], [0, 0, 1, 1], [], []>} : vector<16x64xbf16>, vector<64x32xbf16>, vector<16x32xf32> -> vector<16x32xf32>
    %612 = vector.extract_strided_slice %549 {offsets = [2, 32], sizes = [1, 32], strides = [1, 1]} : vector<9x64xf32> to vector<1x32xf32>
    %613 = vector.broadcast %612 : vector<1x32xf32> to vector<16x32xf32>
    %614 = arith.addf %611, %613 : vector<16x32xf32>
    %615 = arith.truncf %600 : vector<16x32xf32> to vector<16x32xbf16>
    %616 = arith.truncf %607 : vector<16x32xf32> to vector<16x32xbf16>
    %cst_228 = arith.constant dense<0.000000e+00> : vector<16x16xf32>
    %617 = tpu.matmul %615, %616, %cst_228 {dimension_numbers = #tpu.dot_dimension_numbers<[1], [1], [0], [0], [0, 0, 1, 0], [], []>} : vector<16x32xbf16>, vector<16x32xbf16>, vector<16x16xf32> -> vector<16x16xf32>
    %618 = arith.addf %617, %32 : vector<16x16xf32>
    %cst_229 = arith.constant dense<0xFF800000> : vector<16xf32>
    %619 = vector.multi_reduction <maximumf>, %618, %cst_229 [1] : vector<16x16xf32> to vector<16xf32>
    %620 = vector.shape_cast %619 : vector<16xf32> to vector<16x1xf32>
    %621 = vector.broadcast %620 : vector<16x1xf32> to vector<16x16xf32>
    %622 = arith.subf %618, %621 : vector<16x16xf32>
    %623 = math.exp %622 : vector<16x16xf32>
    %cst_230 = arith.constant dense<0.000000e+00> : vector<16xf32>
    %624 = vector.multi_reduction <add>, %623, %cst_230 [1] : vector<16x16xf32> to vector<16xf32>
    %625 = vector.shape_cast %624 : vector<16xf32> to vector<16x1xf32>
    %626 = tpu.reciprocal %625 {approx = true} : vector<16x1xf32> -> vector<16x1xf32>
    %627 = vector.broadcast %626 : vector<16x1xf32> to vector<16x16xf32>
    %628 = arith.mulf %623, %627 : vector<16x16xf32>
    %629 = arith.truncf %628 : vector<16x16xf32> to vector<16x16xbf16>
    %630 = arith.truncf %614 : vector<16x32xf32> to vector<16x32xbf16>
    %cst_231 = arith.constant dense<0.000000e+00> : vector<16x32xf32>
    %631 = tpu.matmul %629, %630, %cst_231 {dimension_numbers = #tpu.dot_dimension_numbers<[1], [0], [0], [1], [0, 0, 1, 1], [], []>} : vector<16x16xbf16>, vector<16x32xbf16>, vector<16x32xf32> -> vector<16x32xf32>
    %632 = vector.extract_strided_slice %541 {offsets = [1, 0, 0], sizes = [1, 32, 64], strides = [1, 1, 1]} : vector<2x32x64xbf16> to vector<1x32x64xbf16>
    %633 = vector.shape_cast %632 : vector<1x32x64xbf16> to vector<32x64xbf16>
    %634 = arith.truncf %631 : vector<16x32xf32> to vector<16x32xbf16>
    %cst_232 = arith.constant dense<0.000000e+00> : vector<16x64xf32>
    %635 = tpu.matmul %634, %633, %cst_232 {dimension_numbers = #tpu.dot_dimension_numbers<[1], [0], [0], [1], [0, 0, 1, 1], [], []>} : vector<16x32xbf16>, vector<32x64xbf16>, vector<16x64xf32> -> vector<16x64xf32>
    %636 = arith.addf %593, %635 : vector<16x64xf32>
    %637 = vector.extract_strided_slice %549 {offsets = [3, 0], sizes = [1, 64], strides = [1, 1]} : vector<9x64xf32> to vector<1x64xf32>
    %638 = vector.broadcast %637 : vector<1x64xf32> to vector<16x64xf32>
    %639 = arith.addf %636, %638 : vector<16x64xf32>
    %640 = arith.addf %533, %639 : vector<16x64xf32>
    %641 = vector.extract_strided_slice %549 {offsets = [4, 0], sizes = [1, 64], strides = [1, 1]} : vector<9x64xf32> to vector<1x64xf32>
    %642 = vector.extract_strided_slice %549 {offsets = [5, 0], sizes = [1, 64], strides = [1, 1]} : vector<9x64xf32> to vector<1x64xf32>
    %cst_233 = arith.constant dense<0.000000e+00> : vector<16xf32>
    %643 = vector.multi_reduction <add>, %640, %cst_233 [1] : vector<16x64xf32> to vector<16xf32>
    %644 = vector.shape_cast %643 : vector<16xf32> to vector<16x1xf32>
    %cst_234 = arith.constant 6.400000e+01 : f32
    %645 = vector.broadcast %cst_234 : f32 to vector<16x1xf32>
    %646 = arith.divf %644, %645 : vector<16x1xf32>
    %647 = vector.broadcast %646 : vector<16x1xf32> to vector<16x64xf32>
    %648 = arith.subf %640, %647 : vector<16x64xf32>
    %649 = arith.mulf %648, %648 : vector<16x64xf32>
    %cst_235 = arith.constant dense<0.000000e+00> : vector<16xf32>
    %650 = vector.multi_reduction <add>, %649, %cst_235 [1] : vector<16x64xf32> to vector<16xf32>
    %651 = vector.shape_cast %650 : vector<16xf32> to vector<16x1xf32>
    %cst_236 = arith.constant 6.400000e+01 : f32
    %652 = vector.broadcast %cst_236 : f32 to vector<16x1xf32>
    %653 = arith.divf %651, %652 : vector<16x1xf32>
    %654 = vector.broadcast %646 : vector<16x1xf32> to vector<16x64xf32>
    %655 = arith.subf %640, %654 : vector<16x64xf32>
    %cst_237 = arith.constant 9.99999974E-6 : f32
    %656 = vector.broadcast %cst_237 : f32 to vector<16x1xf32>
    %657 = arith.addf %653, %656 : vector<16x1xf32>
    %658 = math.rsqrt %657 : vector<16x1xf32>
    %659 = vector.broadcast %658 : vector<16x1xf32> to vector<16x64xf32>
    %660 = arith.mulf %655, %659 : vector<16x64xf32>
    %661 = vector.broadcast %641 : vector<1x64xf32> to vector<16x64xf32>
    %662 = arith.mulf %660, %661 : vector<16x64xf32>
    %663 = vector.broadcast %642 : vector<1x64xf32> to vector<16x64xf32>
    %664 = arith.addf %662, %663 : vector<16x64xf32>
    %665 = arith.truncf %664 : vector<16x64xf32> to vector<16x64xbf16>
    %cst_238 = arith.constant dense<0.000000e+00> : vector<16x256xf32>
    %666 = tpu.matmul %665, %543, %cst_238 {dimension_numbers = #tpu.dot_dimension_numbers<[1], [0], [0], [1], [0, 0, 1, 1], [], []>} : vector<16x64xbf16>, vector<64x256xbf16>, vector<16x256xf32> -> vector<16x256xf32>
    %667 = vector.broadcast %545 : vector<1x256xf32> to vector<16x256xf32>
    %668 = arith.addf %666, %667 : vector<16x256xf32>
    %cst_239 = arith.constant 0.000000e+00 : f32
    %669 = vector.broadcast %cst_239 : f32 to vector<16x256xf32>
    %670 = arith.maximumf %668, %669 : vector<16x256xf32>
    %671 = arith.truncf %670 : vector<16x256xf32> to vector<16x256xbf16>
    %cst_240 = arith.constant dense<0.000000e+00> : vector<16x64xf32>
    %672 = tpu.matmul %671, %547, %cst_240 {dimension_numbers = #tpu.dot_dimension_numbers<[1], [0], [0], [1], [0, 0, 1, 1], [], []>} : vector<16x256xbf16>, vector<256x64xbf16>, vector<16x64xf32> -> vector<16x64xf32>
    %673 = vector.extract_strided_slice %549 {offsets = [8, 0], sizes = [1, 64], strides = [1, 1]} : vector<9x64xf32> to vector<1x64xf32>
    %674 = vector.broadcast %673 : vector<1x64xf32> to vector<16x64xf32>
    %675 = arith.addf %672, %674 : vector<16x64xf32>
    %676 = arith.addf %664, %675 : vector<16x64xf32>
    %677 = vector.extract_strided_slice %549 {offsets = [6, 0], sizes = [1, 64], strides = [1, 1]} : vector<9x64xf32> to vector<1x64xf32>
    %678 = vector.extract_strided_slice %549 {offsets = [7, 0], sizes = [1, 64], strides = [1, 1]} : vector<9x64xf32> to vector<1x64xf32>
    %cst_241 = arith.constant dense<0.000000e+00> : vector<16xf32>
    %679 = vector.multi_reduction <add>, %676, %cst_241 [1] : vector<16x64xf32> to vector<16xf32>
    %680 = vector.shape_cast %679 : vector<16xf32> to vector<16x1xf32>
    %cst_242 = arith.constant 6.400000e+01 : f32
    %681 = vector.broadcast %cst_242 : f32 to vector<16x1xf32>
    %682 = arith.divf %680, %681 : vector<16x1xf32>
    %683 = vector.broadcast %682 : vector<16x1xf32> to vector<16x64xf32>
    %684 = arith.subf %676, %683 : vector<16x64xf32>
    %685 = arith.mulf %684, %684 : vector<16x64xf32>
    %cst_243 = arith.constant dense<0.000000e+00> : vector<16xf32>
    %686 = vector.multi_reduction <add>, %685, %cst_243 [1] : vector<16x64xf32> to vector<16xf32>
    %687 = vector.shape_cast %686 : vector<16xf32> to vector<16x1xf32>
    %cst_244 = arith.constant 6.400000e+01 : f32
    %688 = vector.broadcast %cst_244 : f32 to vector<16x1xf32>
    %689 = arith.divf %687, %688 : vector<16x1xf32>
    %690 = vector.broadcast %682 : vector<16x1xf32> to vector<16x64xf32>
    %691 = arith.subf %676, %690 : vector<16x64xf32>
    %cst_245 = arith.constant 9.99999974E-6 : f32
    %692 = vector.broadcast %cst_245 : f32 to vector<16x1xf32>
    %693 = arith.addf %689, %692 : vector<16x1xf32>
    %694 = math.rsqrt %693 : vector<16x1xf32>
    %695 = vector.broadcast %694 : vector<16x1xf32> to vector<16x64xf32>
    %696 = arith.mulf %691, %695 : vector<16x64xf32>
    %697 = vector.broadcast %677 : vector<1x64xf32> to vector<16x64xf32>
    %698 = arith.mulf %696, %697 : vector<16x64xf32>
    %699 = vector.broadcast %678 : vector<1x64xf32> to vector<16x64xf32>
    %700 = arith.addf %698, %699 : vector<16x64xf32>
    %c0_246 = arith.constant 0 : index
    %c0_247 = arith.constant 0 : index
    %701 = vector.load %arg17[%c0_246, %c0_247] : memref<2x16xbf16, #tpu.memory_space<vmem>>, vector<2x16xbf16>
    %702 = arith.truncf %700 : vector<16x64xf32> to vector<16x64xbf16>
    %cst_248 = arith.constant dense<0.000000e+00> : vector<2x64xf32>
    %703 = tpu.matmul %701, %702, %cst_248 {dimension_numbers = #tpu.dot_dimension_numbers<[1], [0], [0], [1], [0, 0, 1, 1], [], []>} : vector<2x16xbf16>, vector<16x64xbf16>, vector<2x64xf32> -> vector<2x64xf32>
    %c0_249 = arith.constant 0 : index
    %c0_250 = arith.constant 0 : index
    %704 = vector.load %arg11[%c0_249, %c0_250] : memref<64x64xbf16, #tpu.memory_space<vmem>>, vector<64x64xbf16>
    %705 = arith.truncf %703 : vector<2x64xf32> to vector<2x64xbf16>
    %cst_251 = arith.constant dense<0.000000e+00> : vector<2x64xf32>
    %706 = tpu.matmul %705, %704, %cst_251 {dimension_numbers = #tpu.dot_dimension_numbers<[1], [0], [0], [1], [0, 0, 1, 1], [], []>} : vector<2x64xbf16>, vector<64x64xbf16>, vector<2x64xf32> -> vector<2x64xf32>
    %c3_252 = arith.constant 3 : index
    %c0_253 = arith.constant 0 : index
    %707 = vector.load %arg15[%c3_252, %c0_253] : memref<8x64xf32, #tpu.memory_space<vmem>>, vector<1x64xf32>
    %708 = vector.broadcast %707 : vector<1x64xf32> to vector<2x64xf32>
    %709 = arith.addf %706, %708 : vector<2x64xf32>
    %cst_254 = arith.constant 0.000000e+00 : f32
    %710 = vector.broadcast %cst_254 : f32 to vector<2x64xf32>
    %711 = arith.maximumf %709, %710 : vector<2x64xf32>
    %c0_255 = arith.constant 0 : index
    %c0_256 = arith.constant 0 : index
    %712 = vector.load %arg12[%c0_255, %c0_256] : memref<64x16xbf16, #tpu.memory_space<vmem>>, vector<64x16xbf16>
    %713 = arith.truncf %711 : vector<2x64xf32> to vector<2x64xbf16>
    %cst_257 = arith.constant dense<0.000000e+00> : vector<2x16xf32>
    %714 = tpu.matmul %713, %712, %cst_257 {dimension_numbers = #tpu.dot_dimension_numbers<[1], [0], [0], [1], [0, 0, 1, 1], [], []>} : vector<2x64xbf16>, vector<64x16xbf16>, vector<2x16xf32> -> vector<2x16xf32>
    %c4 = arith.constant 4 : index
    %c0_258 = arith.constant 0 : index
    %715 = vector.load %arg15[%c4, %c0_258] : memref<8x64xf32, #tpu.memory_space<vmem>>, vector<1x16xf32>
    %716 = vector.broadcast %715 : vector<1x16xf32> to vector<2x16xf32>
    %717 = arith.addf %714, %716 : vector<2x16xf32>
    %cst_259 = arith.constant 0.000000e+00 : f32
    %718 = vector.broadcast %cst_259 : f32 to vector<2x16xf32>
    %719 = arith.maximumf %717, %718 : vector<2x16xf32>
    %c5 = arith.constant 5 : index
    %c0_260 = arith.constant 0 : index
    %720 = vector.load %arg15[%c5, %c0_260] : memref<8x64xf32, #tpu.memory_space<vmem>>, vector<1x16xf32>
    %c6 = arith.constant 6 : index
    %c0_261 = arith.constant 0 : index
    %721 = vector.load %arg15[%c6, %c0_261] : memref<8x64xf32, #tpu.memory_space<vmem>>, vector<1x16xf32>
    %cst_262 = arith.constant dense<0.000000e+00> : vector<2xf32>
    %722 = vector.multi_reduction <add>, %719, %cst_262 [1] : vector<2x16xf32> to vector<2xf32>
    %723 = vector.shape_cast %722 : vector<2xf32> to vector<2x1xf32>
    %cst_263 = arith.constant 1.600000e+01 : f32
    %724 = vector.broadcast %cst_263 : f32 to vector<2x1xf32>
    %725 = arith.divf %723, %724 : vector<2x1xf32>
    %726 = vector.broadcast %725 : vector<2x1xf32> to vector<2x16xf32>
    %727 = arith.subf %719, %726 : vector<2x16xf32>
    %728 = arith.mulf %727, %727 : vector<2x16xf32>
    %cst_264 = arith.constant dense<0.000000e+00> : vector<2xf32>
    %729 = vector.multi_reduction <add>, %728, %cst_264 [1] : vector<2x16xf32> to vector<2xf32>
    %730 = vector.shape_cast %729 : vector<2xf32> to vector<2x1xf32>
    %cst_265 = arith.constant 1.600000e+01 : f32
    %731 = vector.broadcast %cst_265 : f32 to vector<2x1xf32>
    %732 = arith.divf %730, %731 : vector<2x1xf32>
    %733 = vector.broadcast %725 : vector<2x1xf32> to vector<2x16xf32>
    %734 = arith.subf %719, %733 : vector<2x16xf32>
    %cst_266 = arith.constant 9.99999974E-6 : f32
    %735 = vector.broadcast %cst_266 : f32 to vector<2x1xf32>
    %736 = arith.addf %732, %735 : vector<2x1xf32>
    %737 = math.rsqrt %736 : vector<2x1xf32>
    %738 = vector.broadcast %737 : vector<2x1xf32> to vector<2x16xf32>
    %739 = arith.mulf %734, %738 : vector<2x16xf32>
    %740 = vector.broadcast %720 : vector<1x16xf32> to vector<2x16xf32>
    %741 = arith.mulf %739, %740 : vector<2x16xf32>
    %742 = vector.broadcast %721 : vector<1x16xf32> to vector<2x16xf32>
    %743 = arith.addf %741, %742 : vector<2x16xf32>
    %c0_267 = arith.constant 0 : index
    %c0_268 = arith.constant 0 : index
    %744 = vector.load %arg13[%c0_267, %c0_268] : memref<16x128xbf16, #tpu.memory_space<vmem>>, vector<16x128xbf16>
    %745 = arith.truncf %743 : vector<2x16xf32> to vector<2x16xbf16>
    %cst_269 = arith.constant dense<0.000000e+00> : vector<2x128xf32>
    %746 = tpu.matmul %745, %744, %cst_269 {dimension_numbers = #tpu.dot_dimension_numbers<[1], [0], [0], [1], [0, 0, 1, 1], [], []>} : vector<2x16xbf16>, vector<16x128xbf16>, vector<2x128xf32> -> vector<2x128xf32>
    %c0_270 = arith.constant 0 : index
    %c0_271 = arith.constant 0 : index
    %747 = vector.load %arg14[%c0_270, %c0_271] : memref<1x128xf32, #tpu.memory_space<vmem>>, vector<1x128xf32>
    %748 = vector.broadcast %747 : vector<1x128xf32> to vector<2x128xf32>
    %749 = arith.addf %746, %748 : vector<2x128xf32>
    %c0_272 = arith.constant 0 : index
    %c0_273 = arith.constant 0 : index
    %750 = vector.load %arg18[%c0_272, %c0_273] : memref<2x128xf32, #tpu.memory_space<vmem>>, vector<2x128xf32>
    tpu.vector_store %arg18[%c0_272, %c0_273], %749 {strides = array<i32>} : memref<2x128xf32, #tpu.memory_space<vmem>>, vector<2x128xf32>,
    return
  }
  func.func @transform_0(%arg0: i32) -> (i32, i32) {
    %c0_i32 = arith.constant 0 : i32
    %c0_i32_0 = arith.constant 0 : i32
    return %arg0, %c0_i32 : i32, i32
  }
  func.func @transform_1(%arg0: i32) -> (i32, i32) {
    %c0_i32 = arith.constant 0 : i32
    %c0_i32_0 = arith.constant 0 : i32
    %c0_i32_1 = arith.constant 0 : i32
    return %c0_i32, %c0_i32_0 : i32, i32
  }
  func.func @transform_2(%arg0: i32) -> (i32, i32, i32, i32) {
    %c0_i32 = arith.constant 0 : i32
    %c0_i32_0 = arith.constant 0 : i32
    %c0_i32_1 = arith.constant 0 : i32
    %c0_i32_2 = arith.constant 0 : i32
    %c0_i32_3 = arith.constant 0 : i32
    return %c0_i32, %c0_i32_0, %c0_i32_1, %c0_i32_2 : i32, i32, i32, i32
  }
  func.func @transform_3(%arg0: i32) -> (i32, i32, i32, i32) {
    %c0_i32 = arith.constant 0 : i32
    %c0_i32_0 = arith.constant 0 : i32
    %c0_i32_1 = arith.constant 0 : i32
    %c0_i32_2 = arith.constant 0 : i32
    %c0_i32_3 = arith.constant 0 : i32
    return %c0_i32, %c0_i32_0, %c0_i32_1, %c0_i32_2 : i32, i32, i32, i32
  }
  func.func @transform_4(%arg0: i32) -> (i32, i32, i32, i32) {
    %c0_i32 = arith.constant 0 : i32
    %c0_i32_0 = arith.constant 0 : i32
    %c0_i32_1 = arith.constant 0 : i32
    %c0_i32_2 = arith.constant 0 : i32
    %c0_i32_3 = arith.constant 0 : i32
    return %c0_i32, %c0_i32_0, %c0_i32_1, %c0_i32_2 : i32, i32, i32, i32
  }
  func.func @transform_5(%arg0: i32) -> (i32, i32, i32, i32) {
    %c0_i32 = arith.constant 0 : i32
    %c0_i32_0 = arith.constant 0 : i32
    %c0_i32_1 = arith.constant 0 : i32
    %c0_i32_2 = arith.constant 0 : i32
    %c0_i32_3 = arith.constant 0 : i32
    return %c0_i32, %c0_i32_0, %c0_i32_1, %c0_i32_2 : i32, i32, i32, i32
  }
  func.func @transform_6(%arg0: i32) -> (i32, i32, i32) {
    %c0_i32 = arith.constant 0 : i32
    %c0_i32_0 = arith.constant 0 : i32
    %c0_i32_1 = arith.constant 0 : i32
    %c0_i32_2 = arith.constant 0 : i32
    return %c0_i32, %c0_i32_0, %c0_i32_1 : i32, i32, i32
  }
  func.func @transform_7(%arg0: i32) -> (i32, i32, i32) {
    %c0_i32 = arith.constant 0 : i32
    %c0_i32_0 = arith.constant 0 : i32
    %c0_i32_1 = arith.constant 0 : i32
    %c0_i32_2 = arith.constant 0 : i32
    return %c0_i32, %c0_i32_0, %c0_i32_1 : i32, i32, i32
  }
  func.func @transform_8(%arg0: i32) -> (i32, i32, i32) {
    %c0_i32 = arith.constant 0 : i32
    %c0_i32_0 = arith.constant 0 : i32
    %c0_i32_1 = arith.constant 0 : i32
    %c0_i32_2 = arith.constant 0 : i32
    return %c0_i32, %c0_i32_0, %c0_i32_1 : i32, i32, i32
  }
  func.func @transform_9(%arg0: i32) -> (i32, i32, i32) {
    %c0_i32 = arith.constant 0 : i32
    %c0_i32_0 = arith.constant 0 : i32
    %c0_i32_1 = arith.constant 0 : i32
    %c0_i32_2 = arith.constant 0 : i32
    return %c0_i32, %c0_i32_0, %c0_i32_1 : i32, i32, i32
  }
  func.func @transform_10(%arg0: i32) -> (i32, i32) {
    %c0_i32 = arith.constant 0 : i32
    %c0_i32_0 = arith.constant 0 : i32
    %c0_i32_1 = arith.constant 0 : i32
    return %c0_i32, %c0_i32_0 : i32, i32
  }
  func.func @transform_11(%arg0: i32) -> (i32, i32) {
    %c0_i32 = arith.constant 0 : i32
    %c0_i32_0 = arith.constant 0 : i32
    %c0_i32_1 = arith.constant 0 : i32
    return %c0_i32, %c0_i32_0 : i32, i32
  }
  func.func @transform_12(%arg0: i32) -> (i32, i32) {
    %c0_i32 = arith.constant 0 : i32
    %c0_i32_0 = arith.constant 0 : i32
    %c0_i32_1 = arith.constant 0 : i32
    return %c0_i32, %c0_i32_0 : i32, i32
  }
  func.func @transform_13(%arg0: i32) -> (i32, i32) {
    %c0_i32 = arith.constant 0 : i32
    %c0_i32_0 = arith.constant 0 : i32
    %c0_i32_1 = arith.constant 0 : i32
    return %c0_i32, %c0_i32_0 : i32, i32
  }
  func.func @transform_14(%arg0: i32) -> (i32, i32) {
    %c0_i32 = arith.constant 0 : i32
    %c0_i32_0 = arith.constant 0 : i32
    %c0_i32_1 = arith.constant 0 : i32
    return %c0_i32, %c0_i32_0 : i32, i32
  }
  func.func @transform_15(%arg0: i32) -> (i32, i32) {
    %c0_i32 = arith.constant 0 : i32
    %c0_i32_0 = arith.constant 0 : i32
    %c0_i32_1 = arith.constant 0 : i32
    return %c0_i32, %c0_i32_0 : i32, i32
  }
  func.func @transform_16(%arg0: i32) -> (i32, i32) {
    %c0_i32 = arith.constant 0 : i32
    %c0_i32_0 = arith.constant 0 : i32
    %c0_i32_1 = arith.constant 0 : i32
    return %c0_i32, %c0_i32_0 : i32, i32
  }
  func.func @transform_17(%arg0: i32) -> (i32, i32) {
    %c0_i32 = arith.constant 0 : i32
    %c0_i32_0 = arith.constant 0 : i32
    return %arg0, %c0_i32 : i32, i32
  }
}

</mosaic_0001>

<llo_original>
// kernel: man_zone_forward.1
$region0: #{man_zone_forward.1}
  #allocation0 [shape = 'u32[]', space=smem, size = 0x4, offset = 0x4, fixed_abs, tag = 'smem constant byte address 0x4 - core index']
  #allocation1 [shape = 'u32[72,128]{1,0:T(1,128)}', space=vmem, size = 0x9000, scoped, tag = 'internal scratch']
  %s0 = inlined_call_operand.vmem [shape: bf16[16,5], index: 0, kind: input, shape index: {}]
  %s1 = inlined_call_operand.vmem [shape: bf16[5,64], index: 1, kind: input, shape index: {}]
  %s2 = inlined_call_operand.vmem [shape: bf16[4,2,64,32], index: 2, kind: input, shape index: {}]
  %s3 = inlined_call_operand.vmem [shape: bf16[4,2,64,32], index: 3, kind: input, shape index: {}]
  %s4 = inlined_call_operand.vmem [shape: bf16[4,2,64,32], index: 4, kind: input, shape index: {}]
  %s5 = inlined_call_operand.vmem [shape: bf16[4,2,32,64], index: 5, kind: input, shape index: {}]
  %s6 = inlined_call_operand.vmem [shape: bf16[4,64,256], index: 6, kind: input, shape index: {}]
  %s7 = inlined_call_operand.vmem [shape: f32[4,1,256], index: 7, kind: input, shape index: {}]
  %s8 = inlined_call_operand.vmem [shape: bf16[4,256,64], index: 8, kind: input, shape index: {}]
  %s9 = inlined_call_operand.vmem [shape: f32[4,9,64], index: 9, kind: input, shape index: {}]
  %s10 = inlined_call_operand.vmem [shape: bf16[64,64], index: 10, kind: input, shape index: {}]
  %s11 = inlined_call_operand.vmem [shape: bf16[64,16], index: 11, kind: input, shape index: {}]
  %s12 = inlined_call_operand.vmem [shape: bf16[16,128], index: 12, kind: input, shape index: {}]
  %s13 = inlined_call_operand.vmem [shape: f32[1,128], index: 13, kind: input, shape index: {}]
  %s14 = inlined_call_operand.vmem [shape: f32[8,64], index: 14, kind: input, shape index: {}]
  %s15 = inlined_call_operand.vmem [shape: f32[16,16], index: 15, kind: input, shape index: {}]
  %s16 = inlined_call_operand.vmem [shape: bf16[2,16], index: 16, kind: input, shape index: {}]
  %s17 = inlined_call_operand.hbm [shape: f32[2,128], index: 17, kind: output, shape index: {}]
  %s18 = sld [smem:[#allocation0]]
  $region78: #{man_zone_forward.1} parent=0
    _
  %s20 = ssub.s32 1, %s18
  %s21 = scalar_select 0, %s20, %s18
  $region1: #{man_zone_forward.1} parent=0
    #allocation2 [shape = 'u8[1024]{0}', space=vmem, size = 0x400, scoped, tag = 'output window, operand 0, single buffered']
    #allocation3 [shape = 's32[1]{0}', space=sflag, size = 0x4, scoped, tag = 'scoped memory for man_zone_forward.1']
    %22 = vsyncpa [#allocation3], 0
    // Predicated region
    $region2: #{man_zone_forward.1} parent=1 // pred_check
      _
    $region3: #{man_zone_forward.1} parent=1 // pred_check_branch
      %24 = sbr.rel (0) target = $region5
    $region4: #{man_zone_forward.1} parent=1 // pred_region
      _
    $region5: #{man_zone_forward.1} parent=1 // pred_fallthru
      _
    // Predicated region
    $region6: #{man_zone_forward.1} parent=1 // pred_check
      _
    $region7: #{man_zone_forward.1} parent=1 // pred_check_branch
      %26 = sbr.rel (0) target = $region9
    $region8: #{man_zone_forward.1} parent=1 // pred_region
      _
    $region9: #{man_zone_forward.1} parent=1 // pred_fallthru
      _
    // Predicated region
    $region10: #{man_zone_forward.1} parent=1 // pred_check
      _
    $region11: #{man_zone_forward.1} parent=1 // pred_check_branch
      %28 = sbr.rel (0) target = $region13
    $region12: #{man_zone_forward.1} parent=1 // pred_region
      _
    $region13: #{man_zone_forward.1} parent=1 // pred_fallthru
      _
    // Predicated region
    $region14: #{man_zone_forward.1} parent=1 // pred_check
      _
    $region15: #{man_zone_forward.1} parent=1 // pred_check_branch
      %30 = sbr.rel (0) target = $region17
    $region16: #{man_zone_forward.1} parent=1 // pred_region
      _
    $region17: #{man_zone_forward.1} parent=1 // pred_fallthru
      _
    // Predicated region
    $region18: #{man_zone_forward.1} parent=1 // pred_check
      _
    $region19: #{man_zone_forward.1} parent=1 // pred_check_branch
      %32 = sbr.rel (0) target = $region21
    $region20: #{man_zone_forward.1} parent=1 // pred_region
      _
    $region21: #{man_zone_forward.1} parent=1 // pred_fallthru
      _
    // Predicated region
    $region22: #{man_zone_forward.1} parent=1 // pred_check
      _
    $region23: #{man_zone_forward.1} parent=1 // pred_check_branch
      %34 = sbr.rel (0) target = $region25
    $region24: #{man_zone_forward.1} parent=1 // pred_region
      _
    $region25: #{man_zone_forward.1} parent=1 // pred_fallthru
      _
    // Predicated region
    $region26: #{man_zone_forward.1} parent=1 // pred_check
      _
    $region27: #{man_zone_forward.1} parent=1 // pred_check_branch
      %36 = sbr.rel (0) target = $region29
    $region28: #{man_zone_forward.1} parent=1 // pred_region
      _
    $region29: #{man_zone_forward.1} parent=1 // pred_fallthru
      _
    // Predicated region
    $region30: #{man_zone_forward.1} parent=1 // pred_check
      _
    $region31: #{man_zone_forward.1} parent=1 // pred_check_branch
      %38 = sbr.rel (0) target = $region33
    $region32: #{man_zone_forward.1} parent=1 // pred_region
      _
    $region33: #{man_zone_forward.1} parent=1 // pred_fallthru
      _
    // Predicated region
    $region34: #{man_zone_forward.1} parent=1 // pred_check
      _
    $region35: #{man_zone_forward.1} parent=1 // pred_check_branch
      %40 = sbr.rel (0) target = $region37
    $region36: #{man_zone_forward.1} parent=1 // pred_region
      _
    $region37: #{man_zone_forward.1} parent=1 // pred_fallthru
      _
    // Predicated region
    $region38: #{man_zone_forward.1} parent=1 // pred_check
      _
    $region39: #{man_zone_forward.1} parent=1 // pred_check_branch
      %42 = sbr.rel (0) target = $region41
    $region40: #{man_zone_forward.1} parent=1 // pred_region
      _
    $region41: #{man_zone_forward.1} parent=1 // pred_fallthru
      _
    // Predicated region
    $region42: #{man_zone_forward.1} parent=1 // pred_check
      _
    $region43: #{man_zone_forward.1} parent=1 // pred_check_branch
      %44 = sbr.rel (0) target = $region45
    $region44: #{man_zone_forward.1} parent=1 // pred_region
      _
    $region45: #{man_zone_forward.1} parent=1 // pred_fallthru
      _
    // Predicated region
    $region46: #{man_zone_forward.1} parent=1 // pred_check
      _
    $region47: #{man_zone_forward.1} parent=1 // pred_check_branch
      %46 = sbr.rel (0) target = $region49
    $region48: #{man_zone_forward.1} parent=1 // pred_region
      _
    $region49: #{man_zone_forward.1} parent=1 // pred_fallthru
      _
    // Predicated region
    $region50: #{man_zone_forward.1} parent=1 // pred_check
      _
    $region51: #{man_zone_forward.1} parent=1 // pred_check_branch
      %48 = sbr.rel (0) target = $region53
    $region52: #{man_zone_forward.1} parent=1 // pred_region
      _
    $region53: #{man_zone_forward.1} parent=1 // pred_fallthru
      _
    // Predicated region
    $region54: #{man_zone_forward.1} parent=1 // pred_check
      _
    $region55: #{man_zone_forward.1} parent=1 // pred_check_branch
      %50 = sbr.rel (0) target = $region57
    $region56: #{man_zone_forward.1} parent=1 // pred_region
      _
    $region57: #{man_zone_forward.1} parent=1 // pred_fallthru
      _
    // Predicated region
    $region58: #{man_zone_forward.1} parent=1 // pred_check
      _
    $region59: #{man_zone_forward.1} parent=1 // pred_check_branch
      %52 = sbr.rel (0) target = $region61
    $region60: #{man_zone_forward.1} parent=1 // pred_region
      _
    $region61: #{man_zone_forward.1} parent=1 // pred_fallthru
      _
    // Predicated region
    $region62: #{man_zone_forward.1} parent=1 // pred_check
      _
    $region63: #{man_zone_forward.1} parent=1 // pred_check_branch
      %54 = sbr.rel (0) target = $region65
    $region64: #{man_zone_forward.1} parent=1 // pred_region
      _
    $region65: #{man_zone_forward.1} parent=1 // pred_fallthru
      _
    // Predicated region
    $region66: #{man_zone_forward.1} parent=1 // pred_check
      _
    $region67: #{man_zone_forward.1} parent=1 // pred_check_branch
      %56 = sbr.rel (0) target = $region69
    $region68: #{man_zone_forward.1} parent=1 // pred_region
      _
    $region69: #{man_zone_forward.1} parent=1 // pred_fallthru
      _
    %v58 = vld [vmem:[%s0] sm:$0xf]
    %v59 = vld [vmem:[%s0 + $0x4] sm:$0xf]
    %v60 = vld [vmem:[%s1] sm:$0x7]
    %v61 = vld [vmem:[%s14] sm:$0x1]
    %v62 = vperm.slane %v61, 0
    %v65 = vunpack.c.l.b16 %v58
    %v66 = vunpack.c.l.b16 %v59
    %v67 = vpack.c.b16 %v66, %v65
    %vm68 = vcmask 39936
    %v70 = vsel %vm68, %v67, 0
    %vm72 = vcmask 1041408
    %vm73 = vcmask 1042432
    %v74 = vsel %vm72, 4294967295, 65535
    %v75 = vsel %vm73, %v74, 0
    %v77 = vand.u32 %v60, %v75
    %79 = vmatpush.bf16.msra.mxu0 0
    %80 = vmatpush.bf16.msra.mxu0 0
    %81 = vmatpush.bf16.msra.mxu0 0
    %82 = vmatpush.bf16.msra.mxu0 0
    %83 = vmatpush.bf16.msra.mxu0 0
    %84 = vmatpush.bf16.msra.mxu0 0
    %85 = vmatpush.bf16.msra.mxu0 0
    %86 = vmatpush.bf16.msra.mxu0 %v77
    %87 = vmatmul.bf16.gmra.mxu0 %v70
    %v88 = vpop.f32.mrf.mxu0
    %v89 = vadd.f32 %v62, %v88
    %v90 = vpop.f32.mrf.mxu0
    %v91 = vadd.f32 %v62, %v90
    %92 = vdwg.mxu0
    %v93 = vmax.f32 %v89, 0.0
    %v94 = vmax.f32 %v91, 0.0
    %v95 = vld [vmem:[%s14 + $0x1] sm:$0x1]
    %v96 = vld [vmem:[%s14 + $0x2] sm:$0x1]
    %vm97 = vcmask 523264
    %v98 = vsel %vm97, %v93, 0.0
    %99 = vadd.xlane.f32.xlu0 %v98
    %v100 = vpop.xlane.xlu0 %99
    %v101 = vsel %vm97, %v94, 0.0
    %102 = vadd.xlane.f32.xlu0 %v101
    %v103 = vpop.xlane.xlu0 %102
    %v104 = vrcp.pop 64.0
    %v105 = vmul.f32 64.0, %v104
    %v106 = vsub.f32 1.0, %v105
    %v107 = vmul.f32 %v104, %v106
    %v108 = vadd.f32 %v104, %v107
    %vm109 = vweird.f32 %v104
    %v110 = vsel %vm109, %v104, %v108
    %v111 = vmul.f32 %v100, %v110
    %v112 = vmul.f32 %v103, %v110
    %v113 = vsub.f32 %v93, %v111
    %v114 = vsub.f32 %v94, %v112
    %v115 = vmul.f32 %v113, %v113
    %v116 = vmul.f32 %v114, %v114
    %v117 = vsel %vm97, %v115, 0.0
    %118 = vadd.xlane.f32.xlu0 %v117
    %v119 = vpop.xlane.xlu0 %118
    %v120 = vsel %vm97, %v116, 0.0
    %121 = vadd.xlane.f32.xlu0 %v120
    %v122 = vpop.xlane.xlu0 %121
    %v123 = vmul.f32 %v119, %v110
    %v124 = vmul.f32 %v122, %v110
    %v125 = vadd.f32 %v123, 1e-05
    %v126 = vadd.f32 %v124, 1e-05
    %v127 = vrsqrt.pop %v125
    %v128 = vmul.f32 %v127, %v125
    %v129 = vmul.f32 %v128, %v127
    %v130 = vmul.f32 0.5, %v129
    %v131 = vsub.f32 1.5, %v130
    %v132 = vmul.f32 %v127, %v131
    %vm133 = vweird.f32 %v125
    %vm134 = vweird.f32 %v127
    %vm135 = vmor %vm133, %vm134
    %v136 = vsel %vm135, %v127, %v132
    %v137 = vrsqrt.pop %v126
    %v138 = vmul.f32 %v137, %v126
    %v139 = vmul.f32 %v138, %v137
    %v140 = vmul.f32 0.5, %v139
    %v141 = vsub.f32 1.5, %v140
    %v142 = vmul.f32 %v137, %v141
    %vm143 = vweird.f32 %v126
    %vm144 = vweird.f32 %v137
    %vm145 = vmor %vm143, %vm144
    %v146 = vsel %vm145, %v137, %v142
    %v147 = vmul.f32 %v113, %v136
    %v148 = vmul.f32 %v114, %v146
    %v149 = vperm.slane %v95, 0
    %v150 = vmul.f32 %v147, %v149
    %v151 = vmul.f32 %v148, %v149
    %v152 = vperm.slane %v96, 0
    %v153 = vadd.f32 %v150, %v152
    %v154 = vadd.f32 %v151, %v152
    %v155 = vld [vmem:[%s15] sm:$0xff]
    %v156 = vld [vmem:[%s15 + $0x8] sm:$0xff]
    %v157 = vld [vmem:[%s2] sm:$0xf]
    %v158 = vld [vmem:[%s2 + $0x4] sm:$0xf]
    %v159 = vld [vmem:[%s2 + $0x8] sm:$0xf]
    %v160 = vld [vmem:[%s2 + $0xc] sm:$0xf]
    %v161 = vld [vmem:[%s2 + $0x10] sm:$0xf]
    %v162 = vld [vmem:[%s2 + $0x14] sm:$0xf]
    %v163 = vld [vmem:[%s2 + $0x18] sm:$0xf]
    %v164 = vld [vmem:[%s2 + $0x1c] sm:$0xf]
    %v165 = vld [vmem:[%s2 + $0x20] sm:$0xf]
    %v166 = vld [vmem:[%s2 + $0x24] sm:$0xf]
    %v167 = vld [vmem:[%s2 + $0x28] sm:$0xf]
    %v168 = vld [vmem:[%s2 + $0x2c] sm:$0xf]
    %v169 = vld [vmem:[%s2 + $0x30] sm:$0xf]
    %v170 = vld [vmem:[%s2 + $0x34] sm:$0xf]
    %v171 = vld [vmem:[%s2 + $0x38] sm:$0xf]
    %v172 = vld [vmem:[%s2 + $0x3c] sm:$0xf]
    %v173 = vld [vmem:[%s3] sm:$0xf]
    %v174 = vld [vmem:[%s3 + $0x4] sm:$0xf]
    %v175 = vld [vmem:[%s3 + $0x8] sm:$0xf]
    %v176 = vld [vmem:[%s3 + $0xc] sm:$0xf]
    %v177 = vld [vmem:[%s3 + $0x10] sm:$0xf]
    %v178 = vld [vmem:[%s3 + $0x14] sm:$0xf]
    %v179 = vld [vmem:[%s3 + $0x18] sm:$0xf]
    %v180 = vld [vmem:[%s3 + $0x1c] sm:$0xf]
    %v181 = vld [vmem:[%s3 + $0x20] sm:$0xf]
    %v182 = vld [vmem:[%s3 + $0x24] sm:$0xf]
    %v183 = vld [vmem:[%s3 + $0x28] sm:$0xf]
    %v184 = vld [vmem:[%s3 + $0x2c] sm:$0xf]
    %v185 = vld [vmem:[%s3 + $0x30] sm:$0xf]
    %v186 = vld [vmem:[%s3 + $0x34] sm:$0xf]
    %v187 = vld [vmem:[%s3 + $0x38] sm:$0xf]
    %v188 = vld [vmem:[%s3 + $0x3c] sm:$0xf]
    %v189 = vld [vmem:[%s4] sm:$0xf]
    %v190 = vld [vmem:[%s4 + $0x4] sm:$0xf]
    %v191 = vld [vmem:[%s4 + $0x8] sm:$0xf]
    %v192 = vld [vmem:[%s4 + $0xc] sm:$0xf]
    %v193 = vld [vmem:[%s4 + $0x10] sm:$0xf]
    %v194 = vld [vmem:[%s4 + $0x14] sm:$0xf]
    %v195 = vld [vmem:[%s4 + $0x18] sm:$0xf]
    %v196 = vld [vmem:[%s4 + $0x1c] sm:$0xf]
    %v197 = vld [vmem:[%s4 + $0x20] sm:$0xf]
    %v198 = vld [vmem:[%s4 + $0x24] sm:$0xf]
    %v199 = vld [vmem:[%s4 + $0x28] sm:$0xf]
    %v200 = vld [vmem:[%s4 + $0x2c] sm:$0xf]
    %v201 = vld [vmem:[%s4 + $0x30] sm:$0xf]
    %v202 = vld [vmem:[%s4 + $0x34] sm:$0xf]
    %v203 = vld [vmem:[%s4 + $0x38] sm:$0xf]
    %v204 = vld [vmem:[%s4 + $0x3c] sm:$0xf]
    %v205 = vld [vmem:[%s5] sm:$0xf]
    %v206 = vld [vmem:[%s5 + $0x4] sm:$0xf]
    %v207 = vld [vmem:[%s5 + $0x8] sm:$0xf]
    %v208 = vld [vmem:[%s5 + $0xc] sm:$0xf]
    %v209 = vld [vmem:[%s5 + $0x10] sm:$0xf]
    %v210 = vld [vmem:[%s5 + $0x14] sm:$0xf]
    %v211 = vld [vmem:[%s5 + $0x18] sm:$0xf]
    %v212 = vld [vmem:[%s5 + $0x1c] sm:$0xf]
    %v213 = vld [vmem:[%s6] sm:$0xff]
    %v214 = vld [vmem:[%s6 + $0x8] sm:$0xff]
    %v215 = vld [vmem:[%s6 + $0x10] sm:$0xff]
    %v216 = vld [vmem:[%s6 + $0x18] sm:$0xff]
    %v217 = vld [vmem:[%s6 + $0x20] sm:$0xff]
    %v218 = vld [vmem:[%s6 + $0x28] sm:$0xff]
    %v219 = vld [vmem:[%s6 + $0x30] sm:$0xff]
    %v220 = vld [vmem:[%s6 + $0x38] sm:$0xff]
    %v221 = vld [vmem:[%s7] sm:$0x3]
    %v222 = vld [vmem:[%s8] sm:$0xf]
    %v223 = vld [vmem:[%s8 + $0x4] sm:$0xf]
    %v224 = vld [vmem:[%s8 + $0x8] sm:$0xf]
    %v225 = vld [vmem:[%s8 + $0xc] sm:$0xf]
    %v226 = vld [vmem:[%s8 + $0x10] sm:$0xf]
    %v227 = vld [vmem:[%s8 + $0x14] sm:$0xf]
    %v228 = vld [vmem:[%s8 + $0x18] sm:$0xf]
    %v229 = vld [vmem:[%s8 + $0x1c] sm:$0xf]
    %v230 = vld [vmem:[%s8 + $0x20] sm:$0xf]
    %v231 = vld [vmem:[%s8 + $0x24] sm:$0xf]
    %v232 = vld [vmem:[%s8 + $0x28] sm:$0xf]
    %v233 = vld [vmem:[%s8 + $0x2c] sm:$0xf]
    %v234 = vld [vmem:[%s8 + $0x30] sm:$0xf]
    %v235 = vld [vmem:[%s8 + $0x34] sm:$0xf]
    %v236 = vld [vmem:[%s8 + $0x38] sm:$0xf]
    %v237 = vld [vmem:[%s8 + $0x3c] sm:$0xf]
    %v238 = vld [vmem:[%s8 + $0x40] sm:$0xf]
    %v239 = vld [vmem:[%s8 + $0x44] sm:$0xf]
    %v240 = vld [vmem:[%s8 + $0x48] sm:$0xf]
    %v241 = vld [vmem:[%s8 + $0x4c] sm:$0xf]
    %v242 = vld [vmem:[%s8 + $0x50] sm:$0xf]
    %v243 = vld [vmem:[%s8 + $0x54] sm:$0xf]
    %v244 = vld [vmem:[%s8 + $0x58] sm:$0xf]
    %v245 = vld [vmem:[%s8 + $0x5c] sm:$0xf]
    %v246 = vld [vmem:[%s8 + $0x60] sm:$0xf]
    %v247 = vld [vmem:[%s8 + $0x64] sm:$0xf]
    %v248 = vld [vmem:[%s8 + $0x68] sm:$0xf]
    %v249 = vld [vmem:[%s8 + $0x6c] sm:$0xf]
    %v250 = vld [vmem:[%s8 + $0x70] sm:$0xf]
    %v251 = vld [vmem:[%s8 + $0x74] sm:$0xf]
    %v252 = vld [vmem:[%s8 + $0x78] sm:$0xf]
    %v253 = vld [vmem:[%s8 + $0x7c] sm:$0xf]
    %v254 = vld [vmem:[%s9] sm:$0xff]
    %v255 = vld [vmem:[%s9 + $0x8] sm:$0x1]
    %v256 = vpack.c.bf16 %v154, %v153
    %v257 = vperm.slane %v254, 0
    %v266 = vunpack.c.l.b16 %v157
    %v267 = vunpack.c.l.b16 %v158
    %v268 = vunpack.c.l.b16 %v159
    %v269 = vunpack.c.l.b16 %v160
    %v270 = vunpack.c.l.b16 %v161
    %v271 = vunpack.c.l.b16 %v162
    %v272 = vunpack.c.l.b16 %v163
    %v273 = vunpack.c.l.b16 %v164
    %v274 = vpack.c.b16 %v267, %v266
    %v275 = vpack.c.b16 %v269, %v268
    %v276 = vpack.c.b16 %v271, %v270
    %v277 = vpack.c.b16 %v273, %v272
    %v283 = vsel %vm97, %v256, 0
    %285 = vmatpush.bf16.msra.mxu0 0
    %286 = vmatpush.bf16.msra.mxu0 0
    %287 = vmatpush.bf16.msra.mxu0 0
    %288 = vmatpush.bf16.msra.mxu0 0
    %289 = vmatpush.bf16.msra.mxu0 %v277
    %290 = vmatpush.bf16.msra.mxu0 %v276
    %291 = vmatpush.bf16.msra.mxu0 %v275
    %292 = vmatpush.bf16.msra.mxu0 %v274
    %293 = vmatmul.bf16.gmra.mxu0 %v283
    %v294 = vpop.f32.mrf.mxu0
    %v295 = vadd.f32 %v257, %v294
    %v296 = vpop.f32.mrf.mxu0
    %v297 = vadd.f32 %v257, %v296
    %298 = vdwg.mxu0
    %v299 = vperm.slane %v254, 1
    %v308 = vunpack.c.l.b16 %v173
    %v309 = vunpack.c.l.b16 %v174
    %v310 = vunpack.c.l.b16 %v175
    %v311 = vunpack.c.l.b16 %v176
    %v312 = vunpack.c.l.b16 %v177
    %v313 = vunpack.c.l.b16 %v178
    %v314 = vunpack.c.l.b16 %v179
    %v315 = vunpack.c.l.b16 %v180
    %v316 = vpack.c.b16 %v309, %v308
    %v317 = vpack.c.b16 %v311, %v310
    %v318 = vpack.c.b16 %v313, %v312
    %v319 = vpack.c.b16 %v315, %v314
    %324 = vmatpush.bf16.msra.mxu0 0
    %325 = vmatpush.bf16.msra.mxu0 0
    %326 = vmatpush.bf16.msra.mxu0 0
    %327 = vmatpush.bf16.msra.mxu0 0
    %328 = vmatpush.bf16.msra.mxu0 %v319
    %329 = vmatpush.bf16.msra.mxu0 %v318
    %330 = vmatpush.bf16.msra.mxu0 %v317
    %331 = vmatpush.bf16.msra.mxu0 %v316
    %332 = vmatmul.bf16.gmra.mxu0 %v283
    %v333 = vpop.f32.mrf.mxu0
    %v334 = vadd.f32 %v299, %v333
    %v335 = vpop.f32.mrf.mxu0
    %v336 = vadd.f32 %v299, %v335
    %337 = vdwg.mxu0
    %v338 = vperm.slane %v254, 2
    %v347 = vunpack.c.l.b16 %v189
    %v348 = vunpack.c.l.b16 %v190
    %v349 = vunpack.c.l.b16 %v191
    %v350 = vunpack.c.l.b16 %v192
    %v351 = vunpack.c.l.b16 %v193
    %v352 = vunpack.c.l.b16 %v194
    %v353 = vunpack.c.l.b16 %v195
    %v354 = vunpack.c.l.b16 %v196
    %v355 = vpack.c.b16 %v348, %v347
    %v356 = vpack.c.b16 %v350, %v349
    %v357 = vpack.c.b16 %v352, %v351
    %v358 = vpack.c.b16 %v354, %v353
    %363 = vmatpush.bf16.msra.mxu0 0
    %364 = vmatpush.bf16.msra.mxu0 0
    %365 = vmatpush.bf16.msra.mxu0 0
    %366 = vmatpush.bf16.msra.mxu0 0
    %367 = vmatpush.bf16.msra.mxu0 %v358
    %368 = vmatpush.bf16.msra.mxu0 %v357
    %369 = vmatpush.bf16.msra.mxu0 %v356
    %370 = vmatpush.bf16.msra.mxu0 %v355
    %371 = vmatmul.bf16.gmra.mxu0 %v283
    %v372 = vpop.f32.mrf.mxu0
    %v373 = vadd.f32 %v338, %v372
    %v374 = vpop.f32.mrf.mxu0
    %v375 = vadd.f32 %v338, %v374
    %376 = vdwg.mxu0
    %v377 = vpack.c.bf16 %v297, %v295
    %v378 = vpack.c.bf16 %v336, %v334
    %vm379 = vcmask 261120
    %v381 = vsel %vm379, %v377, 0
    %v384 = vsel %vm379, %v378, 0
    %386 = vmatpush.bf16.xpose.msra.mxu0 0
    %387 = vmatpush.bf16.xpose.msra.mxu0 0
    %388 = vmatpush.bf16.xpose.msra.mxu0 0
    %389 = vmatpush.bf16.xpose.msra.mxu0 0
    %390 = vmatpush.bf16.xpose.msra.mxu0 0
    %391 = vmatpush.bf16.xpose.msra.mxu0 0
    %392 = vmatpush.bf16.xpose.msra.mxu0 0
    %393 = vmatpush.bf16.xpose.msra.mxu0 %v384
    %394 = vmatmul.bf16.gmra.mxu0 %v381
    %v395 = vpop.f32.mrf.mxu0
    %v396 = vadd.f32 %v155, %v395
    %v397 = vpop.f32.mrf.mxu0
    %v398 = vadd.f32 %v156, %v397
    %399 = vdwg.mxu0
    %vm400 = vcmask 130048
    %v401 = vsel %vm400, %v396, -inf
    %402 = vmax.xlane.f32.xlu0 %v401
    %v403 = vpop.xlane.xlu0 %402
    %v404 = vsel %vm400, %v398, -inf
    %405 = vmax.xlane.f32.xlu0 %v404
    %v406 = vpop.xlane.xlu0 %405
    %v407 = vsub.f32 %v396, %v403
    %v408 = vsub.f32 %v398, %v406
    %v409 = vmul.f32 %v407, 1.442695
    %v410 = vpow.pop %v409
    %v411 = vmul.f32 %v408, 1.442695
    %v412 = vpow.pop %v411
    %v413 = vsel %vm400, %v410, 0.0
    %414 = vadd.xlane.f32.xlu0 %v413
    %v415 = vpop.xlane.xlu0 %414
    %v416 = vsel %vm400, %v412, 0.0
    %417 = vadd.xlane.f32.xlu0 %v416
    %v418 = vpop.xlane.xlu0 %417
    %v419 = vrcp.pop %v415
    %v420 = vrcp.pop %v418
    %v421 = vmul.f32 %v410, %v419
    %v422 = vmul.f32 %v412, %v420
    %v423 = vpack.c.bf16 %v422, %v421
    %v424 = vpack.c.bf16 %v375, %v373
    %v426 = vsel %vm400, %v423, 0
    %428 = vmatpush.bf16.msra.mxu0 0
    %429 = vmatpush.bf16.msra.mxu0 0
    %430 = vmatpush.bf16.msra.mxu0 0
    %431 = vmatpush.bf16.msra.mxu0 0
    %432 = vmatpush.bf16.msra.mxu0 0
    %433 = vmatpush.bf16.msra.mxu0 0
    %434 = vmatpush.bf16.msra.mxu0 0
    %435 = vmatpush.bf16.msra.mxu0 %v424
    %436 = vmatmul.bf16.gmra.mxu0 %v426
    %v437 = vpop.f32.mrf.mxu0
    %v438 = vadd.f32 0.0, %v437
    %v439 = vpop.f32.mrf.mxu0
    %v440 = vadd.f32 0.0, %v439
    %441 = vdwg.mxu0
    %v442 = vpack.c.bf16 %v440, %v438
    %v451 = vunpack.c.l.b16 %v165
    %v452 = vunpack.c.l.b16 %v166
    %v453 = vunpack.c.l.b16 %v167
    %v454 = vunpack.c.l.b16 %v168
    %v455 = vunpack.c.l.b16 %v169
    %v456 = vunpack.c.l.b16 %v170
    %v457 = vunpack.c.l.b16 %v171
    %v458 = vunpack.c.l.b16 %v172
    %v459 = vpack.c.b16 %v452, %v451
    %v460 = vpack.c.b16 %v454, %v453
    %v461 = vpack.c.b16 %v456, %v455
    %v462 = vpack.c.b16 %v458, %v457
    %468 = vrot.lane.b32.xlu0 %v257, 96
    %v469 = vpop.permute.xlu0 %468
    %471 = vmatpush.bf16.msra.mxu0 0
    %472 = vmatpush.bf16.msra.mxu0 0
    %473 = vmatpush.bf16.msra.mxu0 0
    %474 = vmatpush.bf16.msra.mxu0 0
    %475 = vmatpush.bf16.msra.mxu0 %v462
    %476 = vmatpush.bf16.msra.mxu0 %v461
    %477 = vmatpush.bf16.msra.mxu0 %v460
    %478 = vmatpush.bf16.msra.mxu0 %v459
    %479 = vmatmul.bf16.gmra.mxu0 %v283
    %v480 = vpop.f32.mrf.mxu0
    %v481 = vadd.f32 %v469, %v480
    %v482 = vpop.f32.mrf.mxu0
    %v483 = vadd.f32 %v469, %v482
    %484 = vdwg.mxu0
    %v493 = vunpack.c.l.b16 %v181
    %v494 = vunpack.c.l.b16 %v182
    %v495 = vunpack.c.l.b16 %v183
    %v496 = vunpack.c.l.b16 %v184
    %v497 = vunpack.c.l.b16 %v185
    %v498 = vunpack.c.l.b16 %v186
    %v499 = vunpack.c.l.b16 %v187
    %v500 = vunpack.c.l.b16 %v188
    %v501 = vpack.c.b16 %v494, %v493
    %v502 = vpack.c.b16 %v496, %v495
    %v503 = vpack.c.b16 %v498, %v497
    %v504 = vpack.c.b16 %v500, %v499
    %510 = vrot.lane.b32.xlu0 %v299, 96
    %v511 = vpop.permute.xlu0 %510
    %513 = vmatpush.bf16.msra.mxu0 0
    %514 = vmatpush.bf16.msra.mxu0 0
    %515 = vmatpush.bf16.msra.mxu0 0
    %516 = vmatpush.bf16.msra.mxu0 0
    %517 = vmatpush.bf16.msra.mxu0 %v504
    %518 = vmatpush.bf16.msra.mxu0 %v503
    %519 = vmatpush.bf16.msra.mxu0 %v502
    %520 = vmatpush.bf16.msra.mxu0 %v501
    %521 = vmatmul.bf16.gmra.mxu0 %v283
    %v522 = vpop.f32.mrf.mxu0
    %v523 = vadd.f32 %v511, %v522
    %v524 = vpop.f32.mrf.mxu0
    %v525 = vadd.f32 %v511, %v524
    %526 = vdwg.mxu0
    %v535 = vunpack.c.l.b16 %v197
    %v536 = vunpack.c.l.b16 %v198
    %v537 = vunpack.c.l.b16 %v199
    %v538 = vunpack.c.l.b16 %v200
    %v539 = vunpack.c.l.b16 %v201
    %v540 = vunpack.c.l.b16 %v202
    %v541 = vunpack.c.l.b16 %v203
    %v542 = vunpack.c.l.b16 %v204
    %v543 = vpack.c.b16 %v536, %v535
    %v544 = vpack.c.b16 %v538, %v537
    %v545 = vpack.c.b16 %v540, %v539
    %v546 = vpack.c.b16 %v542, %v541
    %552 = vrot.lane.b32.xlu0 %v338, 96
    %v553 = vpop.permute.xlu0 %552
    %555 = vmatpush.bf16.msra.mxu0 0
    %556 = vmatpush.bf16.msra.mxu0 0
    %557 = vmatpush.bf16.msra.mxu0 0
    %558 = vmatpush.bf16.msra.mxu0 0
    %559 = vmatpush.bf16.msra.mxu0 %v546
    %560 = vmatpush.bf16.msra.mxu0 %v545
    %561 = vmatpush.bf16.msra.mxu0 %v544
    %562 = vmatpush.bf16.msra.mxu0 %v543
    %563 = vmatmul.bf16.gmra.mxu0 %v283
    %v564 = vpop.f32.mrf.mxu0
    %v565 = vadd.f32 %v553, %v564
    %v566 = vpop.f32.mrf.mxu0
    %v567 = vadd.f32 %v553, %v566
    %568 = vdwg.mxu0
    %v569 = vpack.c.bf16 %v483, %v481
    %v570 = vpack.c.bf16 %v525, %v523
    %v572 = vsel %vm379, %v569, 0
    %v575 = vsel %vm379, %v570, 0
    %577 = vmatpush.bf16.xpose.msra.mxu0 0
    %578 = vmatpush.bf16.xpose.msra.mxu0 0
    %579 = vmatpush.bf16.xpose.msra.mxu0 0
    %580 = vmatpush.bf16.xpose.msra.mxu0 0
    %581 = vmatpush.bf16.xpose.msra.mxu0 0
    %582 = vmatpush.bf16.xpose.msra.mxu0 0
    %583 = vmatpush.bf16.xpose.msra.mxu0 0
    %584 = vmatpush.bf16.xpose.msra.mxu0 %v575
    %585 = vmatmul.bf16.gmra.mxu0 %v572
    %v586 = vpop.f32.mrf.mxu0
    %v587 = vadd.f32 %v155, %v586
    %v588 = vpop.f32.mrf.mxu0
    %v589 = vadd.f32 %v156, %v588
    %590 = vdwg.mxu0
    %v591 = vsel %vm400, %v587, -inf
    %592 = vmax.xlane.f32.xlu0 %v591
    %v593 = vpop.xlane.xlu0 %592
    %v594 = vsel %vm400, %v589, -inf
    %595 = vmax.xlane.f32.xlu0 %v594
    %v596 = vpop.xlane.xlu0 %595
    %v597 = vsub.f32 %v587, %v593
    %v598 = vsub.f32 %v589, %v596
    %v599 = vmul.f32 %v597, 1.442695
    %v600 = vpow.pop %v599
    %v601 = vmul.f32 %v598, 1.442695
    %v602 = vpow.pop %v601
    %v603 = vsel %vm400, %v600, 0.0
    %604 = vadd.xlane.f32.xlu0 %v603
    %v605 = vpop.xlane.xlu0 %604
    %v606 = vsel %vm400, %v602, 0.0
    %607 = vadd.xlane.f32.xlu0 %v606
    %v608 = vpop.xlane.xlu0 %607
    %v609 = vrcp.pop %v605
    %v610 = vrcp.pop %v608
    %v611 = vmul.f32 %v600, %v609
    %v612 = vmul.f32 %v602, %v610
    %v613 = vpack.c.bf16 %v612, %v611
    %v614 = vpack.c.bf16 %v567, %v565
    %v616 = vsel %vm400, %v613, 0
    %618 = vmatpush.bf16.msra.mxu0 0
    %619 = vmatpush.bf16.msra.mxu0 0
    %620 = vmatpush.bf16.msra.mxu0 0
    %621 = vmatpush.bf16.msra.mxu0 0
    %622 = vmatpush.bf16.msra.mxu0 0
    %623 = vmatpush.bf16.msra.mxu0 0
    %624 = vmatpush.bf16.msra.mxu0 0
    %625 = vmatpush.bf16.msra.mxu0 %v614
    %626 = vmatmul.bf16.gmra.mxu0 %v616
    %v627 = vpop.f32.mrf.mxu0
    %v628 = vadd.f32 0.0, %v627
    %v629 = vpop.f32.mrf.mxu0
    %v630 = vadd.f32 0.0, %v629
    %631 = vdwg.mxu0
    %v632 = vpack.c.bf16 %v630, %v628
    %v637 = vunpack.c.l.b16 %v209
    %v638 = vunpack.c.l.b16 %v210
    %v639 = vunpack.c.l.b16 %v211
    %v640 = vunpack.c.l.b16 %v212
    %v641 = vpack.c.b16 %v638, %v637
    %v642 = vpack.c.b16 %v640, %v639
    %v646 = vsel %vm379, %v632, 0
    %648 = vmatpush.bf16.msra.mxu0 0
    %649 = vmatpush.bf16.msra.mxu0 0
    %650 = vmatpush.bf16.msra.mxu0 0
    %651 = vmatpush.bf16.msra.mxu0 0
    %652 = vmatpush.bf16.msra.mxu0 0
    %653 = vmatpush.bf16.msra.mxu0 0
    %654 = vmatpush.bf16.msra.mxu0 %v642
    %655 = vmatpush.bf16.msra.mxu0 %v641
    %656 = vmatmul.bf16.gmra.mxu0 %v646
    %v657 = vpop.f32.mrf.mxu0
    %v658 = vadd.f32 0.0, %v657
    %v659 = vpop.f32.mrf.mxu0
    %v660 = vadd.f32 0.0, %v659
    %661 = vdwg.mxu0
    %v666 = vunpack.c.l.b16 %v205
    %v667 = vunpack.c.l.b16 %v206
    %v668 = vunpack.c.l.b16 %v207
    %v669 = vunpack.c.l.b16 %v208
    %v670 = vpack.c.b16 %v667, %v666
    %v671 = vpack.c.b16 %v669, %v668
    %v675 = vsel %vm379, %v442, 0
    %677 = vmatpush.bf16.msra.mxu0 0
    %678 = vmatpush.bf16.msra.mxu0 0
    %679 = vmatpush.bf16.msra.mxu0 0
    %680 = vmatpush.bf16.msra.mxu0 0
    %681 = vmatpush.bf16.msra.mxu0 0
    %682 = vmatpush.bf16.msra.mxu0 0
    %683 = vmatpush.bf16.msra.mxu0 %v671
    %684 = vmatpush.bf16.msra.mxu0 %v670
    %685 = vmatmul.bf16.gmra.mxu0 %v675
    %v686 = vpop.f32.mrf.mxu0
    %v687 = vadd.f32 %v658, %v686
    %v688 = vpop.f32.mrf.mxu0
    %v689 = vadd.f32 %v660, %v688
    %690 = vdwg.mxu0
    %v691 = vperm.slane %v254, 3
    %v692 = vadd.f32 %v687, %v691
    %v693 = vadd.f32 %v689, %v691
    %v694 = vadd.f32 %v153, %v692
    %v695 = vadd.f32 %v154, %v693
    %v696 = vsel %vm97, %v694, 0.0
    %697 = vadd.xlane.f32.xlu0 %v696
    %v698 = vpop.xlane.xlu0 %697
    %v699 = vsel %vm97, %v695, 0.0
    %700 = vadd.xlane.f32.xlu0 %v699
    %v701 = vpop.xlane.xlu0 %700
    %v702 = vmul.f32 %v698, %v110
    %v703 = vmul.f32 %v701, %v110
    %v704 = vsub.f32 %v694, %v702
    %v705 = vsub.f32 %v695, %v703
    %v706 = vmul.f32 %v704, %v704
    %v707 = vmul.f32 %v705, %v705
    %v708 = vsel %vm97, %v706, 0.0
    %709 = vadd.xlane.f32.xlu0 %v708
    %v710 = vpop.xlane.xlu0 %709
    %v711 = vsel %vm97, %v707, 0.0
    %712 = vadd.xlane.f32.xlu0 %v711
    %v713 = vpop.xlane.xlu0 %712
    %v714 = vmul.f32 %v710, %v110
    %v715 = vmul.f32 %v713, %v110
    %v716 = vadd.f32 %v714, 1e-05
    %v717 = vadd.f32 %v715, 1e-05
    %v718 = vrsqrt.pop %v716
    %v719 = vmul.f32 %v718, %v716
    %v720 = vmul.f32 %v719, %v718
    %v721 = vmul.f32 0.5, %v720
    %v722 = vsub.f32 1.5, %v721
    %v723 = vmul.f32 %v718, %v722
    %vm724 = vweird.f32 %v716
    %vm725 = vweird.f32 %v718
    %vm726 = vmor %vm724, %vm725
    %v727 = vsel %vm726, %v718, %v723
    %v728 = vrsqrt.pop %v717
    %v729 = vmul.f32 %v728, %v717
    %v730 = vmul.f32 %v729, %v728
    %v731 = vmul.f32 0.5, %v730
    %v732 = vsub.f32 1.5, %v731
    %v733 = vmul.f32 %v728, %v732
    %vm734 = vweird.f32 %v717
    %vm735 = vweird.f32 %v728
    %vm736 = vmor %vm734, %vm735
    %v737 = vsel %vm736, %v728, %v733
    %v738 = vmul.f32 %v704, %v727
    %v739 = vmul.f32 %v705, %v737
    %v740 = vperm.slane %v254, 4
    %v741 = vmul.f32 %v738, %v740
    %v742 = vmul.f32 %v739, %v740
    %v743 = vperm.slane %v254, 5
    %v744 = vadd.f32 %v741, %v743
    %v745 = vadd.f32 %v742, %v743
    %v746 = vpack.c.bf16 %v745, %v744
    %v748 = vperm.slane %v221, 0
    %v749 = vperm.slane %v221, 1
    %v760 = vunpack.c.l.b16 %v213
    %v761 = vunpack.c.h.b16 %v213
    %v762 = vunpack.c.l.b16 %v214
    %v763 = vunpack.c.h.b16 %v214
    %v764 = vunpack.c.l.b16 %v215
    %v765 = vunpack.c.h.b16 %v215
    %v766 = vunpack.c.l.b16 %v216
    %v767 = vunpack.c.h.b16 %v216
    %v768 = vunpack.c.l.b16 %v217
    %v769 = vunpack.c.h.b16 %v217
    %v770 = vunpack.c.l.b16 %v218
    %v771 = vunpack.c.h.b16 %v218
    %v772 = vunpack.c.l.b16 %v219
    %v773 = vunpack.c.h.b16 %v219
    %v774 = vunpack.c.l.b16 %v220
    %v775 = vunpack.c.h.b16 %v220
    %v776 = vpack.c.b16 %v762, %v760
    %v777 = vpack.c.b16 %v763, %v761
    %v778 = vpack.c.b16 %v766, %v764
    %v779 = vpack.c.b16 %v767, %v765
    %v780 = vpack.c.b16 %v770, %v768
    %v781 = vpack.c.b16 %v771, %v769
    %v782 = vpack.c.b16 %v774, %v772
    %v783 = vpack.c.b16 %v775, %v773
    %v793 = vsel %vm97, %v746, 0
    %795 = vmatpush.bf16.msra.mxu0 0
    %796 = vmatpush.bf16.msra.mxu0 0
    %797 = vmatpush.bf16.msra.mxu0 0
    %798 = vmatpush.bf16.msra.mxu0 0
    %799 = vmatpush.bf16.msra.mxu0 %v782
    %800 = vmatpush.bf16.msra.mxu0 %v780
    %801 = vmatpush.bf16.msra.mxu0 %v778
    %802 = vmatpush.bf16.msra.mxu0 %v776
    %803 = vmatmul.bf16.gmra.mxu0 %v793
    %v804 = vpop.f32.mrf.mxu0
    %v805 = vadd.f32 %v748, %v804
    %v806 = vpop.f32.mrf.mxu0
    %v807 = vadd.f32 %v748, %v806
    %808 = vdwg.mxu0
    %809 = vmatpush.bf16.msra.mxu0 0
    %810 = vmatpush.bf16.msra.mxu0 0
    %811 = vmatpush.bf16.msra.mxu0 0
    %812 = vmatpush.bf16.msra.mxu0 0
    %813 = vmatpush.bf16.msra.mxu0 %v783
    %814 = vmatpush.bf16.msra.mxu0 %v781
    %815 = vmatpush.bf16.msra.mxu0 %v779
    %816 = vmatpush.bf16.msra.mxu0 %v777
    %817 = vmatmul.bf16.gmra.mxu0 %v793
    %v818 = vpop.f32.mrf.mxu0
    %v819 = vadd.f32 %v749, %v818
    %v820 = vpop.f32.mrf.mxu0
    %v821 = vadd.f32 %v749, %v820
    %822 = vdwg.mxu0
    %v823 = vmax.f32 %v805, 0.0
    %v824 = vmax.f32 %v819, 0.0
    %v825 = vmax.f32 %v807, 0.0
    %v826 = vmax.f32 %v821, 0.0
    %v827 = vpack.c.bf16 %v825, %v823
    %v828 = vpack.c.bf16 %v826, %v824
    %v829 = vperm.slane %v255, 0
    %v862 = vunpack.c.l.b16 %v222
    %v863 = vunpack.c.l.b16 %v223
    %v864 = vunpack.c.l.b16 %v224
    %v865 = vunpack.c.l.b16 %v225
    %v866 = vunpack.c.l.b16 %v226
    %v867 = vunpack.c.l.b16 %v227
    %v868 = vunpack.c.l.b16 %v228
    %v869 = vunpack.c.l.b16 %v229
    %v870 = vunpack.c.l.b16 %v230
    %v871 = vunpack.c.l.b16 %v231
    %v872 = vunpack.c.l.b16 %v232
    %v873 = vunpack.c.l.b16 %v233
    %v874 = vunpack.c.l.b16 %v234
    %v875 = vunpack.c.l.b16 %v235
    %v876 = vunpack.c.l.b16 %v236
    %v877 = vunpack.c.l.b16 %v237
    %v878 = vunpack.c.l.b16 %v238
    %v879 = vunpack.c.l.b16 %v239
    %v880 = vunpack.c.l.b16 %v240
    %v881 = vunpack.c.l.b16 %v241
    %v882 = vunpack.c.l.b16 %v242
    %v883 = vunpack.c.l.b16 %v243
    %v884 = vunpack.c.l.b16 %v244
    %v885 = vunpack.c.l.b16 %v245
    %v886 = vunpack.c.l.b16 %v246
    %v887 = vunpack.c.l.b16 %v247
    %v888 = vunpack.c.l.b16 %v248
    %v889 = vunpack.c.l.b16 %v249
    %v890 = vunpack.c.l.b16 %v250
    %v891 = vunpack.c.l.b16 %v251
    %v892 = vunpack.c.l.b16 %v252
    %v893 = vunpack.c.l.b16 %v253
    %v894 = vpack.c.b16 %v863, %v862
    %v895 = vpack.c.b16 %v865, %v864
    %v896 = vpack.c.b16 %v867, %v866
    %v897 = vpack.c.b16 %v869, %v868
    %v898 = vpack.c.b16 %v871, %v870
    %v899 = vpack.c.b16 %v873, %v872
    %v900 = vpack.c.b16 %v875, %v874
    %v901 = vpack.c.b16 %v877, %v876
    %v902 = vpack.c.b16 %v879, %v878
    %v903 = vpack.c.b16 %v881, %v880
    %v904 = vpack.c.b16 %v883, %v882
    %v905 = vpack.c.b16 %v885, %v884
    %v906 = vpack.c.b16 %v887, %v886
    %v907 = vpack.c.b16 %v889, %v888
    %v908 = vpack.c.b16 %v891, %v890
    %v909 = vpack.c.b16 %v893, %v892
    %926 = vmatpush.bf16.msra.mxu0 %v901
    %927 = vmatpush.bf16.msra.mxu0 %v900
    %928 = vmatpush.bf16.msra.mxu0 %v899
    %929 = vmatpush.bf16.msra.mxu0 %v898
    %930 = vmatpush.bf16.msra.mxu0 %v897
    %931 = vmatpush.bf16.msra.mxu0 %v896
    %932 = vmatpush.bf16.msra.mxu0 %v895
    %933 = vmatpush.bf16.msra.mxu0 %v894
    %934 = vmatmul.bf16.gmra.mxu0 %v827
    %v935 = vpop.f32.mrf.mxu0
    %v936 = vadd.f32 %v829, %v935
    %v937 = vpop.f32.mrf.mxu0
    %v938 = vadd.f32 %v829, %v937
    %939 = vdwg.mxu0
    %940 = vmatpush.bf16.msra.mxu0 %v909
    %941 = vmatpush.bf16.msra.mxu0 %v908
    %942 = vmatpush.bf16.msra.mxu0 %v907
    %943 = vmatpush.bf16.msra.mxu0 %v906
    %944 = vmatpush.bf16.msra.mxu0 %v905
    %945 = vmatpush.bf16.msra.mxu0 %v904
    %946 = vmatpush.bf16.msra.mxu0 %v903
    %947 = vmatpush.bf16.msra.mxu0 %v902
    %948 = vmatmul.bf16.gmra.mxu0 %v828
    %v949 = vpop.f32.mrf.mxu0
    %v950 = vadd.f32 %v936, %v949
    %v951 = vpop.f32.mrf.mxu0
    %v952 = vadd.f32 %v938, %v951
    %953 = vdwg.mxu0
    %v954 = vadd.f32 %v744, %v950
    %v955 = vadd.f32 %v745, %v952
    %v956 = vsel %vm97, %v954, 0.0
    %957 = vadd.xlane.f32.xlu0 %v956
    %v958 = vpop.xlane.xlu0 %957
    %v959 = vsel %vm97, %v955, 0.0
    %960 = vadd.xlane.f32.xlu0 %v959
    %v961 = vpop.xlane.xlu0 %960
    %v962 = vmul.f32 %v958, %v110
    %v963 = vmul.f32 %v961, %v110
    %v964 = vsub.f32 %v954, %v962
    %v965 = vsub.f32 %v955, %v963
    %v966 = vmul.f32 %v964, %v964
    %v967 = vmul.f32 %v965, %v965
    %v968 = vsel %vm97, %v966, 0.0
    %969 = vadd.xlane.f32.xlu0 %v968
    %v970 = vpop.xlane.xlu0 %969
    %v971 = vsel %vm97, %v967, 0.0
    %972 = vadd.xlane.f32.xlu0 %v971
    %v973 = vpop.xlane.xlu0 %972
    %v974 = vmul.f32 %v970, %v110
    %v975 = vmul.f32 %v973, %v110
    %v976 = vadd.f32 %v974, 1e-05
    %v977 = vadd.f32 %v975, 1e-05
    %v978 = vrsqrt.pop %v976
    %v979 = vmul.f32 %v978, %v976
    %v980 = vmul.f32 %v979, %v978
    %v981 = vmul.f32 0.5, %v980
    %v982 = vsub.f32 1.5, %v981
    %v983 = vmul.f32 %v978, %v982
    %vm984 = vweird.f32 %v976
    %vm985 = vweird.f32 %v978
    %vm986 = vmor %vm984, %vm985
    %v987 = vsel %vm986, %v978, %v983
    %v988 = vrsqrt.pop %v977
    %v989 = vmul.f32 %v988, %v977
    %v990 = vmul.f32 %v989, %v988
    %v991 = vmul.f32 0.5, %v990
    %v992 = vsub.f32 1.5, %v991
    %v993 = vmul.f32 %v988, %v992
    %vm994 = vweird.f32 %v977
    %vm995 = vweird.f32 %v988
    %vm996 = vmor %vm994, %vm995
    %v997 = vsel %vm996, %v988, %v993
    %v998 = vmul.f32 %v964, %v987
    %v999 = vmul.f32 %v965, %v997
    %v1000 = vperm.slane %v254, 6
    %v1001 = vmul.f32 %v998, %v1000
    %v1002 = vmul.f32 %v999, %v1000
    %v1003 = vperm.slane %v254, 7
    %v1004 = vadd.f32 %v1001, %v1003
    %v1005 = vadd.f32 %v1002, %v1003
    %s1006 = scalar_lea.vmem %s2, 64
    %v1007 = vld [vmem:[%s1006] sm:$0xf]
    %v1008 = vld [vmem:[%s1006 + $0x4] sm:$0xf]
    %v1009 = vld [vmem:[%s1006 + $0x8] sm:$0xf]
    %v1010 = vld [vmem:[%s1006 + $0xc] sm:$0xf]
    %v1011 = vld [vmem:[%s1006 + $0x10] sm:$0xf]
    %v1012 = vld [vmem:[%s1006 + $0x14] sm:$0xf]
    %v1013 = vld [vmem:[%s1006 + $0x18] sm:$0xf]
    %v1014 = vld [vmem:[%s1006 + $0x1c] sm:$0xf]
    %v1015 = vld [vmem:[%s1006 + $0x20] sm:$0xf]
    %v1016 = vld [vmem:[%s1006 + $0x24] sm:$0xf]
    %v1017 = vld [vmem:[%s1006 + $0x28] sm:$0xf]
    %v1018 = vld [vmem:[%s1006 + $0x2c] sm:$0xf]
    %v1019 = vld [vmem:[%s1006 + $0x30] sm:$0xf]
    %v1020 = vld [vmem:[%s1006 + $0x34] sm:$0xf]
    %v1021 = vld [vmem:[%s1006 + $0x38] sm:$0xf]
    %v1022 = vld [vmem:[%s1006 + $0x3c] sm:$0xf]
    %s1023 = scalar_lea.vmem %s3, 64
    %v1024 = vld [vmem:[%s1023] sm:$0xf]
    %v1025 = vld [vmem:[%s1023 + $0x4] sm:$0xf]
    %v1026 = vld [vmem:[%s1023 + $0x8] sm:$0xf]
    %v1027 = vld [vmem:[%s1023 + $0xc] sm:$0xf]
    %v1028 = vld [vmem:[%s1023 + $0x10] sm:$0xf]
    %v1029 = vld [vmem:[%s1023 + $0x14] sm:$0xf]
    %v1030 = vld [vmem:[%s1023 + $0x18] sm:$0xf]
    %v1031 = vld [vmem:[%s1023 + $0x1c] sm:$0xf]
    %v1032 = vld [vmem:[%s1023 + $0x20] sm:$0xf]
    %v1033 = vld [vmem:[%s1023 + $0x24] sm:$0xf]
    %v1034 = vld [vmem:[%s1023 + $0x28] sm:$0xf]
    %v1035 = vld [vmem:[%s1023 + $0x2c] sm:$0xf]
    %v1036 = vld [vmem:[%s1023 + $0x30] sm:$0xf]
    %v1037 = vld [vmem:[%s1023 + $0x34] sm:$0xf]
    %v1038 = vld [vmem:[%s1023 + $0x38] sm:$0xf]
    %v1039 = vld [vmem:[%s1023 + $0x3c] sm:$0xf]
    %s1040 = scalar_lea.vmem %s4, 64
    %v1041 = vld [vmem:[%s1040] sm:$0xf]
    %v1042 = vld [vmem:[%s1040 + $0x4] sm:$0xf]
    %v1043 = vld [vmem:[%s1040 + $0x8] sm:$0xf]
    %v1044 = vld [vmem:[%s1040 + $0xc] sm:$0xf]
    %v1045 = vld [vmem:[%s1040 + $0x10] sm:$0xf]
    %v1046 = vld [vmem:[%s1040 + $0x14] sm:$0xf]
    %v1047 = vld [vmem:[%s1040 + $0x18] sm:$0xf]
    %v1048 = vld [vmem:[%s1040 + $0x1c] sm:$0xf]
    %v1049 = vld [vmem:[%s1040 + $0x20] sm:$0xf]
    %v1050 = vld [vmem:[%s1040 + $0x24] sm:$0xf]
    %v1051 = vld [vmem:[%s1040 + $0x28] sm:$0xf]
    %v1052 = vld [vmem:[%s1040 + $0x2c] sm:$0xf]
    %v1053 = vld [vmem:[%s1040 + $0x30] sm:$0xf]
    %v1054 = vld [vmem:[%s1040 + $0x34] sm:$0xf]
    %v1055 = vld [vmem:[%s1040 + $0x38] sm:$0xf]
    %v1056 = vld [vmem:[%s1040 + $0x3c] sm:$0xf]
    %s1057 = scalar_lea.vmem %s5, 32
    %v1058 = vld [vmem:[%s1057] sm:$0xf]
    %v1059 = vld [vmem:[%s1057 + $0x4] sm:$0xf]
    %v1060 = vld [vmem:[%s1057 + $0x8] sm:$0xf]
    %v1061 = vld [vmem:[%s1057 + $0xc] sm:$0xf]
    %v1062 = vld [vmem:[%s1057 + $0x10] sm:$0xf]
    %v1063 = vld [vmem:[%s1057 + $0x14] sm:$0xf]
    %v1064 = vld [vmem:[%s1057 + $0x18] sm:$0xf]
    %v1065 = vld [vmem:[%s1057 + $0x1c] sm:$0xf]
    %s1066 = scalar_lea.vmem %s6, 64
    %v1067 = vld [vmem:[%s1066] sm:$0xff]
    %v1068 = vld [vmem:[%s1066 + $0x8] sm:$0xff]
    %v1069 = vld [vmem:[%s1066 + $0x10] sm:$0xff]
    %v1070 = vld [vmem:[%s1066 + $0x18] sm:$0xff]
    %v1071 = vld [vmem:[%s1066 + $0x20] sm:$0xff]
    %v1072 = vld [vmem:[%s1066 + $0x28] sm:$0xff]
    %v1073 = vld [vmem:[%s1066 + $0x30] sm:$0xff]
    %v1074 = vld [vmem:[%s1066 + $0x38] sm:$0xff]
    %s1075 = scalar_lea.vmem %s7, 2
    %v1076 = vld [vmem:[%s1075] sm:$0x3]
    %s1077 = scalar_lea.vmem %s8, 128
    %v1078 = vld [vmem:[%s1077] sm:$0xf]
    %v1079 = vld [vmem:[%s1077 + $0x4] sm:$0xf]
    %v1080 = vld [vmem:[%s1077 + $0x8] sm:$0xf]
    %v1081 = vld [vmem:[%s1077 + $0xc] sm:$0xf]
    %v1082 = vld [vmem:[%s1077 + $0x10] sm:$0xf]
    %v1083 = vld [vmem:[%s1077 + $0x14] sm:$0xf]
    %v1084 = vld [vmem:[%s1077 + $0x18] sm:$0xf]
    %v1085 = vld [vmem:[%s1077 + $0x1c] sm:$0xf]
    %v1086 = vld [vmem:[%s1077 + $0x20] sm:$0xf]
    %v1087 = vld [vmem:[%s1077 + $0x24] sm:$0xf]
    %v1088 = vld [vmem:[%s1077 + $0x28] sm:$0xf]
    %v1089 = vld [vmem:[%s1077 + $0x2c] sm:$0xf]
    %v1090 = vld [vmem:[%s1077 + $0x30] sm:$0xf]
    %v1091 = vld [vmem:[%s1077 + $0x34] sm:$0xf]
    %v1092 = vld [vmem:[%s1077 + $0x38] sm:$0xf]
    %v1093 = vld [vmem:[%s1077 + $0x3c] sm:$0xf]
    %v1094 = vld [vmem:[%s1077 + $0x40] sm:$0xf]
    %v1095 = vld [vmem:[%s1077 + $0x44] sm:$0xf]
    %v1096 = vld [vmem:[%s1077 + $0x48] sm:$0xf]
    %v1097 = vld [vmem:[%s1077 + $0x4c] sm:$0xf]
    %v1098 = vld [vmem:[%s1077 + $0x50] sm:$0xf]
    %v1099 = vld [vmem:[%s1077 + $0x54] sm:$0xf]
    %v1100 = vld [vmem:[%s1077 + $0x58] sm:$0xf]
    %v1101 = vld [vmem:[%s1077 + $0x5c] sm:$0xf]
    %v1102 = vld [vmem:[%s1077 + $0x60] sm:$0xf]
    %v1103 = vld [vmem:[%s1077 + $0x64] sm:$0xf]
    %v1104 = vld [vmem:[%s1077 + $0x68] sm:$0xf]
    %v1105 = vld [vmem:[%s1077 + $0x6c] sm:$0xf]
    %v1106 = vld [vmem:[%s1077 + $0x70] sm:$0xf]
    %v1107 = vld [vmem:[%s1077 + $0x74] sm:$0xf]
    %v1108 = vld [vmem:[%s1077 + $0x78] sm:$0xf]
    %v1109 = vld [vmem:[%s1077 + $0x7c] sm:$0xf]
    %s1110 = scalar_lea.vmem %s9, 16
    %v1111 = vld [vmem:[%s1110] sm:$0xff]
    %v1112 = vld [vmem:[%s1110 + $0x8] sm:$0x1]
    %v1113 = vpack.c.bf16 %v1005, %v1004
    %v1114 = vperm.slane %v1111, 0
    %v1123 = vunpack.c.l.b16 %v1007
    %v1124 = vunpack.c.l.b16 %v1008
    %v1125 = vunpack.c.l.b16 %v1009
    %v1126 = vunpack.c.l.b16 %v1010
    %v1127 = vunpack.c.l.b16 %v1011
    %v1128 = vunpack.c.l.b16 %v1012
    %v1129 = vunpack.c.l.b16 %v1013
    %v1130 = vunpack.c.l.b16 %v1014
    %v1131 = vpack.c.b16 %v1124, %v1123
    %v1132 = vpack.c.b16 %v1126, %v1125
    %v1133 = vpack.c.b16 %v1128, %v1127
    %v1134 = vpack.c.b16 %v1130, %v1129
    %v1140 = vsel %vm97, %v1113, 0
    %1142 = vmatpush.bf16.msra.mxu0 0
    %1143 = vmatpush.bf16.msra.mxu0 0
    %1144 = vmatpush.bf16.msra.mxu0 0
    %1145 = vmatpush.bf16.msra.mxu0 0
    %1146 = vmatpush.bf16.msra.mxu0 %v1134
    %1147 = vmatpush.bf16.msra.mxu0 %v1133
    %1148 = vmatpush.bf16.msra.mxu0 %v1132
    %1149 = vmatpush.bf16.msra.mxu0 %v1131
    %1150 = vmatmul.bf16.gmra.mxu0 %v1140
    %v1151 = vpop.f32.mrf.mxu0
    %v1152 = vadd.f32 %v1114, %v1151
    %v1153 = vpop.f32.mrf.mxu0
    %v1154 = vadd.f32 %v1114, %v1153
    %1155 = vdwg.mxu0
    %v1156 = vperm.slane %v1111, 1
    %v1165 = vunpack.c.l.b16 %v1024
    %v1166 = vunpack.c.l.b16 %v1025
    %v1167 = vunpack.c.l.b16 %v1026
    %v1168 = vunpack.c.l.b16 %v1027
    %v1169 = vunpack.c.l.b16 %v1028
    %v1170 = vunpack.c.l.b16 %v1029
    %v1171 = vunpack.c.l.b16 %v1030
    %v1172 = vunpack.c.l.b16 %v1031
    %v1173 = vpack.c.b16 %v1166, %v1165
    %v1174 = vpack.c.b16 %v1168, %v1167
    %v1175 = vpack.c.b16 %v1170, %v1169
    %v1176 = vpack.c.b16 %v1172, %v1171
    %1181 = vmatpush.bf16.msra.mxu0 0
    %1182 = vmatpush.bf16.msra.mxu0 0
    %1183 = vmatpush.bf16.msra.mxu0 0
    %1184 = vmatpush.bf16.msra.mxu0 0
    %1185 = vmatpush.bf16.msra.mxu0 %v1176
    %1186 = vmatpush.bf16.msra.mxu0 %v1175
    %1187 = vmatpush.bf16.msra.mxu0 %v1174
    %1188 = vmatpush.bf16.msra.mxu0 %v1173
    %1189 = vmatmul.bf16.gmra.mxu0 %v1140
    %v1190 = vpop.f32.mrf.mxu0
    %v1191 = vadd.f32 %v1156, %v1190
    %v1192 = vpop.f32.mrf.mxu0
    %v1193 = vadd.f32 %v1156, %v1192
    %1194 = vdwg.mxu0
    %v1195 = vperm.slane %v1111, 2
    %v1204 = vunpack.c.l.b16 %v1041
    %v1205 = vunpack.c.l.b16 %v1042
    %v1206 = vunpack.c.l.b16 %v1043
    %v1207 = vunpack.c.l.b16 %v1044
    %v1208 = vunpack.c.l.b16 %v1045
    %v1209 = vunpack.c.l.b16 %v1046
    %v1210 = vunpack.c.l.b16 %v1047
    %v1211 = vunpack.c.l.b16 %v1048
    %v1212 = vpack.c.b16 %v1205, %v1204
    %v1213 = vpack.c.b16 %v1207, %v1206
    %v1214 = vpack.c.b16 %v1209, %v1208
    %v1215 = vpack.c.b16 %v1211, %v1210
    %1220 = vmatpush.bf16.msra.mxu0 0
    %1221 = vmatpush.bf16.msra.mxu0 0
    %1222 = vmatpush.bf16.msra.mxu0 0
    %1223 = vmatpush.bf16.msra.mxu0 0
    %1224 = vmatpush.bf16.msra.mxu0 %v1215
    %1225 = vmatpush.bf16.msra.mxu0 %v1214
    %1226 = vmatpush.bf16.msra.mxu0 %v1213
    %1227 = vmatpush.bf16.msra.mxu0 %v1212
    %1228 = vmatmul.bf16.gmra.mxu0 %v1140
    %v1229 = vpop.f32.mrf.mxu0
    %v1230 = vadd.f32 %v1195, %v1229
    %v1231 = vpop.f32.mrf.mxu0
    %v1232 = vadd.f32 %v1195, %v1231
    %1233 = vdwg.mxu0
    %v1234 = vpack.c.bf16 %v1154, %v1152
    %v1235 = vpack.c.bf16 %v1193, %v1191
    %v1237 = vsel %vm379, %v1234, 0
    %v1240 = vsel %vm379, %v1235, 0
    %1242 = vmatpush.bf16.xpose.msra.mxu0 0
    %1243 = vmatpush.bf16.xpose.msra.mxu0 0
    %1244 = vmatpush.bf16.xpose.msra.mxu0 0
    %1245 = vmatpush.bf16.xpose.msra.mxu0 0
    %1246 = vmatpush.bf16.xpose.msra.mxu0 0
    %1247 = vmatpush.bf16.xpose.msra.mxu0 0
    %1248 = vmatpush.bf16.xpose.msra.mxu0 0
    %1249 = vmatpush.bf16.xpose.msra.mxu0 %v1240
    %1250 = vmatmul.bf16.gmra.mxu0 %v1237
    %v1251 = vpop.f32.mrf.mxu0
    %v1252 = vadd.f32 %v155, %v1251
    %v1253 = vpop.f32.mrf.mxu0
    %v1254 = vadd.f32 %v156, %v1253
    %1255 = vdwg.mxu0
    %v1256 = vsel %vm400, %v1252, -inf
    %1257 = vmax.xlane.f32.xlu0 %v1256
    %v1258 = vpop.xlane.xlu0 %1257
    %v1259 = vsel %vm400, %v1254, -inf
    %1260 = vmax.xlane.f32.xlu0 %v1259
    %v1261 = vpop.xlane.xlu0 %1260
    %v1262 = vsub.f32 %v1252, %v1258
    %v1263 = vsub.f32 %v1254, %v1261
    %v1264 = vmul.f32 %v1262, 1.442695
    %v1265 = vpow.pop %v1264
    %v1266 = vmul.f32 %v1263, 1.442695
    %v1267 = vpow.pop %v1266
    %v1268 = vsel %vm400, %v1265, 0.0
    %1269 = vadd.xlane.f32.xlu0 %v1268
    %v1270 = vpop.xlane.xlu0 %1269
    %v1271 = vsel %vm400, %v1267, 0.0
    %1272 = vadd.xlane.f32.xlu0 %v1271
    %v1273 = vpop.xlane.xlu0 %1272
    %v1274 = vrcp.pop %v1270
    %v1275 = vrcp.pop %v1273
    %v1276 = vmul.f32 %v1265, %v1274
    %v1277 = vmul.f32 %v1267, %v1275
    %v1278 = vpack.c.bf16 %v1277, %v1276
    %v1279 = vpack.c.bf16 %v1232, %v1230
    %v1281 = vsel %vm400, %v1278, 0
    %1283 = vmatpush.bf16.msra.mxu0 0
    %1284 = vmatpush.bf16.msra.mxu0 0
    %1285 = vmatpush.bf16.msra.mxu0 0
    %1286 = vmatpush.bf16.msra.mxu0 0
    %1287 = vmatpush.bf16.msra.mxu0 0
    %1288 = vmatpush.bf16.msra.mxu0 0
    %1289 = vmatpush.bf16.msra.mxu0 0
    %1290 = vmatpush.bf16.msra.mxu0 %v1279
    %1291 = vmatmul.bf16.gmra.mxu0 %v1281
    %v1292 = vpop.f32.mrf.mxu0
    %v1293 = vadd.f32 0.0, %v1292
    %v1294 = vpop.f32.mrf.mxu0
    %v1295 = vadd.f32 0.0, %v1294
    %1296 = vdwg.mxu0
    %v1297 = vpack.c.bf16 %v1295, %v1293
    %v1306 = vunpack.c.l.b16 %v1015
    %v1307 = vunpack.c.l.b16 %v1016
    %v1308 = vunpack.c.l.b16 %v1017
    %v1309 = vunpack.c.l.b16 %v1018
    %v1310 = vunpack.c.l.b16 %v1019
    %v1311 = vunpack.c.l.b16 %v1020
    %v1312 = vunpack.c.l.b16 %v1021
    %v1313 = vunpack.c.l.b16 %v1022
    %v1314 = vpack.c.b16 %v1307, %v1306
    %v1315 = vpack.c.b16 %v1309, %v1308
    %v1316 = vpack.c.b16 %v1311, %v1310
    %v1317 = vpack.c.b16 %v1313, %v1312
    %1323 = vrot.lane.b32.xlu0 %v1114, 96
    %v1324 = vpop.permute.xlu0 %1323
    %1326 = vmatpush.bf16.msra.mxu0 0
    %1327 = vmatpush.bf16.msra.mxu0 0
    %1328 = vmatpush.bf16.msra.mxu0 0
    %1329 = vmatpush.bf16.msra.mxu0 0
    %1330 = vmatpush.bf16.msra.mxu0 %v1317
    %1331 = vmatpush.bf16.msra.mxu0 %v1316
    %1332 = vmatpush.bf16.msra.mxu0 %v1315
    %1333 = vmatpush.bf16.msra.mxu0 %v1314
    %1334 = vmatmul.bf16.gmra.mxu0 %v1140
    %v1335 = vpop.f32.mrf.mxu0
    %v1336 = vadd.f32 %v1324, %v1335
    %v1337 = vpop.f32.mrf.mxu0
    %v1338 = vadd.f32 %v1324, %v1337
    %1339 = vdwg.mxu0
    %v1348 = vunpack.c.l.b16 %v1032
    %v1349 = vunpack.c.l.b16 %v1033
    %v1350 = vunpack.c.l.b16 %v1034
    %v1351 = vunpack.c.l.b16 %v1035
    %v1352 = vunpack.c.l.b16 %v1036
    %v1353 = vunpack.c.l.b16 %v1037
    %v1354 = vunpack.c.l.b16 %v1038
    %v1355 = vunpack.c.l.b16 %v1039
    %v1356 = vpack.c.b16 %v1349, %v1348
    %v1357 = vpack.c.b16 %v1351, %v1350
    %v1358 = vpack.c.b16 %v1353, %v1352
    %v1359 = vpack.c.b16 %v1355, %v1354
    %1365 = vrot.lane.b32.xlu0 %v1156, 96
    %v1366 = vpop.permute.xlu0 %1365
    %1368 = vmatpush.bf16.msra.mxu0 0
    %1369 = vmatpush.bf16.msra.mxu0 0
    %1370 = vmatpush.bf16.msra.mxu0 0
    %1371 = vmatpush.bf16.msra.mxu0 0
    %1372 = vmatpush.bf16.msra.mxu0 %v1359
    %1373 = vmatpush.bf16.msra.mxu0 %v1358
    %1374 = vmatpush.bf16.msra.mxu0 %v1357
    %1375 = vmatpush.bf16.msra.mxu0 %v1356
    %1376 = vmatmul.bf16.gmra.mxu0 %v1140
    %v1377 = vpop.f32.mrf.mxu0
    %v1378 = vadd.f32 %v1366, %v1377
    %v1379 = vpop.f32.mrf.mxu0
    %v1380 = vadd.f32 %v1366, %v1379
    %1381 = vdwg.mxu0
    %v1390 = vunpack.c.l.b16 %v1049
    %v1391 = vunpack.c.l.b16 %v1050
    %v1392 = vunpack.c.l.b16 %v1051
    %v1393 = vunpack.c.l.b16 %v1052
    %v1394 = vunpack.c.l.b16 %v1053
    %v1395 = vunpack.c.l.b16 %v1054
    %v1396 = vunpack.c.l.b16 %v1055
    %v1397 = vunpack.c.l.b16 %v1056
    %v1398 = vpack.c.b16 %v1391, %v1390
    %v1399 = vpack.c.b16 %v1393, %v1392
    %v1400 = vpack.c.b16 %v1395, %v1394
    %v1401 = vpack.c.b16 %v1397, %v1396
    %1407 = vrot.lane.b32.xlu0 %v1195, 96
    %v1408 = vpop.permute.xlu0 %1407
    %1410 = vmatpush.bf16.msra.mxu0 0
    %1411 = vmatpush.bf16.msra.mxu0 0
    %1412 = vmatpush.bf16.msra.mxu0 0
    %1413 = vmatpush.bf16.msra.mxu0 0
    %1414 = vmatpush.bf16.msra.mxu0 %v1401
    %1415 = vmatpush.bf16.msra.mxu0 %v1400
    %1416 = vmatpush.bf16.msra.mxu0 %v1399
    %1417 = vmatpush.bf16.msra.mxu0 %v1398
    %1418 = vmatmul.bf16.gmra.mxu0 %v1140
    %v1419 = vpop.f32.mrf.mxu0
    %v1420 = vadd.f32 %v1408, %v1419
    %v1421 = vpop.f32.mrf.mxu0
    %v1422 = vadd.f32 %v1408, %v1421
    %1423 = vdwg.mxu0
    %v1424 = vpack.c.bf16 %v1338, %v1336
    %v1425 = vpack.c.bf16 %v1380, %v1378
    %v1427 = vsel %vm379, %v1424, 0
    %v1430 = vsel %vm379, %v1425, 0
    %1432 = vmatpush.bf16.xpose.msra.mxu0 0
    %1433 = vmatpush.bf16.xpose.msra.mxu0 0
    %1434 = vmatpush.bf16.xpose.msra.mxu0 0
    %1435 = vmatpush.bf16.xpose.msra.mxu0 0
    %1436 = vmatpush.bf16.xpose.msra.mxu0 0
    %1437 = vmatpush.bf16.xpose.msra.mxu0 0
    %1438 = vmatpush.bf16.xpose.msra.mxu0 0
    %1439 = vmatpush.bf16.xpose.msra.mxu0 %v1430
    %1440 = vmatmul.bf16.gmra.mxu0 %v1427
    %v1441 = vpop.f32.mrf.mxu0
    %v1442 = vadd.f32 %v155, %v1441
    %v1443 = vpop.f32.mrf.mxu0
    %v1444 = vadd.f32 %v156, %v1443
    %1445 = vdwg.mxu0
    %v1446 = vsel %vm400, %v1442, -inf
    %1447 = vmax.xlane.f32.xlu0 %v1446
    %v1448 = vpop.xlane.xlu0 %1447
    %v1449 = vsel %vm400, %v1444, -inf
    %1450 = vmax.xlane.f32.xlu0 %v1449
    %v1451 = vpop.xlane.xlu0 %1450
    %v1452 = vsub.f32 %v1442, %v1448
    %v1453 = vsub.f32 %v1444, %v1451
    %v1454 = vmul.f32 %v1452, 1.442695
    %v1455 = vpow.pop %v1454
    %v1456 = vmul.f32 %v1453, 1.442695
    %v1457 = vpow.pop %v1456
    %v1458 = vsel %vm400, %v1455, 0.0
    %1459 = vadd.xlane.f32.xlu0 %v1458
    %v1460 = vpop.xlane.xlu0 %1459
    %v1461 = vsel %vm400, %v1457, 0.0
    %1462 = vadd.xlane.f32.xlu0 %v1461
    %v1463 = vpop.xlane.xlu0 %1462
    %v1464 = vrcp.pop %v1460
    %v1465 = vrcp.pop %v1463
    %v1466 = vmul.f32 %v1455, %v1464
    %v1467 = vmul.f32 %v1457, %v1465
    %v1468 = vpack.c.bf16 %v1467, %v1466
    %v1469 = vpack.c.bf16 %v1422, %v1420
    %v1471 = vsel %vm400, %v1468, 0
    %1473 = vmatpush.bf16.msra.mxu0 0
    %1474 = vmatpush.bf16.msra.mxu0 0
    %1475 = vmatpush.bf16.msra.mxu0 0
    %1476 = vmatpush.bf16.msra.mxu0 0
    %1477 = vmatpush.bf16.msra.mxu0 0
    %1478 = vmatpush.bf16.msra.mxu0 0
    %1479 = vmatpush.bf16.msra.mxu0 0
    %1480 = vmatpush.bf16.msra.mxu0 %v1469
    %1481 = vmatmul.bf16.gmra.mxu0 %v1471
    %v1482 = vpop.f32.mrf.mxu0
    %v1483 = vadd.f32 0.0, %v1482
    %v1484 = vpop.f32.mrf.mxu0
    %v1485 = vadd.f32 0.0, %v1484
    %1486 = vdwg.mxu0
    %v1487 = vpack.c.bf16 %v1485, %v1483
    %v1492 = vunpack.c.l.b16 %v1062
    %v1493 = vunpack.c.l.b16 %v1063
    %v1494 = vunpack.c.l.b16 %v1064
    %v1495 = vunpack.c.l.b16 %v1065
    %v1496 = vpack.c.b16 %v1493, %v1492
    %v1497 = vpack.c.b16 %v1495, %v1494
    %v1501 = vsel %vm379, %v1487, 0
    %1503 = vmatpush.bf16.msra.mxu0 0
    %1504 = vmatpush.bf16.msra.mxu0 0
    %1505 = vmatpush.bf16.msra.mxu0 0
    %1506 = vmatpush.bf16.msra.mxu0 0
    %1507 = vmatpush.bf16.msra.mxu0 0
    %1508 = vmatpush.bf16.msra.mxu0 0
    %1509 = vmatpush.bf16.msra.mxu0 %v1497
    %1510 = vmatpush.bf16.msra.mxu0 %v1496
    %1511 = vmatmul.bf16.gmra.mxu0 %v1501
    %v1512 = vpop.f32.mrf.mxu0
    %v1513 = vadd.f32 0.0, %v1512
    %v1514 = vpop.f32.mrf.mxu0
    %v1515 = vadd.f32 0.0, %v1514
    %1516 = vdwg.mxu0
    %v1521 = vunpack.c.l.b16 %v1058
    %v1522 = vunpack.c.l.b16 %v1059
    %v1523 = vunpack.c.l.b16 %v1060
    %v1524 = vunpack.c.l.b16 %v1061
    %v1525 = vpack.c.b16 %v1522, %v1521
    %v1526 = vpack.c.b16 %v1524, %v1523
    %v1530 = vsel %vm379, %v1297, 0
    %1532 = vmatpush.bf16.msra.mxu0 0
    %1533 = vmatpush.bf16.msra.mxu0 0
    %1534 = vmatpush.bf16.msra.mxu0 0
    %1535 = vmatpush.bf16.msra.mxu0 0
    %1536 = vmatpush.bf16.msra.mxu0 0
    %1537 = vmatpush.bf16.msra.mxu0 0
    %1538 = vmatpush.bf16.msra.mxu0 %v1526
    %1539 = vmatpush.bf16.msra.mxu0 %v1525
    %1540 = vmatmul.bf16.gmra.mxu0 %v1530
    %v1541 = vpop.f32.mrf.mxu0
    %v1542 = vadd.f32 %v1513, %v1541
    %v1543 = vpop.f32.mrf.mxu0
    %v1544 = vadd.f32 %v1515, %v1543
    %1545 = vdwg.mxu0
    %v1546 = vperm.slane %v1111, 3
    %v1547 = vadd.f32 %v1542, %v1546
    %v1548 = vadd.f32 %v1544, %v1546
    %v1549 = vadd.f32 %v1004, %v1547
    %v1550 = vadd.f32 %v1005, %v1548
    %v1551 = vsel %vm97, %v1549, 0.0
    %1552 = vadd.xlane.f32.xlu0 %v1551
    %v1553 = vpop.xlane.xlu0 %1552
    %v1554 = vsel %vm97, %v1550, 0.0
    %1555 = vadd.xlane.f32.xlu0 %v1554
    %v1556 = vpop.xlane.xlu0 %1555
    %v1557 = vmul.f32 %v1553, %v110
    %v1558 = vmul.f32 %v1556, %v110
    %v1559 = vsub.f32 %v1549, %v1557
    %v1560 = vsub.f32 %v1550, %v1558
    %v1561 = vmul.f32 %v1559, %v1559
    %v1562 = vmul.f32 %v1560, %v1560
    %v1563 = vsel %vm97, %v1561, 0.0
    %1564 = vadd.xlane.f32.xlu0 %v1563
    %v1565 = vpop.xlane.xlu0 %1564
    %v1566 = vsel %vm97, %v1562, 0.0
    %1567 = vadd.xlane.f32.xlu0 %v1566
    %v1568 = vpop.xlane.xlu0 %1567
    %v1569 = vmul.f32 %v1565, %v110
    %v1570 = vmul.f32 %v1568, %v110
    %v1571 = vadd.f32 %v1569, 1e-05
    %v1572 = vadd.f32 %v1570, 1e-05
    %v1573 = vrsqrt.pop %v1571
    %v1574 = vmul.f32 %v1573, %v1571
    %v1575 = vmul.f32 %v1574, %v1573
    %v1576 = vmul.f32 0.5, %v1575
    %v1577 = vsub.f32 1.5, %v1576
    %v1578 = vmul.f32 %v1573, %v1577
    %vm1579 = vweird.f32 %v1571
    %vm1580 = vweird.f32 %v1573
    %vm1581 = vmor %vm1579, %vm1580
    %v1582 = vsel %vm1581, %v1573, %v1578
    %v1583 = vrsqrt.pop %v1572
    %v1584 = vmul.f32 %v1583, %v1572
    %v1585 = vmul.f32 %v1584, %v1583
    %v1586 = vmul.f32 0.5, %v1585
    %v1587 = vsub.f32 1.5, %v1586
    %v1588 = vmul.f32 %v1583, %v1587
    %vm1589 = vweird.f32 %v1572
    %vm1590 = vweird.f32 %v1583
    %vm1591 = vmor %vm1589, %vm1590
    %v1592 = vsel %vm1591, %v1583, %v1588
    %v1593 = vmul.f32 %v1559, %v1582
    %v1594 = vmul.f32 %v1560, %v1592
    %v1595 = vperm.slane %v1111, 4
    %v1596 = vmul.f32 %v1593, %v1595
    %v1597 = vmul.f32 %v1594, %v1595
    %v1598 = vperm.slane %v1111, 5
    %v1599 = vadd.f32 %v1596, %v1598
    %v1600 = vadd.f32 %v1597, %v1598
    %v1601 = vpack.c.bf16 %v1600, %v1599
    %v1603 = vperm.slane %v1076, 0
    %v1604 = vperm.slane %v1076, 1
    %v1615 = vunpack.c.l.b16 %v1067
    %v1616 = vunpack.c.h.b16 %v1067
    %v1617 = vunpack.c.l.b16 %v1068
    %v1618 = vunpack.c.h.b16 %v1068
    %v1619 = vunpack.c.l.b16 %v1069
    %v1620 = vunpack.c.h.b16 %v1069
    %v1621 = vunpack.c.l.b16 %v1070
    %v1622 = vunpack.c.h.b16 %v1070
    %v1623 = vunpack.c.l.b16 %v1071
    %v1624 = vunpack.c.h.b16 %v1071
    %v1625 = vunpack.c.l.b16 %v1072
    %v1626 = vunpack.c.h.b16 %v1072
    %v1627 = vunpack.c.l.b16 %v1073
    %v1628 = vunpack.c.h.b16 %v1073
    %v1629 = vunpack.c.l.b16 %v1074
    %v1630 = vunpack.c.h.b16 %v1074
    %v1631 = vpack.c.b16 %v1617, %v1615
    %v1632 = vpack.c.b16 %v1618, %v1616
    %v1633 = vpack.c.b16 %v1621, %v1619
    %v1634 = vpack.c.b16 %v1622, %v1620
    %v1635 = vpack.c.b16 %v1625, %v1623
    %v1636 = vpack.c.b16 %v1626, %v1624
    %v1637 = vpack.c.b16 %v1629, %v1627
    %v1638 = vpack.c.b16 %v1630, %v1628
    %v1648 = vsel %vm97, %v1601, 0
    %1650 = vmatpush.bf16.msra.mxu0 0
    %1651 = vmatpush.bf16.msra.mxu0 0
    %1652 = vmatpush.bf16.msra.mxu0 0
    %1653 = vmatpush.bf16.msra.mxu0 0
    %1654 = vmatpush.bf16.msra.mxu0 %v1637
    %1655 = vmatpush.bf16.msra.mxu0 %v1635
    %1656 = vmatpush.bf16.msra.mxu0 %v1633
    %1657 = vmatpush.bf16.msra.mxu0 %v1631
    %1658 = vmatmul.bf16.gmra.mxu0 %v1648
    %v1659 = vpop.f32.mrf.mxu0
    %v1660 = vadd.f32 %v1603, %v1659
    %v1661 = vpop.f32.mrf.mxu0
    %v1662 = vadd.f32 %v1603, %v1661
    %1663 = vdwg.mxu0
    %1664 = vmatpush.bf16.msra.mxu0 0
    %1665 = vmatpush.bf16.msra.mxu0 0
    %1666 = vmatpush.bf16.msra.mxu0 0
    %1667 = vmatpush.bf16.msra.mxu0 0
    %1668 = vmatpush.bf16.msra.mxu0 %v1638
    %1669 = vmatpush.bf16.msra.mxu0 %v1636
    %1670 = vmatpush.bf16.msra.mxu0 %v1634
    %1671 = vmatpush.bf16.msra.mxu0 %v1632
    %1672 = vmatmul.bf16.gmra.mxu0 %v1648
    %v1673 = vpop.f32.mrf.mxu0
    %v1674 = vadd.f32 %v1604, %v1673
    %v1675 = vpop.f32.mrf.mxu0
    %v1676 = vadd.f32 %v1604, %v1675
    %1677 = vdwg.mxu0
    %v1678 = vmax.f32 %v1660, 0.0
    %v1679 = vmax.f32 %v1674, 0.0
    %v1680 = vmax.f32 %v1662, 0.0
    %v1681 = vmax.f32 %v1676, 0.0
    %v1682 = vpack.c.bf16 %v1680, %v1678
    %v1683 = vpack.c.bf16 %v1681, %v1679
    %v1684 = vperm.slane %v1112, 0
    %v1717 = vunpack.c.l.b16 %v1078
    %v1718 = vunpack.c.l.b16 %v1079
    %v1719 = vunpack.c.l.b16 %v1080
    %v1720 = vunpack.c.l.b16 %v1081
    %v1721 = vunpack.c.l.b16 %v1082
    %v1722 = vunpack.c.l.b16 %v1083
    %v1723 = vunpack.c.l.b16 %v1084
    %v1724 = vunpack.c.l.b16 %v1085
    %v1725 = vunpack.c.l.b16 %v1086
    %v1726 = vunpack.c.l.b16 %v1087
    %v1727 = vunpack.c.l.b16 %v1088
    %v1728 = vunpack.c.l.b16 %v1089
    %v1729 = vunpack.c.l.b16 %v1090
    %v1730 = vunpack.c.l.b16 %v1091
    %v1731 = vunpack.c.l.b16 %v1092
    %v1732 = vunpack.c.l.b16 %v1093
    %v1733 = vunpack.c.l.b16 %v1094
    %v1734 = vunpack.c.l.b16 %v1095
    %v1735 = vunpack.c.l.b16 %v1096
    %v1736 = vunpack.c.l.b16 %v1097
    %v1737 = vunpack.c.l.b16 %v1098
    %v1738 = vunpack.c.l.b16 %v1099
    %v1739 = vunpack.c.l.b16 %v1100
    %v1740 = vunpack.c.l.b16 %v1101
    %v1741 = vunpack.c.l.b16 %v1102
    %v1742 = vunpack.c.l.b16 %v1103
    %v1743 = vunpack.c.l.b16 %v1104
    %v1744 = vunpack.c.l.b16 %v1105
    %v1745 = vunpack.c.l.b16 %v1106
    %v1746 = vunpack.c.l.b16 %v1107
    %v1747 = vunpack.c.l.b16 %v1108
    %v1748 = vunpack.c.l.b16 %v1109
    %v1749 = vpack.c.b16 %v1718, %v1717
    %v1750 = vpack.c.b16 %v1720, %v1719
    %v1751 = vpack.c.b16 %v1722, %v1721
    %v1752 = vpack.c.b16 %v1724, %v1723
    %v1753 = vpack.c.b16 %v1726, %v1725
    %v1754 = vpack.c.b16 %v1728, %v1727
    %v1755 = vpack.c.b16 %v1730, %v1729
    %v1756 = vpack.c.b16 %v1732, %v1731
    %v1757 = vpack.c.b16 %v1734, %v1733
    %v1758 = vpack.c.b16 %v1736, %v1735
    %v1759 = vpack.c.b16 %v1738, %v1737
    %v1760 = vpack.c.b16 %v1740, %v1739
    %v1761 = vpack.c.b16 %v1742, %v1741
    %v1762 = vpack.c.b16 %v1744, %v1743
    %v1763 = vpack.c.b16 %v1746, %v1745
    %v1764 = vpack.c.b16 %v1748, %v1747
    %1781 = vmatpush.bf16.msra.mxu0 %v1756
    %1782 = vmatpush.bf16.msra.mxu0 %v1755
    %1783 = vmatpush.bf16.msra.mxu0 %v1754
    %1784 = vmatpush.bf16.msra.mxu0 %v1753
    %1785 = vmatpush.bf16.msra.mxu0 %v1752
    %1786 = vmatpush.bf16.msra.mxu0 %v1751
    %1787 = vmatpush.bf16.msra.mxu0 %v1750
    %1788 = vmatpush.bf16.msra.mxu0 %v1749
    %1789 = vmatmul.bf16.gmra.mxu0 %v1682
    %v1790 = vpop.f32.mrf.mxu0
    %v1791 = vadd.f32 %v1684, %v1790
    %v1792 = vpop.f32.mrf.mxu0
    %v1793 = vadd.f32 %v1684, %v1792
    %1794 = vdwg.mxu0
    %1795 = vmatpush.bf16.msra.mxu0 %v1764
    %1796 = vmatpush.bf16.msra.mxu0 %v1763
    %1797 = vmatpush.bf16.msra.mxu0 %v1762
    %1798 = vmatpush.bf16.msra.mxu0 %v1761
    %1799 = vmatpush.bf16.msra.mxu0 %v1760
    %1800 = vmatpush.bf16.msra.mxu0 %v1759
    %1801 = vmatpush.bf16.msra.mxu0 %v1758
    %1802 = vmatpush.bf16.msra.mxu0 %v1757
    %1803 = vmatmul.bf16.gmra.mxu0 %v1683
    %v1804 = vpop.f32.mrf.mxu0
    %v1805 = vadd.f32 %v1791, %v1804
    %v1806 = vpop.f32.mrf.mxu0
    %v1807 = vadd.f32 %v1793, %v1806
    %1808 = vdwg.mxu0
    %v1809 = vadd.f32 %v1599, %v1805
    %v1810 = vadd.f32 %v1600, %v1807
    %v1811 = vsel %vm97, %v1809, 0.0
    %1812 = vadd.xlane.f32.xlu0 %v1811
    %v1813 = vpop.xlane.xlu0 %1812
    %v1814 = vsel %vm97, %v1810, 0.0
    %1815 = vadd.xlane.f32.xlu0 %v1814
    %v1816 = vpop.xlane.xlu0 %1815
    %v1817 = vmul.f32 %v1813, %v110
    %v1818 = vmul.f32 %v1816, %v110
    %v1819 = vsub.f32 %v1809, %v1817
    %v1820 = vsub.f32 %v1810, %v1818
    %v1821 = vmul.f32 %v1819, %v1819
    %v1822 = vmul.f32 %v1820, %v1820
    %v1823 = vsel %vm97, %v1821, 0.0
    %1824 = vadd.xlane.f32.xlu0 %v1823
    %v1825 = vpop.xlane.xlu0 %1824
    %v1826 = vsel %vm97, %v1822, 0.0
    %1827 = vadd.xlane.f32.xlu0 %v1826
    %v1828 = vpop.xlane.xlu0 %1827
    %v1829 = vmul.f32 %v1825, %v110
    %v1830 = vmul.f32 %v1828, %v110
    %v1831 = vadd.f32 %v1829, 1e-05
    %v1832 = vadd.f32 %v1830, 1e-05
    %v1833 = vrsqrt.pop %v1831
    %v1834 = vmul.f32 %v1833, %v1831
    %v1835 = vmul.f32 %v1834, %v1833
    %v1836 = vmul.f32 0.5, %v1835
    %v1837 = vsub.f32 1.5, %v1836
    %v1838 = vmul.f32 %v1833, %v1837
    %vm1839 = vweird.f32 %v1831
    %vm1840 = vweird.f32 %v1833
    %vm1841 = vmor %vm1839, %vm1840
    %v1842 = vsel %vm1841, %v1833, %v1838
    %v1843 = vrsqrt.pop %v1832
    %v1844 = vmul.f32 %v1843, %v1832
    %v1845 = vmul.f32 %v1844, %v1843
    %v1846 = vmul.f32 0.5, %v1845
    %v1847 = vsub.f32 1.5, %v1846
    %v1848 = vmul.f32 %v1843, %v1847
    %vm1849 = vweird.f32 %v1832
    %vm1850 = vweird.f32 %v1843
    %vm1851 = vmor %vm1849, %vm1850
    %v1852 = vsel %vm1851, %v1843, %v1848
    %v1853 = vmul.f32 %v1819, %v1842
    %v1854 = vmul.f32 %v1820, %v1852
    %v1855 = vperm.slane %v1111, 6
    %v1856 = vmul.f32 %v1853, %v1855
    %v1857 = vmul.f32 %v1854, %v1855
    %v1858 = vperm.slane %v1111, 7
    %v1859 = vadd.f32 %v1856, %v1858
    %v1860 = vadd.f32 %v1857, %v1858
    %s1861 = scalar_lea.vmem %s2, 128
    %v1862 = vld [vmem:[%s1861] sm:$0xf]
    %v1863 = vld [vmem:[%s1861 + $0x4] sm:$0xf]
    %v1864 = vld [vmem:[%s1861 + $0x8] sm:$0xf]
    %v1865 = vld [vmem:[%s1861 + $0xc] sm:$0xf]
    %v1866 = vld [vmem:[%s1861 + $0x10] sm:$0xf]
    %v1867 = vld [vmem:[%s1861 + $0x14] sm:$0xf]
    %v1868 = vld [vmem:[%s1861 + $0x18] sm:$0xf]
    %v1869 = vld [vmem:[%s1861 + $0x1c] sm:$0xf]
    %v1870 = vld [vmem:[%s1861 + $0x20] sm:$0xf]
    %v1871 = vld [vmem:[%s1861 + $0x24] sm:$0xf]
    %v1872 = vld [vmem:[%s1861 + $0x28] sm:$0xf]
    %v1873 = vld [vmem:[%s1861 + $0x2c] sm:$0xf]
    %v1874 = vld [vmem:[%s1861 + $0x30] sm:$0xf]
    %v1875 = vld [vmem:[%s1861 + $0x34] sm:$0xf]
    %v1876 = vld [vmem:[%s1861 + $0x38] sm:$0xf]
    %v1877 = vld [vmem:[%s1861 + $0x3c] sm:$0xf]
    %s1878 = scalar_lea.vmem %s3, 128
    %v1879 = vld [vmem:[%s1878] sm:$0xf]
    %v1880 = vld [vmem:[%s1878 + $0x4] sm:$0xf]
    %v1881 = vld [vmem:[%s1878 + $0x8] sm:$0xf]
    %v1882 = vld [vmem:[%s1878 + $0xc] sm:$0xf]
    %v1883 = vld [vmem:[%s1878 + $0x10] sm:$0xf]
    %v1884 = vld [vmem:[%s1878 + $0x14] sm:$0xf]
    %v1885 = vld [vmem:[%s1878 + $0x18] sm:$0xf]
    %v1886 = vld [vmem:[%s1878 + $0x1c] sm:$0xf]
    %v1887 = vld [vmem:[%s1878 + $0x20] sm:$0xf]
    %v1888 = vld [vmem:[%s1878 + $0x24] sm:$0xf]
    %v1889 = vld [vmem:[%s1878 + $0x28] sm:$0xf]
    %v1890 = vld [vmem:[%s1878 + $0x2c] sm:$0xf]
    %v1891 = vld [vmem:[%s1878 + $0x30] sm:$0xf]
    %v1892 = vld [vmem:[%s1878 + $0x34] sm:$0xf]
    %v1893 = vld [vmem:[%s1878 + $0x38] sm:$0xf]
    %v1894 = vld [vmem:[%s1878 + $0x3c] sm:$0xf]
    %s1895 = scalar_lea.vmem %s4, 128
    %v1896 = vld [vmem:[%s1895] sm:$0xf]
    %v1897 = vld [vmem:[%s1895 + $0x4] sm:$0xf]
    %v1898 = vld [vmem:[%s1895 + $0x8] sm:$0xf]
    %v1899 = vld [vmem:[%s1895 + $0xc] sm:$0xf]
    %v1900 = vld [vmem:[%s1895 + $0x10] sm:$0xf]
    %v1901 = vld [vmem:[%s1895 + $0x14] sm:$0xf]
    %v1902 = vld [vmem:[%s1895 + $0x18] sm:$0xf]
    %v1903 = vld [vmem:[%s1895 + $0x1c] sm:$0xf]
    %v1904 = vld [vmem:[%s1895 + $0x20] sm:$0xf]
    %v1905 = vld [vmem:[%s1895 + $0x24] sm:$0xf]
    %v1906 = vld [vmem:[%s1895 + $0x28] sm:$0xf]
    %v1907 = vld [vmem:[%s1895 + $0x2c] sm:$0xf]
    %v1908 = vld [vmem:[%s1895 + $0x30] sm:$0xf]
    %v1909 = vld [vmem:[%s1895 + $0x34] sm:$0xf]
    %v1910 = vld [vmem:[%s1895 + $0x38] sm:$0xf]
    %v1911 = vld [vmem:[%s1895 + $0x3c] sm:$0xf]
    %s1912 = scalar_lea.vmem %s5, 64
    %v1913 = vld [vmem:[%s1912] sm:$0xf]
    %v1914 = vld [vmem:[%s1912 + $0x4] sm:$0xf]
    %v1915 = vld [vmem:[%s1912 + $0x8] sm:$0xf]
    %v1916 = vld [vmem:[%s1912 + $0xc] sm:$0xf]
    %v1917 = vld [vmem:[%s1912 + $0x10] sm:$0xf]
    %v1918 = vld [vmem:[%s1912 + $0x14] sm:$0xf]
    %v1919 = vld [vmem:[%s1912 + $0x18] sm:$0xf]
    %v1920 = vld [vmem:[%s1912 + $0x1c] sm:$0xf]
    %s1921 = scalar_lea.vmem %s6, 128
    %v1922 = vld [vmem:[%s1921] sm:$0xff]
    %v1923 = vld [vmem:[%s1921 + $0x8] sm:$0xff]
    %v1924 = vld [vmem:[%s1921 + $0x10] sm:$0xff]
    %v1925 = vld [vmem:[%s1921 + $0x18] sm:$0xff]
    %v1926 = vld [vmem:[%s1921 + $0x20] sm:$0xff]
    %v1927 = vld [vmem:[%s1921 + $0x28] sm:$0xff]
    %v1928 = vld [vmem:[%s1921 + $0x30] sm:$0xff]
    %v1929 = vld [vmem:[%s1921 + $0x38] sm:$0xff]
    %s1930 = scalar_lea.vmem %s7, 4
    %v1931 = vld [vmem:[%s1930] sm:$0x3]
    %s1932 = scalar_lea.vmem %s8, 256
    %v1933 = vld [vmem:[%s1932] sm:$0xf]
    %v1934 = vld [vmem:[%s1932 + $0x4] sm:$0xf]
    %v1935 = vld [vmem:[%s1932 + $0x8] sm:$0xf]
    %v1936 = vld [vmem:[%s1932 + $0xc] sm:$0xf]
    %v1937 = vld [vmem:[%s1932 + $0x10] sm:$0xf]
    %v1938 = vld [vmem:[%s1932 + $0x14] sm:$0xf]
    %v1939 = vld [vmem:[%s1932 + $0x18] sm:$0xf]
    %v1940 = vld [vmem:[%s1932 + $0x1c] sm:$0xf]
    %v1941 = vld [vmem:[%s1932 + $0x20] sm:$0xf]
    %v1942 = vld [vmem:[%s1932 + $0x24] sm:$0xf]
    %v1943 = vld [vmem:[%s1932 + $0x28] sm:$0xf]
    %v1944 = vld [vmem:[%s1932 + $0x2c] sm:$0xf]
    %v1945 = vld [vmem:[%s1932 + $0x30] sm:$0xf]
    %v1946 = vld [vmem:[%s1932 + $0x34] sm:$0xf]
    %v1947 = vld [vmem:[%s1932 + $0x38] sm:$0xf]
    %v1948 = vld [vmem:[%s1932 + $0x3c] sm:$0xf]
    %v1949 = vld [vmem:[%s1932 + $0x40] sm:$0xf]
    %v1950 = vld [vmem:[%s1932 + $0x44] sm:$0xf]
    %v1951 = vld [vmem:[%s1932 + $0x48] sm:$0xf]
    %v1952 = vld [vmem:[%s1932 + $0x4c] sm:$0xf]
    %v1953 = vld [vmem:[%s1932 + $0x50] sm:$0xf]
    %v1954 = vld [vmem:[%s1932 + $0x54] sm:$0xf]
    %v1955 = vld [vmem:[%s1932 + $0x58] sm:$0xf]
    %v1956 = vld [vmem:[%s1932 + $0x5c] sm:$0xf]
    %v1957 = vld [vmem:[%s1932 + $0x60] sm:$0xf]
    %v1958 = vld [vmem:[%s1932 + $0x64] sm:$0xf]
    %v1959 = vld [vmem:[%s1932 + $0x68] sm:$0xf]
    %v1960 = vld [vmem:[%s1932 + $0x6c] sm:$0xf]
    %v1961 = vld [vmem:[%s1932 + $0x70] sm:$0xf]
    %v1962 = vld [vmem:[%s1932 + $0x74] sm:$0xf]
    %v1963 = vld [vmem:[%s1932 + $0x78] sm:$0xf]
    %v1964 = vld [vmem:[%s1932 + $0x7c] sm:$0xf]
    %s1965 = scalar_lea.vmem %s9, 32
    %v1966 = vld [vmem:[%s1965] sm:$0xff]
    %v1967 = vld [vmem:[%s1965 + $0x8] sm:$0x1]
    %v1968 = vpack.c.bf16 %v1860, %v1859
    %v1969 = vperm.slane %v1966, 0
    %v1978 = vunpack.c.l.b16 %v1862
    %v1979 = vunpack.c.l.b16 %v1863
    %v1980 = vunpack.c.l.b16 %v1864
    %v1981 = vunpack.c.l.b16 %v1865
    %v1982 = vunpack.c.l.b16 %v1866
    %v1983 = vunpack.c.l.b16 %v1867
    %v1984 = vunpack.c.l.b16 %v1868
    %v1985 = vunpack.c.l.b16 %v1869
    %v1986 = vpack.c.b16 %v1979, %v1978
    %v1987 = vpack.c.b16 %v1981, %v1980
    %v1988 = vpack.c.b16 %v1983, %v1982
    %v1989 = vpack.c.b16 %v1985, %v1984
    %v1995 = vsel %vm97, %v1968, 0
    %1997 = vmatpush.bf16.msra.mxu0 0
    %1998 = vmatpush.bf16.msra.mxu0 0
    %1999 = vmatpush.bf16.msra.mxu0 0
    %2000 = vmatpush.bf16.msra.mxu0 0
    %2001 = vmatpush.bf16.msra.mxu0 %v1989
    %2002 = vmatpush.bf16.msra.mxu0 %v1988
    %2003 = vmatpush.bf16.msra.mxu0 %v1987
    %2004 = vmatpush.bf16.msra.mxu0 %v1986
    %2005 = vmatmul.bf16.gmra.mxu0 %v1995
    %v2006 = vpop.f32.mrf.mxu0
    %v2007 = vadd.f32 %v1969, %v2006
    %v2008 = vpop.f32.mrf.mxu0
    %v2009 = vadd.f32 %v1969, %v2008
    %2010 = vdwg.mxu0
    %v2011 = vperm.slane %v1966, 1
    %v2020 = vunpack.c.l.b16 %v1879
    %v2021 = vunpack.c.l.b16 %v1880
    %v2022 = vunpack.c.l.b16 %v1881
    %v2023 = vunpack.c.l.b16 %v1882
    %v2024 = vunpack.c.l.b16 %v1883
    %v2025 = vunpack.c.l.b16 %v1884
    %v2026 = vunpack.c.l.b16 %v1885
    %v2027 = vunpack.c.l.b16 %v1886
    %v2028 = vpack.c.b16 %v2021, %v2020
    %v2029 = vpack.c.b16 %v2023, %v2022
    %v2030 = vpack.c.b16 %v2025, %v2024
    %v2031 = vpack.c.b16 %v2027, %v2026
    %2036 = vmatpush.bf16.msra.mxu0 0
    %2037 = vmatpush.bf16.msra.mxu0 0
    %2038 = vmatpush.bf16.msra.mxu0 0
    %2039 = vmatpush.bf16.msra.mxu0 0
    %2040 = vmatpush.bf16.msra.mxu0 %v2031
    %2041 = vmatpush.bf16.msra.mxu0 %v2030
    %2042 = vmatpush.bf16.msra.mxu0 %v2029
    %2043 = vmatpush.bf16.msra.mxu0 %v2028
    %2044 = vmatmul.bf16.gmra.mxu0 %v1995
    %v2045 = vpop.f32.mrf.mxu0
    %v2046 = vadd.f32 %v2011, %v2045
    %v2047 = vpop.f32.mrf.mxu0
    %v2048 = vadd.f32 %v2011, %v2047
    %2049 = vdwg.mxu0
    %v2050 = vperm.slane %v1966, 2
    %v2059 = vunpack.c.l.b16 %v1896
    %v2060 = vunpack.c.l.b16 %v1897
    %v2061 = vunpack.c.l.b16 %v1898
    %v2062 = vunpack.c.l.b16 %v1899
    %v2063 = vunpack.c.l.b16 %v1900
    %v2064 = vunpack.c.l.b16 %v1901
    %v2065 = vunpack.c.l.b16 %v1902
    %v2066 = vunpack.c.l.b16 %v1903
    %v2067 = vpack.c.b16 %v2060, %v2059
    %v2068 = vpack.c.b16 %v2062, %v2061
    %v2069 = vpack.c.b16 %v2064, %v2063
    %v2070 = vpack.c.b16 %v2066, %v2065
    %2075 = vmatpush.bf16.msra.mxu0 0
    %2076 = vmatpush.bf16.msra.mxu0 0
    %2077 = vmatpush.bf16.msra.mxu0 0
    %2078 = vmatpush.bf16.msra.mxu0 0
    %2079 = vmatpush.bf16.msra.mxu0 %v2070
    %2080 = vmatpush.bf16.msra.mxu0 %v2069
    %2081 = vmatpush.bf16.msra.mxu0 %v2068
    %2082 = vmatpush.bf16.msra.mxu0 %v2067
    %2083 = vmatmul.bf16.gmra.mxu0 %v1995
    %v2084 = vpop.f32.mrf.mxu0
    %v2085 = vadd.f32 %v2050, %v2084
    %v2086 = vpop.f32.mrf.mxu0
    %v2087 = vadd.f32 %v2050, %v2086
    %2088 = vdwg.mxu0
    %v2089 = vpack.c.bf16 %v2009, %v2007
    %v2090 = vpack.c.bf16 %v2048, %v2046
    %v2092 = vsel %vm379, %v2089, 0
    %v2095 = vsel %vm379, %v2090, 0
    %2097 = vmatpush.bf16.xpose.msra.mxu0 0
    %2098 = vmatpush.bf16.xpose.msra.mxu0 0
    %2099 = vmatpush.bf16.xpose.msra.mxu0 0
    %2100 = vmatpush.bf16.xpose.msra.mxu0 0
    %2101 = vmatpush.bf16.xpose.msra.mxu0 0
    %2102 = vmatpush.bf16.xpose.msra.mxu0 0
    %2103 = vmatpush.bf16.xpose.msra.mxu0 0
    %2104 = vmatpush.bf16.xpose.msra.mxu0 %v2095
    %2105 = vmatmul.bf16.gmra.mxu0 %v2092
    %v2106 = vpop.f32.mrf.mxu0
    %v2107 = vadd.f32 %v155, %v2106
    %v2108 = vpop.f32.mrf.mxu0
    %v2109 = vadd.f32 %v156, %v2108
    %2110 = vdwg.mxu0
    %v2111 = vsel %vm400, %v2107, -inf
    %2112 = vmax.xlane.f32.xlu0 %v2111
    %v2113 = vpop.xlane.xlu0 %2112
    %v2114 = vsel %vm400, %v2109, -inf
    %2115 = vmax.xlane.f32.xlu0 %v2114
    %v2116 = vpop.xlane.xlu0 %2115
    %v2117 = vsub.f32 %v2107, %v2113
    %v2118 = vsub.f32 %v2109, %v2116
    %v2119 = vmul.f32 %v2117, 1.442695
    %v2120 = vpow.pop %v2119
    %v2121 = vmul.f32 %v2118, 1.442695
    %v2122 = vpow.pop %v2121
    %v2123 = vsel %vm400, %v2120, 0.0
    %2124 = vadd.xlane.f32.xlu0 %v2123
    %v2125 = vpop.xlane.xlu0 %2124
    %v2126 = vsel %vm400, %v2122, 0.0
    %2127 = vadd.xlane.f32.xlu0 %v2126
    %v2128 = vpop.xlane.xlu0 %2127
    %v2129 = vrcp.pop %v2125
    %v2130 = vrcp.pop %v2128
    %v2131 = vmul.f32 %v2120, %v2129
    %v2132 = vmul.f32 %v2122, %v2130
    %v2133 = vpack.c.bf16 %v2132, %v2131
    %v2134 = vpack.c.bf16 %v2087, %v2085
    %v2136 = vsel %vm400, %v2133, 0
    %2138 = vmatpush.bf16.msra.mxu0 0
    %2139 = vmatpush.bf16.msra.mxu0 0
    %2140 = vmatpush.bf16.msra.mxu0 0
    %2141 = vmatpush.bf16.msra.mxu0 0
    %2142 = vmatpush.bf16.msra.mxu0 0
    %2143 = vmatpush.bf16.msra.mxu0 0
    %2144 = vmatpush.bf16.msra.mxu0 0
    %2145 = vmatpush.bf16.msra.mxu0 %v2134
    %2146 = vmatmul.bf16.gmra.mxu0 %v2136
    %v2147 = vpop.f32.mrf.mxu0
    %v2148 = vadd.f32 0.0, %v2147
    %v2149 = vpop.f32.mrf.mxu0
    %v2150 = vadd.f32 0.0, %v2149
    %2151 = vdwg.mxu0
    %v2152 = vpack.c.bf16 %v2150, %v2148
    %v2161 = vunpack.c.l.b16 %v1870
    %v2162 = vunpack.c.l.b16 %v1871
    %v2163 = vunpack.c.l.b16 %v1872
    %v2164 = vunpack.c.l.b16 %v1873
    %v2165 = vunpack.c.l.b16 %v1874
    %v2166 = vunpack.c.l.b16 %v1875
    %v2167 = vunpack.c.l.b16 %v1876
    %v2168 = vunpack.c.l.b16 %v1877
    %v2169 = vpack.c.b16 %v2162, %v2161
    %v2170 = vpack.c.b16 %v2164, %v2163
    %v2171 = vpack.c.b16 %v2166, %v2165
    %v2172 = vpack.c.b16 %v2168, %v2167
    %2178 = vrot.lane.b32.xlu0 %v1969, 96
    %v2179 = vpop.permute.xlu0 %2178
    %2181 = vmatpush.bf16.msra.mxu0 0
    %2182 = vmatpush.bf16.msra.mxu0 0
    %2183 = vmatpush.bf16.msra.mxu0 0
    %2184 = vmatpush.bf16.msra.mxu0 0
    %2185 = vmatpush.bf16.msra.mxu0 %v2172
    %2186 = vmatpush.bf16.msra.mxu0 %v2171
    %2187 = vmatpush.bf16.msra.mxu0 %v2170
    %2188 = vmatpush.bf16.msra.mxu0 %v2169
    %2189 = vmatmul.bf16.gmra.mxu0 %v1995
    %v2190 = vpop.f32.mrf.mxu0
    %v2191 = vadd.f32 %v2179, %v2190
    %v2192 = vpop.f32.mrf.mxu0
    %v2193 = vadd.f32 %v2179, %v2192
    %2194 = vdwg.mxu0
    %v2203 = vunpack.c.l.b16 %v1887
    %v2204 = vunpack.c.l.b16 %v1888
    %v2205 = vunpack.c.l.b16 %v1889
    %v2206 = vunpack.c.l.b16 %v1890
    %v2207 = vunpack.c.l.b16 %v1891
    %v2208 = vunpack.c.l.b16 %v1892
    %v2209 = vunpack.c.l.b16 %v1893
    %v2210 = vunpack.c.l.b16 %v1894
    %v2211 = vpack.c.b16 %v2204, %v2203
    %v2212 = vpack.c.b16 %v2206, %v2205
    %v2213 = vpack.c.b16 %v2208, %v2207
    %v2214 = vpack.c.b16 %v2210, %v2209
    %2220 = vrot.lane.b32.xlu0 %v2011, 96
    %v2221 = vpop.permute.xlu0 %2220
    %2223 = vmatpush.bf16.msra.mxu0 0
    %2224 = vmatpush.bf16.msra.mxu0 0
    %2225 = vmatpush.bf16.msra.mxu0 0
    %2226 = vmatpush.bf16.msra.mxu0 0
    %2227 = vmatpush.bf16.msra.mxu0 %v2214
    %2228 = vmatpush.bf16.msra.mxu0 %v2213
    %2229 = vmatpush.bf16.msra.mxu0 %v2212
    %2230 = vmatpush.bf16.msra.mxu0 %v2211
    %2231 = vmatmul.bf16.gmra.mxu0 %v1995
    %v2232 = vpop.f32.mrf.mxu0
    %v2233 = vadd.f32 %v2221, %v2232
    %v2234 = vpop.f32.mrf.mxu0
    %v2235 = vadd.f32 %v2221, %v2234
    %2236 = vdwg.mxu0
    %v2245 = vunpack.c.l.b16 %v1904
    %v2246 = vunpack.c.l.b16 %v1905
    %v2247 = vunpack.c.l.b16 %v1906
    %v2248 = vunpack.c.l.b16 %v1907
    %v2249 = vunpack.c.l.b16 %v1908
    %v2250 = vunpack.c.l.b16 %v1909
    %v2251 = vunpack.c.l.b16 %v1910
    %v2252 = vunpack.c.l.b16 %v1911
    %v2253 = vpack.c.b16 %v2246, %v2245
    %v2254 = vpack.c.b16 %v2248, %v2247
    %v2255 = vpack.c.b16 %v2250, %v2249
    %v2256 = vpack.c.b16 %v2252, %v2251
    %2262 = vrot.lane.b32.xlu0 %v2050, 96
    %v2263 = vpop.permute.xlu0 %2262
    %2265 = vmatpush.bf16.msra.mxu0 0
    %2266 = vmatpush.bf16.msra.mxu0 0
    %2267 = vmatpush.bf16.msra.mxu0 0
    %2268 = vmatpush.bf16.msra.mxu0 0
    %2269 = vmatpush.bf16.msra.mxu0 %v2256
    %2270 = vmatpush.bf16.msra.mxu0 %v2255
    %2271 = vmatpush.bf16.msra.mxu0 %v2254
    %2272 = vmatpush.bf16.msra.mxu0 %v2253
    %2273 = vmatmul.bf16.gmra.mxu0 %v1995
    %v2274 = vpop.f32.mrf.mxu0
    %v2275 = vadd.f32 %v2263, %v2274
    %v2276 = vpop.f32.mrf.mxu0
    %v2277 = vadd.f32 %v2263, %v2276
    %2278 = vdwg.mxu0
    %v2279 = vpack.c.bf16 %v2193, %v2191
    %v2280 = vpack.c.bf16 %v2235, %v2233
    %v2282 = vsel %vm379, %v2279, 0
    %v2285 = vsel %vm379, %v2280, 0
    %2287 = vmatpush.bf16.xpose.msra.mxu0 0
    %2288 = vmatpush.bf16.xpose.msra.mxu0 0
    %2289 = vmatpush.bf16.xpose.msra.mxu0 0
    %2290 = vmatpush.bf16.xpose.msra.mxu0 0
    %2291 = vmatpush.bf16.xpose.msra.mxu0 0
    %2292 = vmatpush.bf16.xpose.msra.mxu0 0
    %2293 = vmatpush.bf16.xpose.msra.mxu0 0
    %2294 = vmatpush.bf16.xpose.msra.mxu0 %v2285
    %2295 = vmatmul.bf16.gmra.mxu0 %v2282
    %v2296 = vpop.f32.mrf.mxu0
    %v2297 = vadd.f32 %v155, %v2296
    %v2298 = vpop.f32.mrf.mxu0
    %v2299 = vadd.f32 %v156, %v2298
    %2300 = vdwg.mxu0
    %v2301 = vsel %vm400, %v2297, -inf
    %2302 = vmax.xlane.f32.xlu0 %v2301
    %v2303 = vpop.xlane.xlu0 %2302
    %v2304 = vsel %vm400, %v2299, -inf
    %2305 = vmax.xlane.f32.xlu0 %v2304
    %v2306 = vpop.xlane.xlu0 %2305
    %v2307 = vsub.f32 %v2297, %v2303
    %v2308 = vsub.f32 %v2299, %v2306
    %v2309 = vmul.f32 %v2307, 1.442695
    %v2310 = vpow.pop %v2309
    %v2311 = vmul.f32 %v2308, 1.442695
    %v2312 = vpow.pop %v2311
    %v2313 = vsel %vm400, %v2310, 0.0
    %2314 = vadd.xlane.f32.xlu0 %v2313
    %v2315 = vpop.xlane.xlu0 %2314
    %v2316 = vsel %vm400, %v2312, 0.0
    %2317 = vadd.xlane.f32.xlu0 %v2316
    %v2318 = vpop.xlane.xlu0 %2317
    %v2319 = vrcp.pop %v2315
    %v2320 = vrcp.pop %v2318
    %v2321 = vmul.f32 %v2310, %v2319
    %v2322 = vmul.f32 %v2312, %v2320
    %v2323 = vpack.c.bf16 %v2322, %v2321
    %v2324 = vpack.c.bf16 %v2277, %v2275
    %v2326 = vsel %vm400, %v2323, 0
    %2328 = vmatpush.bf16.msra.mxu0 0
    %2329 = vmatpush.bf16.msra.mxu0 0
    %2330 = vmatpush.bf16.msra.mxu0 0
    %2331 = vmatpush.bf16.msra.mxu0 0
    %2332 = vmatpush.bf16.msra.mxu0 0
    %2333 = vmatpush.bf16.msra.mxu0 0
    %2334 = vmatpush.bf16.msra.mxu0 0
    %2335 = vmatpush.bf16.msra.mxu0 %v2324
    %2336 = vmatmul.bf16.gmra.mxu0 %v2326
    %v2337 = vpop.f32.mrf.mxu0
    %v2338 = vadd.f32 0.0, %v2337
    %v2339 = vpop.f32.mrf.mxu0
    %v2340 = vadd.f32 0.0, %v2339
    %2341 = vdwg.mxu0
    %v2342 = vpack.c.bf16 %v2340, %v2338
    %v2347 = vunpack.c.l.b16 %v1917
    %v2348 = vunpack.c.l.b16 %v1918
    %v2349 = vunpack.c.l.b16 %v1919
    %v2350 = vunpack.c.l.b16 %v1920
    %v2351 = vpack.c.b16 %v2348, %v2347
    %v2352 = vpack.c.b16 %v2350, %v2349
    %v2356 = vsel %vm379, %v2342, 0
    %2358 = vmatpush.bf16.msra.mxu0 0
    %2359 = vmatpush.bf16.msra.mxu0 0
    %2360 = vmatpush.bf16.msra.mxu0 0
    %2361 = vmatpush.bf16.msra.mxu0 0
    %2362 = vmatpush.bf16.msra.mxu0 0
    %2363 = vmatpush.bf16.msra.mxu0 0
    %2364 = vmatpush.bf16.msra.mxu0 %v2352
    %2365 = vmatpush.bf16.msra.mxu0 %v2351
    %2366 = vmatmul.bf16.gmra.mxu0 %v2356
    %v2367 = vpop.f32.mrf.mxu0
    %v2368 = vadd.f32 0.0, %v2367
    %v2369 = vpop.f32.mrf.mxu0
    %v2370 = vadd.f32 0.0, %v2369
    %2371 = vdwg.mxu0
    %v2376 = vunpack.c.l.b16 %v1913
    %v2377 = vunpack.c.l.b16 %v1914
    %v2378 = vunpack.c.l.b16 %v1915
    %v2379 = vunpack.c.l.b16 %v1916
    %v2380 = vpack.c.b16 %v2377, %v2376
    %v2381 = vpack.c.b16 %v2379, %v2378
    %v2385 = vsel %vm379, %v2152, 0
    %2387 = vmatpush.bf16.msra.mxu0 0
    %2388 = vmatpush.bf16.msra.mxu0 0
    %2389 = vmatpush.bf16.msra.mxu0 0
    %2390 = vmatpush.bf16.msra.mxu0 0
    %2391 = vmatpush.bf16.msra.mxu0 0
    %2392 = vmatpush.bf16.msra.mxu0 0
    %2393 = vmatpush.bf16.msra.mxu0 %v2381
    %2394 = vmatpush.bf16.msra.mxu0 %v2380
    %2395 = vmatmul.bf16.gmra.mxu0 %v2385
    %v2396 = vpop.f32.mrf.mxu0
    %v2397 = vadd.f32 %v2368, %v2396
    %v2398 = vpop.f32.mrf.mxu0
    %v2399 = vadd.f32 %v2370, %v2398
    %2400 = vdwg.mxu0
    %v2401 = vperm.slane %v1966, 3
    %v2402 = vadd.f32 %v2397, %v2401
    %v2403 = vadd.f32 %v2399, %v2401
    %v2404 = vadd.f32 %v1859, %v2402
    %v2405 = vadd.f32 %v1860, %v2403
    %v2406 = vsel %vm97, %v2404, 0.0
    %2407 = vadd.xlane.f32.xlu0 %v2406
    %v2408 = vpop.xlane.xlu0 %2407
    %v2409 = vsel %vm97, %v2405, 0.0
    %2410 = vadd.xlane.f32.xlu0 %v2409
    %v2411 = vpop.xlane.xlu0 %2410
    %v2412 = vmul.f32 %v2408, %v110
    %v2413 = vmul.f32 %v2411, %v110
    %v2414 = vsub.f32 %v2404, %v2412
    %v2415 = vsub.f32 %v2405, %v2413
    %v2416 = vmul.f32 %v2414, %v2414
    %v2417 = vmul.f32 %v2415, %v2415
    %v2418 = vsel %vm97, %v2416, 0.0
    %2419 = vadd.xlane.f32.xlu0 %v2418
    %v2420 = vpop.xlane.xlu0 %2419
    %v2421 = vsel %vm97, %v2417, 0.0
    %2422 = vadd.xlane.f32.xlu0 %v2421
    %v2423 = vpop.xlane.xlu0 %2422
    %v2424 = vmul.f32 %v2420, %v110
    %v2425 = vmul.f32 %v2423, %v110
    %v2426 = vadd.f32 %v2424, 1e-05
    %v2427 = vadd.f32 %v2425, 1e-05
    %v2428 = vrsqrt.pop %v2426
    %v2429 = vmul.f32 %v2428, %v2426
    %v2430 = vmul.f32 %v2429, %v2428
    %v2431 = vmul.f32 0.5, %v2430
    %v2432 = vsub.f32 1.5, %v2431
    %v2433 = vmul.f32 %v2428, %v2432
    %vm2434 = vweird.f32 %v2426
    %vm2435 = vweird.f32 %v2428
    %vm2436 = vmor %vm2434, %vm2435
    %v2437 = vsel %vm2436, %v2428, %v2433
    %v2438 = vrsqrt.pop %v2427
    %v2439 = vmul.f32 %v2438, %v2427
    %v2440 = vmul.f32 %v2439, %v2438
    %v2441 = vmul.f32 0.5, %v2440
    %v2442 = vsub.f32 1.5, %v2441
    %v2443 = vmul.f32 %v2438, %v2442
    %vm2444 = vweird.f32 %v2427
    %vm2445 = vweird.f32 %v2438
    %vm2446 = vmor %vm2444, %vm2445
    %v2447 = vsel %vm2446, %v2438, %v2443
    %v2448 = vmul.f32 %v2414, %v2437
    %v2449 = vmul.f32 %v2415, %v2447
    %v2450 = vperm.slane %v1966, 4
    %v2451 = vmul.f32 %v2448, %v2450
    %v2452 = vmul.f32 %v2449, %v2450
    %v2453 = vperm.slane %v1966, 5
    %v2454 = vadd.f32 %v2451, %v2453
    %v2455 = vadd.f32 %v2452, %v2453
    %v2456 = vpack.c.bf16 %v2455, %v2454
    %v2458 = vperm.slane %v1931, 0
    %v2459 = vperm.slane %v1931, 1
    %v2470 = vunpack.c.l.b16 %v1922
    %v2471 = vunpack.c.h.b16 %v1922
    %v2472 = vunpack.c.l.b16 %v1923
    %v2473 = vunpack.c.h.b16 %v1923
    %v2474 = vunpack.c.l.b16 %v1924
    %v2475 = vunpack.c.h.b16 %v1924
    %v2476 = vunpack.c.l.b16 %v1925
    %v2477 = vunpack.c.h.b16 %v1925
    %v2478 = vunpack.c.l.b16 %v1926
    %v2479 = vunpack.c.h.b16 %v1926
    %v2480 = vunpack.c.l.b16 %v1927
    %v2481 = vunpack.c.h.b16 %v1927
    %v2482 = vunpack.c.l.b16 %v1928
    %v2483 = vunpack.c.h.b16 %v1928
    %v2484 = vunpack.c.l.b16 %v1929
    %v2485 = vunpack.c.h.b16 %v1929
    %v2486 = vpack.c.b16 %v2472, %v2470
    %v2487 = vpack.c.b16 %v2473, %v2471
    %v2488 = vpack.c.b16 %v2476, %v2474
    %v2489 = vpack.c.b16 %v2477, %v2475
    %v2490 = vpack.c.b16 %v2480, %v2478
    %v2491 = vpack.c.b16 %v2481, %v2479
    %v2492 = vpack.c.b16 %v2484, %v2482
    %v2493 = vpack.c.b16 %v2485, %v2483
    %v2503 = vsel %vm97, %v2456, 0
    %2505 = vmatpush.bf16.msra.mxu0 0
    %2506 = vmatpush.bf16.msra.mxu0 0
    %2507 = vmatpush.bf16.msra.mxu0 0
    %2508 = vmatpush.bf16.msra.mxu0 0
    %2509 = vmatpush.bf16.msra.mxu0 %v2492
    %2510 = vmatpush.bf16.msra.mxu0 %v2490
    %2511 = vmatpush.bf16.msra.mxu0 %v2488
    %2512 = vmatpush.bf16.msra.mxu0 %v2486
    %2513 = vmatmul.bf16.gmra.mxu0 %v2503
    %v2514 = vpop.f32.mrf.mxu0
    %v2515 = vadd.f32 %v2458, %v2514
    %v2516 = vpop.f32.mrf.mxu0
    %v2517 = vadd.f32 %v2458, %v2516
    %2518 = vdwg.mxu0
    %2519 = vmatpush.bf16.msra.mxu0 0
    %2520 = vmatpush.bf16.msra.mxu0 0
    %2521 = vmatpush.bf16.msra.mxu0 0
    %2522 = vmatpush.bf16.msra.mxu0 0
    %2523 = vmatpush.bf16.msra.mxu0 %v2493
    %2524 = vmatpush.bf16.msra.mxu0 %v2491
    %2525 = vmatpush.bf16.msra.mxu0 %v2489
    %2526 = vmatpush.bf16.msra.mxu0 %v2487
    %2527 = vmatmul.bf16.gmra.mxu0 %v2503
    %v2528 = vpop.f32.mrf.mxu0
    %v2529 = vadd.f32 %v2459, %v2528
    %v2530 = vpop.f32.mrf.mxu0
    %v2531 = vadd.f32 %v2459, %v2530
    %2532 = vdwg.mxu0
    %v2533 = vmax.f32 %v2515, 0.0
    %v2534 = vmax.f32 %v2529, 0.0
    %v2535 = vmax.f32 %v2517, 0.0
    %v2536 = vmax.f32 %v2531, 0.0
    %v2537 = vpack.c.bf16 %v2535, %v2533
    %v2538 = vpack.c.bf16 %v2536, %v2534
    %v2539 = vperm.slane %v1967, 0
    %v2572 = vunpack.c.l.b16 %v1933
    %v2573 = vunpack.c.l.b16 %v1934
    %v2574 = vunpack.c.l.b16 %v1935
    %v2575 = vunpack.c.l.b16 %v1936
    %v2576 = vunpack.c.l.b16 %v1937
    %v2577 = vunpack.c.l.b16 %v1938
    %v2578 = vunpack.c.l.b16 %v1939
    %v2579 = vunpack.c.l.b16 %v1940
    %v2580 = vunpack.c.l.b16 %v1941
    %v2581 = vunpack.c.l.b16 %v1942
    %v2582 = vunpack.c.l.b16 %v1943
    %v2583 = vunpack.c.l.b16 %v1944
    %v2584 = vunpack.c.l.b16 %v1945
    %v2585 = vunpack.c.l.b16 %v1946
    %v2586 = vunpack.c.l.b16 %v1947
    %v2587 = vunpack.c.l.b16 %v1948
    %v2588 = vunpack.c.l.b16 %v1949
    %v2589 = vunpack.c.l.b16 %v1950
    %v2590 = vunpack.c.l.b16 %v1951
    %v2591 = vunpack.c.l.b16 %v1952
    %v2592 = vunpack.c.l.b16 %v1953
    %v2593 = vunpack.c.l.b16 %v1954
    %v2594 = vunpack.c.l.b16 %v1955
    %v2595 = vunpack.c.l.b16 %v1956
    %v2596 = vunpack.c.l.b16 %v1957
    %v2597 = vunpack.c.l.b16 %v1958
    %v2598 = vunpack.c.l.b16 %v1959
    %v2599 = vunpack.c.l.b16 %v1960
    %v2600 = vunpack.c.l.b16 %v1961
    %v2601 = vunpack.c.l.b16 %v1962
    %v2602 = vunpack.c.l.b16 %v1963
    %v2603 = vunpack.c.l.b16 %v1964
    %v2604 = vpack.c.b16 %v2573, %v2572
    %v2605 = vpack.c.b16 %v2575, %v2574
    %v2606 = vpack.c.b16 %v2577, %v2576
    %v2607 = vpack.c.b16 %v2579, %v2578
    %v2608 = vpack.c.b16 %v2581, %v2580
    %v2609 = vpack.c.b16 %v2583, %v2582
    %v2610 = vpack.c.b16 %v2585, %v2584
    %v2611 = vpack.c.b16 %v2587, %v2586
    %v2612 = vpack.c.b16 %v2589, %v2588
    %v2613 = vpack.c.b16 %v2591, %v2590
    %v2614 = vpack.c.b16 %v2593, %v2592
    %v2615 = vpack.c.b16 %v2595, %v2594
    %v2616 = vpack.c.b16 %v2597, %v2596
    %v2617 = vpack.c.b16 %v2599, %v2598
    %v2618 = vpack.c.b16 %v2601, %v2600
    %v2619 = vpack.c.b16 %v2603, %v2602
    %2636 = vmatpush.bf16.msra.mxu0 %v2611
    %2637 = vmatpush.bf16.msra.mxu0 %v2610
    %2638 = vmatpush.bf16.msra.mxu0 %v2609
    %2639 = vmatpush.bf16.msra.mxu0 %v2608
    %2640 = vmatpush.bf16.msra.mxu0 %v2607
    %2641 = vmatpush.bf16.msra.mxu0 %v2606
    %2642 = vmatpush.bf16.msra.mxu0 %v2605
    %2643 = vmatpush.bf16.msra.mxu0 %v2604
    %2644 = vmatmul.bf16.gmra.mxu0 %v2537
    %v2645 = vpop.f32.mrf.mxu0
    %v2646 = vadd.f32 %v2539, %v2645
    %v2647 = vpop.f32.mrf.mxu0
    %v2648 = vadd.f32 %v2539, %v2647
    %2649 = vdwg.mxu0
    %2650 = vmatpush.bf16.msra.mxu0 %v2619
    %2651 = vmatpush.bf16.msra.mxu0 %v2618
    %2652 = vmatpush.bf16.msra.mxu0 %v2617
    %2653 = vmatpush.bf16.msra.mxu0 %v2616
    %2654 = vmatpush.bf16.msra.mxu0 %v2615
    %2655 = vmatpush.bf16.msra.mxu0 %v2614
    %2656 = vmatpush.bf16.msra.mxu0 %v2613
    %2657 = vmatpush.bf16.msra.mxu0 %v2612
    %2658 = vmatmul.bf16.gmra.mxu0 %v2538
    %v2659 = vpop.f32.mrf.mxu0
    %v2660 = vadd.f32 %v2646, %v2659
    %v2661 = vpop.f32.mrf.mxu0
    %v2662 = vadd.f32 %v2648, %v2661
    %2663 = vdwg.mxu0
    %v2664 = vadd.f32 %v2454, %v2660
    %v2665 = vadd.f32 %v2455, %v2662
    %v2666 = vsel %vm97, %v2664, 0.0
    %2667 = vadd.xlane.f32.xlu0 %v2666
    %v2668 = vpop.xlane.xlu0 %2667
    %v2669 = vsel %vm97, %v2665, 0.0
    %2670 = vadd.xlane.f32.xlu0 %v2669
    %v2671 = vpop.xlane.xlu0 %2670
    %v2672 = vmul.f32 %v2668, %v110
    %v2673 = vmul.f32 %v2671, %v110
    %v2674 = vsub.f32 %v2664, %v2672
    %v2675 = vsub.f32 %v2665, %v2673
    %v2676 = vmul.f32 %v2674, %v2674
    %v2677 = vmul.f32 %v2675, %v2675
    %v2678 = vsel %vm97, %v2676, 0.0
    %2679 = vadd.xlane.f32.xlu0 %v2678
    %v2680 = vpop.xlane.xlu0 %2679
    %v2681 = vsel %vm97, %v2677, 0.0
    %2682 = vadd.xlane.f32.xlu0 %v2681
    %v2683 = vpop.xlane.xlu0 %2682
    %v2684 = vmul.f32 %v2680, %v110
    %v2685 = vmul.f32 %v2683, %v110
    %v2686 = vadd.f32 %v2684, 1e-05
    %v2687 = vadd.f32 %v2685, 1e-05
    %v2688 = vrsqrt.pop %v2686
    %v2689 = vmul.f32 %v2688, %v2686
    %v2690 = vmul.f32 %v2689, %v2688
    %v2691 = vmul.f32 0.5, %v2690
    %v2692 = vsub.f32 1.5, %v2691
    %v2693 = vmul.f32 %v2688, %v2692
    %vm2694 = vweird.f32 %v2686
    %vm2695 = vweird.f32 %v2688
    %vm2696 = vmor %vm2694, %vm2695
    %v2697 = vsel %vm2696, %v2688, %v2693
    %v2698 = vrsqrt.pop %v2687
    %v2699 = vmul.f32 %v2698, %v2687
    %v2700 = vmul.f32 %v2699, %v2698
    %v2701 = vmul.f32 0.5, %v2700
    %v2702 = vsub.f32 1.5, %v2701
    %v2703 = vmul.f32 %v2698, %v2702
    %vm2704 = vweird.f32 %v2687
    %vm2705 = vweird.f32 %v2698
    %vm2706 = vmor %vm2704, %vm2705
    %v2707 = vsel %vm2706, %v2698, %v2703
    %v2708 = vmul.f32 %v2674, %v2697
    %v2709 = vmul.f32 %v2675, %v2707
    %v2710 = vperm.slane %v1966, 6
    %v2711 = vmul.f32 %v2708, %v2710
    %v2712 = vmul.f32 %v2709, %v2710
    %v2713 = vperm.slane %v1966, 7
    %v2714 = vadd.f32 %v2711, %v2713
    %v2715 = vadd.f32 %v2712, %v2713
    %s2716 = scalar_lea.vmem %s2, 192
    %v2717 = vld [vmem:[%s2716] sm:$0xf]
    %v2718 = vld [vmem:[%s2716 + $0x4] sm:$0xf]
    %v2719 = vld [vmem:[%s2716 + $0x8] sm:$0xf]
    %v2720 = vld [vmem:[%s2716 + $0xc] sm:$0xf]
    %v2721 = vld [vmem:[%s2716 + $0x10] sm:$0xf]
    %v2722 = vld [vmem:[%s2716 + $0x14] sm:$0xf]
    %v2723 = vld [vmem:[%s2716 + $0x18] sm:$0xf]
    %v2724 = vld [vmem:[%s2716 + $0x1c] sm:$0xf]
    %v2725 = vld [vmem:[%s2716 + $0x20] sm:$0xf]
    %v2726 = vld [vmem:[%s2716 + $0x24] sm:$0xf]
    %v2727 = vld [vmem:[%s2716 + $0x28] sm:$0xf]
    %v2728 = vld [vmem:[%s2716 + $0x2c] sm:$0xf]
    %v2729 = vld [vmem:[%s2716 + $0x30] sm:$0xf]
    %v2730 = vld [vmem:[%s2716 + $0x34] sm:$0xf]
    %v2731 = vld [vmem:[%s2716 + $0x38] sm:$0xf]
    %v2732 = vld [vmem:[%s2716 + $0x3c] sm:$0xf]
    %s2733 = scalar_lea.vmem %s3, 192
    %v2734 = vld [vmem:[%s2733] sm:$0xf]
    %v2735 = vld [vmem:[%s2733 + $0x4] sm:$0xf]
    %v2736 = vld [vmem:[%s2733 + $0x8] sm:$0xf]
    %v2737 = vld [vmem:[%s2733 + $0xc] sm:$0xf]
    %v2738 = vld [vmem:[%s2733 + $0x10] sm:$0xf]
    %v2739 = vld [vmem:[%s2733 + $0x14] sm:$0xf]
    %v2740 = vld [vmem:[%s2733 + $0x18] sm:$0xf]
    %v2741 = vld [vmem:[%s2733 + $0x1c] sm:$0xf]
    %v2742 = vld [vmem:[%s2733 + $0x20] sm:$0xf]
    %v2743 = vld [vmem:[%s2733 + $0x24] sm:$0xf]
    %v2744 = vld [vmem:[%s2733 + $0x28] sm:$0xf]
    %v2745 = vld [vmem:[%s2733 + $0x2c] sm:$0xf]
    %v2746 = vld [vmem:[%s2733 + $0x30] sm:$0xf]
    %v2747 = vld [vmem:[%s2733 + $0x34] sm:$0xf]
    %v2748 = vld [vmem:[%s2733 + $0x38] sm:$0xf]
    %v2749 = vld [vmem:[%s2733 + $0x3c] sm:$0xf]
    %s2750 = scalar_lea.vmem %s4, 192
    %v2751 = vld [vmem:[%s2750] sm:$0xf]
    %v2752 = vld [vmem:[%s2750 + $0x4] sm:$0xf]
    %v2753 = vld [vmem:[%s2750 + $0x8] sm:$0xf]
    %v2754 = vld [vmem:[%s2750 + $0xc] sm:$0xf]
    %v2755 = vld [vmem:[%s2750 + $0x10] sm:$0xf]
    %v2756 = vld [vmem:[%s2750 + $0x14] sm:$0xf]
    %v2757 = vld [vmem:[%s2750 + $0x18] sm:$0xf]
    %v2758 = vld [vmem:[%s2750 + $0x1c] sm:$0xf]
    %v2759 = vld [vmem:[%s2750 + $0x20] sm:$0xf]
    %v2760 = vld [vmem:[%s2750 + $0x24] sm:$0xf]
    %v2761 = vld [vmem:[%s2750 + $0x28] sm:$0xf]
    %v2762 = vld [vmem:[%s2750 + $0x2c] sm:$0xf]
    %v2763 = vld [vmem:[%s2750 + $0x30] sm:$0xf]
    %v2764 = vld [vmem:[%s2750 + $0x34] sm:$0xf]
    %v2765 = vld [vmem:[%s2750 + $0x38] sm:$0xf]
    %v2766 = vld [vmem:[%s2750 + $0x3c] sm:$0xf]
    %s2767 = scalar_lea.vmem %s5, 96
    %v2768 = vld [vmem:[%s2767] sm:$0xf]
    %v2769 = vld [vmem:[%s2767 + $0x4] sm:$0xf]
    %v2770 = vld [vmem:[%s2767 + $0x8] sm:$0xf]
    %v2771 = vld [vmem:[%s2767 + $0xc] sm:$0xf]
    %v2772 = vld [vmem:[%s2767 + $0x10] sm:$0xf]
    %v2773 = vld [vmem:[%s2767 + $0x14] sm:$0xf]
    %v2774 = vld [vmem:[%s2767 + $0x18] sm:$0xf]
    %v2775 = vld [vmem:[%s2767 + $0x1c] sm:$0xf]
    %s2776 = scalar_lea.vmem %s6, 192
    %v2777 = vld [vmem:[%s2776] sm:$0xff]
    %v2778 = vld [vmem:[%s2776 + $0x8] sm:$0xff]
    %v2779 = vld [vmem:[%s2776 + $0x10] sm:$0xff]
    %v2780 = vld [vmem:[%s2776 + $0x18] sm:$0xff]
    %v2781 = vld [vmem:[%s2776 + $0x20] sm:$0xff]
    %v2782 = vld [vmem:[%s2776 + $0x28] sm:$0xff]
    %v2783 = vld [vmem:[%s2776 + $0x30] sm:$0xff]
    %v2784 = vld [vmem:[%s2776 + $0x38] sm:$0xff]
    %s2785 = scalar_lea.vmem %s7, 6
    %v2786 = vld [vmem:[%s2785] sm:$0x3]
    %s2787 = scalar_lea.vmem %s8, 384
    %v2788 = vld [vmem:[%s2787] sm:$0xf]
    %v2789 = vld [vmem:[%s2787 + $0x4] sm:$0xf]
    %v2790 = vld [vmem:[%s2787 + $0x8] sm:$0xf]
    %v2791 = vld [vmem:[%s2787 + $0xc] sm:$0xf]
    %v2792 = vld [vmem:[%s2787 + $0x10] sm:$0xf]
    %v2793 = vld [vmem:[%s2787 + $0x14] sm:$0xf]
    %v2794 = vld [vmem:[%s2787 + $0x18] sm:$0xf]
    %v2795 = vld [vmem:[%s2787 + $0x1c] sm:$0xf]
    %v2796 = vld [vmem:[%s2787 + $0x20] sm:$0xf]
    %v2797 = vld [vmem:[%s2787 + $0x24] sm:$0xf]
    %v2798 = vld [vmem:[%s2787 + $0x28] sm:$0xf]
    %v2799 = vld [vmem:[%s2787 + $0x2c] sm:$0xf]
    %v2800 = vld [vmem:[%s2787 + $0x30] sm:$0xf]
    %v2801 = vld [vmem:[%s2787 + $0x34] sm:$0xf]
    %v2802 = vld [vmem:[%s2787 + $0x38] sm:$0xf]
    %v2803 = vld [vmem:[%s2787 + $0x3c] sm:$0xf]
    %v2804 = vld [vmem:[%s2787 + $0x40] sm:$0xf]
    %v2805 = vld [vmem:[%s2787 + $0x44] sm:$0xf]
    %v2806 = vld [vmem:[%s2787 + $0x48] sm:$0xf]
    %v2807 = vld [vmem:[%s2787 + $0x4c] sm:$0xf]
    %v2808 = vld [vmem:[%s2787 + $0x50] sm:$0xf]
    %v2809 = vld [vmem:[%s2787 + $0x54] sm:$0xf]
    %v2810 = vld [vmem:[%s2787 + $0x58] sm:$0xf]
    %v2811 = vld [vmem:[%s2787 + $0x5c] sm:$0xf]
    %v2812 = vld [vmem:[%s2787 + $0x60] sm:$0xf]
    %v2813 = vld [vmem:[%s2787 + $0x64] sm:$0xf]
    %v2814 = vld [vmem:[%s2787 + $0x68] sm:$0xf]
    %v2815 = vld [vmem:[%s2787 + $0x6c] sm:$0xf]
    %v2816 = vld [vmem:[%s2787 + $0x70] sm:$0xf]
    %v2817 = vld [vmem:[%s2787 + $0x74] sm:$0xf]
    %v2818 = vld [vmem:[%s2787 + $0x78] sm:$0xf]
    %v2819 = vld [vmem:[%s2787 + $0x7c] sm:$0xf]
    %s2820 = scalar_lea.vmem %s9, 48
    %v2821 = vld [vmem:[%s2820] sm:$0xff]
    %v2822 = vld [vmem:[%s2820 + $0x8] sm:$0x1]
    %v2823 = vpack.c.bf16 %v2715, %v2714
    %v2824 = vperm.slane %v2821, 0
    %v2833 = vunpack.c.l.b16 %v2717
    %v2834 = vunpack.c.l.b16 %v2718
    %v2835 = vunpack.c.l.b16 %v2719
    %v2836 = vunpack.c.l.b16 %v2720
    %v2837 = vunpack.c.l.b16 %v2721
    %v2838 = vunpack.c.l.b16 %v2722
    %v2839 = vunpack.c.l.b16 %v2723
    %v2840 = vunpack.c.l.b16 %v2724
    %v2841 = vpack.c.b16 %v2834, %v2833
    %v2842 = vpack.c.b16 %v2836, %v2835
    %v2843 = vpack.c.b16 %v2838, %v2837
    %v2844 = vpack.c.b16 %v2840, %v2839
    %v2850 = vsel %vm97, %v2823, 0
    %2852 = vmatpush.bf16.msra.mxu0 0
    %2853 = vmatpush.bf16.msra.mxu0 0
    %2854 = vmatpush.bf16.msra.mxu0 0
    %2855 = vmatpush.bf16.msra.mxu0 0
    %2856 = vmatpush.bf16.msra.mxu0 %v2844
    %2857 = vmatpush.bf16.msra.mxu0 %v2843
    %2858 = vmatpush.bf16.msra.mxu0 %v2842
    %2859 = vmatpush.bf16.msra.mxu0 %v2841
    %2860 = vmatmul.bf16.gmra.mxu0 %v2850
    %v2861 = vpop.f32.mrf.mxu0
    %v2862 = vadd.f32 %v2824, %v2861
    %v2863 = vpop.f32.mrf.mxu0
    %v2864 = vadd.f32 %v2824, %v2863
    %2865 = vdwg.mxu0
    %v2866 = vperm.slane %v2821, 1
    %v2875 = vunpack.c.l.b16 %v2734
    %v2876 = vunpack.c.l.b16 %v2735
    %v2877 = vunpack.c.l.b16 %v2736
    %v2878 = vunpack.c.l.b16 %v2737
    %v2879 = vunpack.c.l.b16 %v2738
    %v2880 = vunpack.c.l.b16 %v2739
    %v2881 = vunpack.c.l.b16 %v2740
    %v2882 = vunpack.c.l.b16 %v2741
    %v2883 = vpack.c.b16 %v2876, %v2875
    %v2884 = vpack.c.b16 %v2878, %v2877
    %v2885 = vpack.c.b16 %v2880, %v2879
    %v2886 = vpack.c.b16 %v2882, %v2881
    %2891 = vmatpush.bf16.msra.mxu0 0
    %2892 = vmatpush.bf16.msra.mxu0 0
    %2893 = vmatpush.bf16.msra.mxu0 0
    %2894 = vmatpush.bf16.msra.mxu0 0
    %2895 = vmatpush.bf16.msra.mxu0 %v2886
    %2896 = vmatpush.bf16.msra.mxu0 %v2885
    %2897 = vmatpush.bf16.msra.mxu0 %v2884
    %2898 = vmatpush.bf16.msra.mxu0 %v2883
    %2899 = vmatmul.bf16.gmra.mxu0 %v2850
    %v2900 = vpop.f32.mrf.mxu0
    %v2901 = vadd.f32 %v2866, %v2900
    %v2902 = vpop.f32.mrf.mxu0
    %v2903 = vadd.f32 %v2866, %v2902
    %2904 = vdwg.mxu0
    %v2905 = vperm.slane %v2821, 2
    %v2914 = vunpack.c.l.b16 %v2751
    %v2915 = vunpack.c.l.b16 %v2752
    %v2916 = vunpack.c.l.b16 %v2753
    %v2917 = vunpack.c.l.b16 %v2754
    %v2918 = vunpack.c.l.b16 %v2755
    %v2919 = vunpack.c.l.b16 %v2756
    %v2920 = vunpack.c.l.b16 %v2757
    %v2921 = vunpack.c.l.b16 %v2758
    %v2922 = vpack.c.b16 %v2915, %v2914
    %v2923 = vpack.c.b16 %v2917, %v2916
    %v2924 = vpack.c.b16 %v2919, %v2918
    %v2925 = vpack.c.b16 %v2921, %v2920
    %2930 = vmatpush.bf16.msra.mxu0 0
    %2931 = vmatpush.bf16.msra.mxu0 0
    %2932 = vmatpush.bf16.msra.mxu0 0
    %2933 = vmatpush.bf16.msra.mxu0 0
    %2934 = vmatpush.bf16.msra.mxu0 %v2925
    %2935 = vmatpush.bf16.msra.mxu0 %v2924
    %2936 = vmatpush.bf16.msra.mxu0 %v2923
    %2937 = vmatpush.bf16.msra.mxu0 %v2922
    %2938 = vmatmul.bf16.gmra.mxu0 %v2850
    %v2939 = vpop.f32.mrf.mxu0
    %v2940 = vadd.f32 %v2905, %v2939
    %v2941 = vpop.f32.mrf.mxu0
    %v2942 = vadd.f32 %v2905, %v2941
    %2943 = vdwg.mxu0
    %v2944 = vpack.c.bf16 %v2864, %v2862
    %v2945 = vpack.c.bf16 %v2903, %v2901
    %v2947 = vsel %vm379, %v2944, 0
    %v2950 = vsel %vm379, %v2945, 0
    %2952 = vmatpush.bf16.xpose.msra.mxu0 0
    %2953 = vmatpush.bf16.xpose.msra.mxu0 0
    %2954 = vmatpush.bf16.xpose.msra.mxu0 0
    %2955 = vmatpush.bf16.xpose.msra.mxu0 0
    %2956 = vmatpush.bf16.xpose.msra.mxu0 0
    %2957 = vmatpush.bf16.xpose.msra.mxu0 0
    %2958 = vmatpush.bf16.xpose.msra.mxu0 0
    %2959 = vmatpush.bf16.xpose.msra.mxu0 %v2950
    %2960 = vmatmul.bf16.gmra.mxu0 %v2947
    %v2961 = vpop.f32.mrf.mxu0
    %v2962 = vadd.f32 %v155, %v2961
    %v2963 = vpop.f32.mrf.mxu0
    %v2964 = vadd.f32 %v156, %v2963
    %2965 = vdwg.mxu0
    %v2966 = vsel %vm400, %v2962, -inf
    %2967 = vmax.xlane.f32.xlu0 %v2966
    %v2968 = vpop.xlane.xlu0 %2967
    %v2969 = vsel %vm400, %v2964, -inf
    %2970 = vmax.xlane.f32.xlu0 %v2969
    %v2971 = vpop.xlane.xlu0 %2970
    %v2972 = vsub.f32 %v2962, %v2968
    %v2973 = vsub.f32 %v2964, %v2971
    %v2974 = vmul.f32 %v2972, 1.442695
    %v2975 = vpow.pop %v2974
    %v2976 = vmul.f32 %v2973, 1.442695
    %v2977 = vpow.pop %v2976
    %v2978 = vsel %vm400, %v2975, 0.0
    %2979 = vadd.xlane.f32.xlu0 %v2978
    %v2980 = vpop.xlane.xlu0 %2979
    %v2981 = vsel %vm400, %v2977, 0.0
    %2982 = vadd.xlane.f32.xlu0 %v2981
    %v2983 = vpop.xlane.xlu0 %2982
    %v2984 = vrcp.pop %v2980
    %v2985 = vrcp.pop %v2983
    %v2986 = vmul.f32 %v2975, %v2984
    %v2987 = vmul.f32 %v2977, %v2985
    %v2988 = vpack.c.bf16 %v2987, %v2986
    %v2989 = vpack.c.bf16 %v2942, %v2940
    %v2991 = vsel %vm400, %v2988, 0
    %2993 = vmatpush.bf16.msra.mxu0 0
    %2994 = vmatpush.bf16.msra.mxu0 0
    %2995 = vmatpush.bf16.msra.mxu0 0
    %2996 = vmatpush.bf16.msra.mxu0 0
    %2997 = vmatpush.bf16.msra.mxu0 0
    %2998 = vmatpush.bf16.msra.mxu0 0
    %2999 = vmatpush.bf16.msra.mxu0 0
    %3000 = vmatpush.bf16.msra.mxu0 %v2989
    %3001 = vmatmul.bf16.gmra.mxu0 %v2991
    %v3002 = vpop.f32.mrf.mxu0
    %v3003 = vadd.f32 0.0, %v3002
    %v3004 = vpop.f32.mrf.mxu0
    %v3005 = vadd.f32 0.0, %v3004
    %3006 = vdwg.mxu0
    %v3007 = vpack.c.bf16 %v3005, %v3003
    %v3016 = vunpack.c.l.b16 %v2725
    %v3017 = vunpack.c.l.b16 %v2726
    %v3018 = vunpack.c.l.b16 %v2727
    %v3019 = vunpack.c.l.b16 %v2728
    %v3020 = vunpack.c.l.b16 %v2729
    %v3021 = vunpack.c.l.b16 %v2730
    %v3022 = vunpack.c.l.b16 %v2731
    %v3023 = vunpack.c.l.b16 %v2732
    %v3024 = vpack.c.b16 %v3017, %v3016
    %v3025 = vpack.c.b16 %v3019, %v3018
    %v3026 = vpack.c.b16 %v3021, %v3020
    %v3027 = vpack.c.b16 %v3023, %v3022
    %3033 = vrot.lane.b32.xlu0 %v2824, 96
    %v3034 = vpop.permute.xlu0 %3033
    %3036 = vmatpush.bf16.msra.mxu0 0
    %3037 = vmatpush.bf16.msra.mxu0 0
    %3038 = vmatpush.bf16.msra.mxu0 0
    %3039 = vmatpush.bf16.msra.mxu0 0
    %3040 = vmatpush.bf16.msra.mxu0 %v3027
    %3041 = vmatpush.bf16.msra.mxu0 %v3026
    %3042 = vmatpush.bf16.msra.mxu0 %v3025
    %3043 = vmatpush.bf16.msra.mxu0 %v3024
    %3044 = vmatmul.bf16.gmra.mxu0 %v2850
    %v3045 = vpop.f32.mrf.mxu0
    %v3046 = vadd.f32 %v3034, %v3045
    %v3047 = vpop.f32.mrf.mxu0
    %v3048 = vadd.f32 %v3034, %v3047
    %3049 = vdwg.mxu0
    %v3058 = vunpack.c.l.b16 %v2742
    %v3059 = vunpack.c.l.b16 %v2743
    %v3060 = vunpack.c.l.b16 %v2744
    %v3061 = vunpack.c.l.b16 %v2745
    %v3062 = vunpack.c.l.b16 %v2746
    %v3063 = vunpack.c.l.b16 %v2747
    %v3064 = vunpack.c.l.b16 %v2748
    %v3065 = vunpack.c.l.b16 %v2749
    %v3066 = vpack.c.b16 %v3059, %v3058
    %v3067 = vpack.c.b16 %v3061, %v3060
    %v3068 = vpack.c.b16 %v3063, %v3062
    %v3069 = vpack.c.b16 %v3065, %v3064
    %3075 = vrot.lane.b32.xlu0 %v2866, 96
    %v3076 = vpop.permute.xlu0 %3075
    %3078 = vmatpush.bf16.msra.mxu0 0
    %3079 = vmatpush.bf16.msra.mxu0 0
    %3080 = vmatpush.bf16.msra.mxu0 0
    %3081 = vmatpush.bf16.msra.mxu0 0
    %3082 = vmatpush.bf16.msra.mxu0 %v3069
    %3083 = vmatpush.bf16.msra.mxu0 %v3068
    %3084 = vmatpush.bf16.msra.mxu0 %v3067
    %3085 = vmatpush.bf16.msra.mxu0 %v3066
    %3086 = vmatmul.bf16.gmra.mxu0 %v2850
    %v3087 = vpop.f32.mrf.mxu0
    %v3088 = vadd.f32 %v3076, %v3087
    %v3089 = vpop.f32.mrf.mxu0
    %v3090 = vadd.f32 %v3076, %v3089
    %3091 = vdwg.mxu0
    %v3100 = vunpack.c.l.b16 %v2759
    %v3101 = vunpack.c.l.b16 %v2760
    %v3102 = vunpack.c.l.b16 %v2761
    %v3103 = vunpack.c.l.b16 %v2762
    %v3104 = vunpack.c.l.b16 %v2763
    %v3105 = vunpack.c.l.b16 %v2764
    %v3106 = vunpack.c.l.b16 %v2765
    %v3107 = vunpack.c.l.b16 %v2766
    %v3108 = vpack.c.b16 %v3101, %v3100
    %v3109 = vpack.c.b16 %v3103, %v3102
    %v3110 = vpack.c.b16 %v3105, %v3104
    %v3111 = vpack.c.b16 %v3107, %v3106
    %3117 = vrot.lane.b32.xlu0 %v2905, 96
    %v3118 = vpop.permute.xlu0 %3117
    %3120 = vmatpush.bf16.msra.mxu0 0
    %3121 = vmatpush.bf16.msra.mxu0 0
    %3122 = vmatpush.bf16.msra.mxu0 0
    %3123 = vmatpush.bf16.msra.mxu0 0
    %3124 = vmatpush.bf16.msra.mxu0 %v3111
    %3125 = vmatpush.bf16.msra.mxu0 %v3110
    %3126 = vmatpush.bf16.msra.mxu0 %v3109
    %3127 = vmatpush.bf16.msra.mxu0 %v3108
    %3128 = vmatmul.bf16.gmra.mxu0 %v2850
    %v3129 = vpop.f32.mrf.mxu0
    %v3130 = vadd.f32 %v3118, %v3129
    %v3131 = vpop.f32.mrf.mxu0
    %v3132 = vadd.f32 %v3118, %v3131
    %3133 = vdwg.mxu0
    %v3134 = vpack.c.bf16 %v3048, %v3046
    %v3135 = vpack.c.bf16 %v3090, %v3088
    %v3137 = vsel %vm379, %v3134, 0
    %v3140 = vsel %vm379, %v3135, 0
    %3142 = vmatpush.bf16.xpose.msra.mxu0 0
    %3143 = vmatpush.bf16.xpose.msra.mxu0 0
    %3144 = vmatpush.bf16.xpose.msra.mxu0 0
    %3145 = vmatpush.bf16.xpose.msra.mxu0 0
    %3146 = vmatpush.bf16.xpose.msra.mxu0 0
    %3147 = vmatpush.bf16.xpose.msra.mxu0 0
    %3148 = vmatpush.bf16.xpose.msra.mxu0 0
    %3149 = vmatpush.bf16.xpose.msra.mxu0 %v3140
    %3150 = vmatmul.bf16.gmra.mxu0 %v3137
    %v3151 = vpop.f32.mrf.mxu0
    %v3152 = vadd.f32 %v155, %v3151
    %v3153 = vpop.f32.mrf.mxu0
    %v3154 = vadd.f32 %v156, %v3153
    %3155 = vdwg.mxu0
    %v3156 = vsel %vm400, %v3152, -inf
    %3157 = vmax.xlane.f32.xlu0 %v3156
    %v3158 = vpop.xlane.xlu0 %3157
    %v3159 = vsel %vm400, %v3154, -inf
    %3160 = vmax.xlane.f32.xlu0 %v3159
    %v3161 = vpop.xlane.xlu0 %3160
    %v3162 = vsub.f32 %v3152, %v3158
    %v3163 = vsub.f32 %v3154, %v3161
    %v3164 = vmul.f32 %v3162, 1.442695
    %v3165 = vpow.pop %v3164
    %v3166 = vmul.f32 %v3163, 1.442695
    %v3167 = vpow.pop %v3166
    %v3168 = vsel %vm400, %v3165, 0.0
    %3169 = vadd.xlane.f32.xlu0 %v3168
    %v3170 = vpop.xlane.xlu0 %3169
    %v3171 = vsel %vm400, %v3167, 0.0
    %3172 = vadd.xlane.f32.xlu0 %v3171
    %v3173 = vpop.xlane.xlu0 %3172
    %v3174 = vrcp.pop %v3170
    %v3175 = vrcp.pop %v3173
    %v3176 = vmul.f32 %v3165, %v3174
    %v3177 = vmul.f32 %v3167, %v3175
    %v3178 = vpack.c.bf16 %v3177, %v3176
    %v3179 = vpack.c.bf16 %v3132, %v3130
    %v3181 = vsel %vm400, %v3178, 0
    %3183 = vmatpush.bf16.msra.mxu0 0
    %3184 = vmatpush.bf16.msra.mxu0 0
    %3185 = vmatpush.bf16.msra.mxu0 0
    %3186 = vmatpush.bf16.msra.mxu0 0
    %3187 = vmatpush.bf16.msra.mxu0 0
    %3188 = vmatpush.bf16.msra.mxu0 0
    %3189 = vmatpush.bf16.msra.mxu0 0
    %3190 = vmatpush.bf16.msra.mxu0 %v3179
    %3191 = vmatmul.bf16.gmra.mxu0 %v3181
    %v3192 = vpop.f32.mrf.mxu0
    %v3193 = vadd.f32 0.0, %v3192
    %v3194 = vpop.f32.mrf.mxu0
    %v3195 = vadd.f32 0.0, %v3194
    %3196 = vdwg.mxu0
    %v3197 = vpack.c.bf16 %v3195, %v3193
    %v3202 = vunpack.c.l.b16 %v2772
    %v3203 = vunpack.c.l.b16 %v2773
    %v3204 = vunpack.c.l.b16 %v2774
    %v3205 = vunpack.c.l.b16 %v2775
    %v3206 = vpack.c.b16 %v3203, %v3202
    %v3207 = vpack.c.b16 %v3205, %v3204
    %v3211 = vsel %vm379, %v3197, 0
    %3213 = vmatpush.bf16.msra.mxu0 0
    %3214 = vmatpush.bf16.msra.mxu0 0
    %3215 = vmatpush.bf16.msra.mxu0 0
    %3216 = vmatpush.bf16.msra.mxu0 0
    %3217 = vmatpush.bf16.msra.mxu0 0
    %3218 = vmatpush.bf16.msra.mxu0 0
    %3219 = vmatpush.bf16.msra.mxu0 %v3207
    %3220 = vmatpush.bf16.msra.mxu0 %v3206
    %3221 = vmatmul.bf16.gmra.mxu0 %v3211
    %v3222 = vpop.f32.mrf.mxu0
    %v3223 = vadd.f32 0.0, %v3222
    %v3224 = vpop.f32.mrf.mxu0
    %v3225 = vadd.f32 0.0, %v3224
    %3226 = vdwg.mxu0
    %v3231 = vunpack.c.l.b16 %v2768
    %v3232 = vunpack.c.l.b16 %v2769
    %v3233 = vunpack.c.l.b16 %v2770
    %v3234 = vunpack.c.l.b16 %v2771
    %v3235 = vpack.c.b16 %v3232, %v3231
    %v3236 = vpack.c.b16 %v3234, %v3233
    %v3240 = vsel %vm379, %v3007, 0
    %3242 = vmatpush.bf16.msra.mxu0 0
    %3243 = vmatpush.bf16.msra.mxu0 0
    %3244 = vmatpush.bf16.msra.mxu0 0
    %3245 = vmatpush.bf16.msra.mxu0 0
    %3246 = vmatpush.bf16.msra.mxu0 0
    %3247 = vmatpush.bf16.msra.mxu0 0
    %3248 = vmatpush.bf16.msra.mxu0 %v3236
    %3249 = vmatpush.bf16.msra.mxu0 %v3235
    %3250 = vmatmul.bf16.gmra.mxu0 %v3240
    %v3251 = vpop.f32.mrf.mxu0
    %v3252 = vadd.f32 %v3223, %v3251
    %v3253 = vpop.f32.mrf.mxu0
    %v3254 = vadd.f32 %v3225, %v3253
    %3255 = vdwg.mxu0
    %v3256 = vperm.slane %v2821, 3
    %v3257 = vadd.f32 %v3252, %v3256
    %v3258 = vadd.f32 %v3254, %v3256
    %v3259 = vadd.f32 %v2714, %v3257
    %v3260 = vadd.f32 %v2715, %v3258
    %v3261 = vsel %vm97, %v3259, 0.0
    %3262 = vadd.xlane.f32.xlu0 %v3261
    %v3263 = vpop.xlane.xlu0 %3262
    %v3264 = vsel %vm97, %v3260, 0.0
    %3265 = vadd.xlane.f32.xlu0 %v3264
    %v3266 = vpop.xlane.xlu0 %3265
    %v3267 = vmul.f32 %v3263, %v110
    %v3268 = vmul.f32 %v3266, %v110
    %v3269 = vsub.f32 %v3259, %v3267
    %v3270 = vsub.f32 %v3260, %v3268
    %v3271 = vmul.f32 %v3269, %v3269
    %v3272 = vmul.f32 %v3270, %v3270
    %v3273 = vsel %vm97, %v3271, 0.0
    %3274 = vadd.xlane.f32.xlu0 %v3273
    %v3275 = vpop.xlane.xlu0 %3274
    %v3276 = vsel %vm97, %v3272, 0.0
    %3277 = vadd.xlane.f32.xlu0 %v3276
    %v3278 = vpop.xlane.xlu0 %3277
    %v3279 = vmul.f32 %v3275, %v110
    %v3280 = vmul.f32 %v3278, %v110
    %v3281 = vadd.f32 %v3279, 1e-05
    %v3282 = vadd.f32 %v3280, 1e-05
    %v3283 = vrsqrt.pop %v3281
    %v3284 = vmul.f32 %v3283, %v3281
    %v3285 = vmul.f32 %v3284, %v3283
    %v3286 = vmul.f32 0.5, %v3285
    %v3287 = vsub.f32 1.5, %v3286
    %v3288 = vmul.f32 %v3283, %v3287
    %vm3289 = vweird.f32 %v3281
    %vm3290 = vweird.f32 %v3283
    %vm3291 = vmor %vm3289, %vm3290
    %v3292 = vsel %vm3291, %v3283, %v3288
    %v3293 = vrsqrt.pop %v3282
    %v3294 = vmul.f32 %v3293, %v3282
    %v3295 = vmul.f32 %v3294, %v3293
    %v3296 = vmul.f32 0.5, %v3295
    %v3297 = vsub.f32 1.5, %v3296
    %v3298 = vmul.f32 %v3293, %v3297
    %vm3299 = vweird.f32 %v3282
    %vm3300 = vweird.f32 %v3293
    %vm3301 = vmor %vm3299, %vm3300
    %v3302 = vsel %vm3301, %v3293, %v3298
    %v3303 = vmul.f32 %v3269, %v3292
    %v3304 = vmul.f32 %v3270, %v3302
    %v3305 = vperm.slane %v2821, 4
    %v3306 = vmul.f32 %v3303, %v3305
    %v3307 = vmul.f32 %v3304, %v3305
    %v3308 = vperm.slane %v2821, 5
    %v3309 = vadd.f32 %v3306, %v3308
    %v3310 = vadd.f32 %v3307, %v3308
    %v3311 = vpack.c.bf16 %v3310, %v3309
    %v3313 = vperm.slane %v2786, 0
    %v3314 = vperm.slane %v2786, 1
    %v3325 = vunpack.c.l.b16 %v2777
    %v3326 = vunpack.c.h.b16 %v2777
    %v3327 = vunpack.c.l.b16 %v2778
    %v3328 = vunpack.c.h.b16 %v2778
    %v3329 = vunpack.c.l.b16 %v2779
    %v3330 = vunpack.c.h.b16 %v2779
    %v3331 = vunpack.c.l.b16 %v2780
    %v3332 = vunpack.c.h.b16 %v2780
    %v3333 = vunpack.c.l.b16 %v2781
    %v3334 = vunpack.c.h.b16 %v2781
    %v3335 = vunpack.c.l.b16 %v2782
    %v3336 = vunpack.c.h.b16 %v2782
    %v3337 = vunpack.c.l.b16 %v2783
    %v3338 = vunpack.c.h.b16 %v2783
    %v3339 = vunpack.c.l.b16 %v2784
    %v3340 = vunpack.c.h.b16 %v2784
    %v3341 = vpack.c.b16 %v3327, %v3325
    %v3342 = vpack.c.b16 %v3328, %v3326
    %v3343 = vpack.c.b16 %v3331, %v3329
    %v3344 = vpack.c.b16 %v3332, %v3330
    %v3345 = vpack.c.b16 %v3335, %v3333
    %v3346 = vpack.c.b16 %v3336, %v3334
    %v3347 = vpack.c.b16 %v3339, %v3337
    %v3348 = vpack.c.b16 %v3340, %v3338
    %v3358 = vsel %vm97, %v3311, 0
    %3360 = vmatpush.bf16.msra.mxu0 0
    %3361 = vmatpush.bf16.msra.mxu0 0
    %3362 = vmatpush.bf16.msra.mxu0 0
    %3363 = vmatpush.bf16.msra.mxu0 0
    %3364 = vmatpush.bf16.msra.mxu0 %v3347
    %3365 = vmatpush.bf16.msra.mxu0 %v3345
    %3366 = vmatpush.bf16.msra.mxu0 %v3343
    %3367 = vmatpush.bf16.msra.mxu0 %v3341
    %3368 = vmatmul.bf16.gmra.mxu0 %v3358
    %v3369 = vpop.f32.mrf.mxu0
    %v3370 = vadd.f32 %v3313, %v3369
    %v3371 = vpop.f32.mrf.mxu0
    %v3372 = vadd.f32 %v3313, %v3371
    %3373 = vdwg.mxu0
    %3374 = vmatpush.bf16.msra.mxu0 0
    %3375 = vmatpush.bf16.msra.mxu0 0
    %3376 = vmatpush.bf16.msra.mxu0 0
    %3377 = vmatpush.bf16.msra.mxu0 0
    %3378 = vmatpush.bf16.msra.mxu0 %v3348
    %3379 = vmatpush.bf16.msra.mxu0 %v3346
    %3380 = vmatpush.bf16.msra.mxu0 %v3344
    %3381 = vmatpush.bf16.msra.mxu0 %v3342
    %3382 = vmatmul.bf16.gmra.mxu0 %v3358
    %v3383 = vpop.f32.mrf.mxu0
    %v3384 = vadd.f32 %v3314, %v3383
    %v3385 = vpop.f32.mrf.mxu0
    %v3386 = vadd.f32 %v3314, %v3385
    %3387 = vdwg.mxu0
    %v3388 = vmax.f32 %v3370, 0.0
    %v3389 = vmax.f32 %v3384, 0.0
    %v3390 = vmax.f32 %v3372, 0.0
    %v3391 = vmax.f32 %v3386, 0.0
    %v3392 = vpack.c.bf16 %v3390, %v3388
    %v3393 = vpack.c.bf16 %v3391, %v3389
    %v3394 = vperm.slane %v2822, 0
    %v3427 = vunpack.c.l.b16 %v2788
    %v3428 = vunpack.c.l.b16 %v2789
    %v3429 = vunpack.c.l.b16 %v2790
    %v3430 = vunpack.c.l.b16 %v2791
    %v3431 = vunpack.c.l.b16 %v2792
    %v3432 = vunpack.c.l.b16 %v2793
    %v3433 = vunpack.c.l.b16 %v2794
    %v3434 = vunpack.c.l.b16 %v2795
    %v3435 = vunpack.c.l.b16 %v2796
    %v3436 = vunpack.c.l.b16 %v2797
    %v3437 = vunpack.c.l.b16 %v2798
    %v3438 = vunpack.c.l.b16 %v2799
    %v3439 = vunpack.c.l.b16 %v2800
    %v3440 = vunpack.c.l.b16 %v2801
    %v3441 = vunpack.c.l.b16 %v2802
    %v3442 = vunpack.c.l.b16 %v2803
    %v3443 = vunpack.c.l.b16 %v2804
    %v3444 = vunpack.c.l.b16 %v2805
    %v3445 = vunpack.c.l.b16 %v2806
    %v3446 = vunpack.c.l.b16 %v2807
    %v3447 = vunpack.c.l.b16 %v2808
    %v3448 = vunpack.c.l.b16 %v2809
    %v3449 = vunpack.c.l.b16 %v2810
    %v3450 = vunpack.c.l.b16 %v2811
    %v3451 = vunpack.c.l.b16 %v2812
    %v3452 = vunpack.c.l.b16 %v2813
    %v3453 = vunpack.c.l.b16 %v2814
    %v3454 = vunpack.c.l.b16 %v2815
    %v3455 = vunpack.c.l.b16 %v2816
    %v3456 = vunpack.c.l.b16 %v2817
    %v3457 = vunpack.c.l.b16 %v2818
    %v3458 = vunpack.c.l.b16 %v2819
    %v3459 = vpack.c.b16 %v3428, %v3427
    %v3460 = vpack.c.b16 %v3430, %v3429
    %v3461 = vpack.c.b16 %v3432, %v3431
    %v3462 = vpack.c.b16 %v3434, %v3433
    %v3463 = vpack.c.b16 %v3436, %v3435
    %v3464 = vpack.c.b16 %v3438, %v3437
    %v3465 = vpack.c.b16 %v3440, %v3439
    %v3466 = vpack.c.b16 %v3442, %v3441
    %v3467 = vpack.c.b16 %v3444, %v3443
    %v3468 = vpack.c.b16 %v3446, %v3445
    %v3469 = vpack.c.b16 %v3448, %v3447
    %v3470 = vpack.c.b16 %v3450, %v3449
    %v3471 = vpack.c.b16 %v3452, %v3451
    %v3472 = vpack.c.b16 %v3454, %v3453
    %v3473 = vpack.c.b16 %v3456, %v3455
    %v3474 = vpack.c.b16 %v3458, %v3457
    %3491 = vmatpush.bf16.msra.mxu0 %v3466
    %3492 = vmatpush.bf16.msra.mxu0 %v3465
    %3493 = vmatpush.bf16.msra.mxu0 %v3464
    %3494 = vmatpush.bf16.msra.mxu0 %v3463
    %3495 = vmatpush.bf16.msra.mxu0 %v3462
    %3496 = vmatpush.bf16.msra.mxu0 %v3461
    %3497 = vmatpush.bf16.msra.mxu0 %v3460
    %3498 = vmatpush.bf16.msra.mxu0 %v3459
    %3499 = vmatmul.bf16.gmra.mxu0 %v3392
    %v3500 = vpop.f32.mrf.mxu0
    %v3501 = vadd.f32 %v3394, %v3500
    %v3502 = vpop.f32.mrf.mxu0
    %v3503 = vadd.f32 %v3394, %v3502
    %3504 = vdwg.mxu0
    %3505 = vmatpush.bf16.msra.mxu0 %v3474
    %3506 = vmatpush.bf16.msra.mxu0 %v3473
    %3507 = vmatpush.bf16.msra.mxu0 %v3472
    %3508 = vmatpush.bf16.msra.mxu0 %v3471
    %3509 = vmatpush.bf16.msra.mxu0 %v3470
    %3510 = vmatpush.bf16.msra.mxu0 %v3469
    %3511 = vmatpush.bf16.msra.mxu0 %v3468
    %3512 = vmatpush.bf16.msra.mxu0 %v3467
    %3513 = vmatmul.bf16.gmra.mxu0 %v3393
    %v3514 = vpop.f32.mrf.mxu0
    %v3515 = vadd.f32 %v3501, %v3514
    %v3516 = vpop.f32.mrf.mxu0
    %v3517 = vadd.f32 %v3503, %v3516
    %3518 = vdwg.mxu0
    %v3519 = vadd.f32 %v3309, %v3515
    %v3520 = vadd.f32 %v3310, %v3517
    %v3521 = vsel %vm97, %v3519, 0.0
    %3522 = vadd.xlane.f32.xlu0 %v3521
    %v3523 = vpop.xlane.xlu0 %3522
    %v3524 = vsel %vm97, %v3520, 0.0
    %3525 = vadd.xlane.f32.xlu0 %v3524
    %v3526 = vpop.xlane.xlu0 %3525
    %v3527 = vmul.f32 %v3523, %v110
    %v3528 = vmul.f32 %v3526, %v110
    %v3529 = vsub.f32 %v3519, %v3527
    %v3530 = vsub.f32 %v3520, %v3528
    %v3531 = vmul.f32 %v3529, %v3529
    %v3532 = vmul.f32 %v3530, %v3530
    %v3533 = vsel %vm97, %v3531, 0.0
    %3534 = vadd.xlane.f32.xlu0 %v3533
    %v3535 = vpop.xlane.xlu0 %3534
    %v3536 = vsel %vm97, %v3532, 0.0
    %3537 = vadd.xlane.f32.xlu0 %v3536
    %v3538 = vpop.xlane.xlu0 %3537
    %v3539 = vmul.f32 %v3535, %v110
    %v3540 = vmul.f32 %v3538, %v110
    %v3541 = vadd.f32 %v3539, 1e-05
    %v3542 = vadd.f32 %v3540, 1e-05
    %v3543 = vrsqrt.pop %v3541
    %v3544 = vmul.f32 %v3543, %v3541
    %v3545 = vmul.f32 %v3544, %v3543
    %v3546 = vmul.f32 0.5, %v3545
    %v3547 = vsub.f32 1.5, %v3546
    %v3548 = vmul.f32 %v3543, %v3547
    %vm3549 = vweird.f32 %v3541
    %vm3550 = vweird.f32 %v3543
    %vm3551 = vmor %vm3549, %vm3550
    %v3552 = vsel %vm3551, %v3543, %v3548
    %v3553 = vrsqrt.pop %v3542
    %v3554 = vmul.f32 %v3553, %v3542
    %v3555 = vmul.f32 %v3554, %v3553
    %v3556 = vmul.f32 0.5, %v3555
    %v3557 = vsub.f32 1.5, %v3556
    %v3558 = vmul.f32 %v3553, %v3557
    %vm3559 = vweird.f32 %v3542
    %vm3560 = vweird.f32 %v3553
    %vm3561 = vmor %vm3559, %vm3560
    %v3562 = vsel %vm3561, %v3553, %v3558
    %v3563 = vmul.f32 %v3529, %v3552
    %v3564 = vmul.f32 %v3530, %v3562
    %v3565 = vperm.slane %v2821, 6
    %v3566 = vmul.f32 %v3563, %v3565
    %v3567 = vmul.f32 %v3564, %v3565
    %v3568 = vperm.slane %v2821, 7
    %v3569 = vadd.f32 %v3566, %v3568
    %v3570 = vadd.f32 %v3567, %v3568
    %v3571 = vld [vmem:[%s16] sm:$0x1]
    %v3572 = vpack.c.bf16 %v3570, %v3569
    %v3574 = vsel %vm400, %v3571, 0
    %3576 = vmatpush.bf16.msra.mxu0 0
    %3577 = vmatpush.bf16.msra.mxu0 0
    %3578 = vmatpush.bf16.msra.mxu0 0
    %3579 = vmatpush.bf16.msra.mxu0 0
    %3580 = vmatpush.bf16.msra.mxu0 0
    %3581 = vmatpush.bf16.msra.mxu0 0
    %3582 = vmatpush.bf16.msra.mxu0 0
    %3583 = vmatpush.bf16.msra.mxu0 %v3572
    %3584 = vmatmul.bf16.gmra.mxu0 %v3574
    %v3585 = vpop.f32.mrf.mxu0
    %v3586 = vadd.f32 0.0, %v3585
    %v3587 = vpop.f32.mrf.mxu0
    %3588 = vdwg.mxu0
    %v3589 = vld [vmem:[%s10] sm:$0xf]
    %v3590 = vld [vmem:[%s10 + $0x4] sm:$0xf]
    %v3591 = vld [vmem:[%s10 + $0x8] sm:$0xf]
    %v3592 = vld [vmem:[%s10 + $0xc] sm:$0xf]
    %v3593 = vld [vmem:[%s10 + $0x10] sm:$0xf]
    %v3594 = vld [vmem:[%s10 + $0x14] sm:$0xf]
    %v3595 = vld [vmem:[%s10 + $0x18] sm:$0xf]
    %v3596 = vld [vmem:[%s10 + $0x1c] sm:$0xf]
    %v3597 = vpack.c.bf16 %v3586, %v3586
    %v3598 = vld [vmem:[%s14 + $0x3] sm:$0x1]
    %v3599 = vperm.slane %v3598, 0
    %v3608 = vunpack.c.l.b16 %v3589
    %v3609 = vunpack.c.l.b16 %v3590
    %v3610 = vunpack.c.l.b16 %v3591
    %v3611 = vunpack.c.l.b16 %v3592
    %v3612 = vunpack.c.l.b16 %v3593
    %v3613 = vunpack.c.l.b16 %v3594
    %v3614 = vunpack.c.l.b16 %v3595
    %v3615 = vunpack.c.l.b16 %v3596
    %v3616 = vpack.c.b16 %v3609, %v3608
    %v3617 = vpack.c.b16 %v3611, %v3610
    %v3618 = vpack.c.b16 %v3613, %v3612
    %v3619 = vpack.c.b16 %v3615, %v3614
    %v3625 = vsel %vm97, %v3597, 0
    %3627 = vmatpush.bf16.msra.mxu0 0
    %3628 = vmatpush.bf16.msra.mxu0 0
    %3629 = vmatpush.bf16.msra.mxu0 0
    %3630 = vmatpush.bf16.msra.mxu0 0
    %3631 = vmatpush.bf16.msra.mxu0 %v3619
    %3632 = vmatpush.bf16.msra.mxu0 %v3618
    %3633 = vmatpush.bf16.msra.mxu0 %v3617
    %3634 = vmatpush.bf16.msra.mxu0 %v3616
    %3635 = vmatmul.bf16.gmra.mxu0 %v3625
    %v3636 = vpop.f32.mrf.mxu0
    %v3637 = vadd.f32 %v3599, %v3636
    %v3638 = vpop.f32.mrf.mxu0
    %3639 = vdwg.mxu0
    %v3640 = vmax.f32 %v3637, 0.0
    %v3641 = vld [vmem:[%s11] sm:$0xf]
    %v3642 = vld [vmem:[%s11 + $0x4] sm:$0xf]
    %v3643 = vld [vmem:[%s11 + $0x8] sm:$0xf]
    %v3644 = vld [vmem:[%s11 + $0xc] sm:$0xf]
    %v3645 = vld [vmem:[%s11 + $0x10] sm:$0xf]
    %v3646 = vld [vmem:[%s11 + $0x14] sm:$0xf]
    %v3647 = vld [vmem:[%s11 + $0x18] sm:$0xf]
    %v3648 = vld [vmem:[%s11 + $0x1c] sm:$0xf]
    %v3649 = vpack.c.bf16 %v3640, %v3640
    %v3650 = vld [vmem:[%s14 + $0x4] sm:$0x1]
    %v3651 = vperm.slane %v3650, 0
    %v3660 = vunpack.c.l.b16 %v3641
    %v3661 = vunpack.c.l.b16 %v3642
    %v3662 = vunpack.c.l.b16 %v3643
    %v3663 = vunpack.c.l.b16 %v3644
    %v3664 = vunpack.c.l.b16 %v3645
    %v3665 = vunpack.c.l.b16 %v3646
    %v3666 = vunpack.c.l.b16 %v3647
    %v3667 = vunpack.c.l.b16 %v3648
    %v3668 = vpack.c.b16 %v3661, %v3660
    %v3669 = vpack.c.b16 %v3663, %v3662
    %v3670 = vpack.c.b16 %v3665, %v3664
    %v3671 = vpack.c.b16 %v3667, %v3666
    %v3677 = vsel %vm97, %v3649, 0
    %3679 = vmatpush.bf16.msra.mxu0 0
    %3680 = vmatpush.bf16.msra.mxu0 0
    %3681 = vmatpush.bf16.msra.mxu0 0
    %3682 = vmatpush.bf16.msra.mxu0 0
    %3683 = vmatpush.bf16.msra.mxu0 %v3671
    %3684 = vmatpush.bf16.msra.mxu0 %v3670
    %3685 = vmatpush.bf16.msra.mxu0 %v3669
    %3686 = vmatpush.bf16.msra.mxu0 %v3668
    %3687 = vmatmul.bf16.gmra.mxu0 %v3677
    %v3688 = vpop.f32.mrf.mxu0
    %v3689 = vadd.f32 %v3651, %v3688
    %v3690 = vpop.f32.mrf.mxu0
    %3691 = vdwg.mxu0
    %v3692 = vmax.f32 %v3689, 0.0
    %v3693 = vld [vmem:[%s14 + $0x5] sm:$0x1]
    %v3694 = vld [vmem:[%s14 + $0x6] sm:$0x1]
    %vm3695 = vcmask 123904
    %v3696 = vsel %vm3695, %v3692, 0.0
    %3697 = vadd.xlane.f32.xlu0 %v3696
    %v3698 = vpop.xlane.xlu0 %3697
    %v3699 = vrcp.pop 16.0
    %v3700 = vmul.f32 16.0, %v3699
    %v3701 = vsub.f32 1.0, %v3700
    %v3702 = vmul.f32 %v3699, %v3701
    %v3703 = vadd.f32 %v3699, %v3702
    %vm3704 = vweird.f32 %v3699
    %v3705 = vsel %vm3704, %v3699, %v3703
    %v3706 = vmul.f32 %v3698, %v3705
    %v3707 = vsub.f32 %v3692, %v3706
    %v3708 = vmul.f32 %v3707, %v3707
    %v3709 = vsel %vm3695, %v3708, 0.0
    %3710 = vadd.xlane.f32.xlu0 %v3709
    %v3711 = vpop.xlane.xlu0 %3710
    %v3712 = vmul.f32 %v3711, %v3705
    %v3713 = vadd.f32 %v3712, 1e-05
    %v3714 = vrsqrt.pop %v3713
    %v3715 = vmul.f32 %v3714, %v3713
    %v3716 = vmul.f32 %v3715, %v3714
    %v3717 = vmul.f32 0.5, %v3716
    %v3718 = vsub.f32 1.5, %v3717
    %v3719 = vmul.f32 %v3714, %v3718
    %vm3720 = vweird.f32 %v3713
    %vm3721 = vweird.f32 %v3714
    %vm3722 = vmor %vm3720, %vm3721
    %v3723 = vsel %vm3722, %v3714, %v3719
    %v3724 = vmul.f32 %v3707, %v3723
    %v3725 = vperm.slane %v3693, 0
    %v3726 = vmul.f32 %v3724, %v3725
    %v3727 = vperm.slane %v3694, 0
    %v3728 = vadd.f32 %v3726, %v3727
    %v3729 = vld [vmem:[%s12] sm:$0xf]
    %v3730 = vld [vmem:[%s12 + $0x4] sm:$0xf]
    %v3731 = vpack.c.bf16 %v3728, %v3728
    %v3732 = vld [vmem:[%s13] sm:$0x1]
    %v3734 = vperm.slane %v3732, 0
    %v3738 = vunpack.c.l.b16 %v3729
    %v3739 = vunpack.c.l.b16 %v3730
    %v3740 = vpack.c.b16 %v3739, %v3738
    %v3743 = vsel %vm400, %v3731, 0
    %3745 = vmatpush.bf16.msra.mxu0 0
    %3746 = vmatpush.bf16.msra.mxu0 0
    %3747 = vmatpush.bf16.msra.mxu0 0
    %3748 = vmatpush.bf16.msra.mxu0 0
    %3749 = vmatpush.bf16.msra.mxu0 0
    %3750 = vmatpush.bf16.msra.mxu0 0
    %3751 = vmatpush.bf16.msra.mxu0 0
    %3752 = vmatpush.bf16.msra.mxu0 %v3740
    %3753 = vmatmul.bf16.gmra.mxu0 %v3743
    %v3754 = vpop.f32.mrf.mxu0
    %v3755 = vadd.f32 %v3734, %v3754
    %v3756 = vpop.f32.mrf.mxu0
    %3757 = vdwg.mxu0
    %3758 = vst [vmem:[#allocation2] sm:$0x3] %v3755
    // Predicated region
    $region70: #{man_zone_forward.1} parent=1 // pred_check
      _
    $region71: #{man_zone_forward.1} parent=1 // pred_check_branch
      %3760 = sbr.rel (0) target = $region73
    $region72: #{man_zone_forward.1} parent=1 // pred_region
      %3762 = vsyncadd [#allocation3], 0
      %s3764 = sshll.u32 [#allocation2], 4
      %s3765 = int_to_ptr.vmem [resolvable:$true] %s3764
      %s3766 = sshll.u32 %s17, 4
      %s3767 = int_to_ptr.hbm [resolvable:$true] %s3766
      %3769 = dma.vmem_to_hbm [thread:$0]  %s3765, 32, %s3767, [#allocation3]
    $region73: #{man_zone_forward.1} parent=1 // pred_fallthru
      _
    // Predicated region
    $region74: #{man_zone_forward.1} parent=1 // pred_check
      _
    $region75: #{man_zone_forward.1} parent=1 // pred_check_branch
      %3771 = sbr.rel (0) target = $region77
    $region76: #{man_zone_forward.1} parent=1 // pred_region
      %3773 = dma.done [#allocation3], 32
    $region77: #{man_zone_forward.1} parent=1 // pred_fallthru
      _
    %3774 = vsyncpa [#allocation3], 1

</llo_original>
